<compile_context>
chip_gen: v6e
topology: v6e:2x2x1
jax: 0.10.0
libtpu: 0.0.40
codegen_flags: <defaults>
</compile_context>

<pallas_src>
import functools
import json

import numpy as np
import jax
import jax.numpy as jnp
from jax.experimental import pallas as pl
from jax.experimental.pallas import tpu as pltpu

CONFIG = json.loads("""
{
  "type": "linear",
  "layer": {"conv_in": 16, "conv_out": 64},
  "block": [
    {"type": "linear", "c1": 32, "k": 3, "c2": 24, "s": 2},
    {"type": "linear", "c1": 48, "k": 3, "c2": 24, "s": 1}
  ]
}
""")

EPS = 1e-5


def _relu6(x):
    return jnp.clip(x, 0.0, 6.0)


# ----------------------------------------------------------------------------
# Small spatial constants (numpy, cached).  All are tiny (<< 1 MiB).
# ----------------------------------------------------------------------------
@functools.lru_cache(maxsize=None)
def spatial_masks(h, w, k, n):
    """(k*k, 1, n*h*w) f32 zero-padding validity masks for a kxk conv."""
    hw = h * w
    half = k // 2
    ys, xs = np.meshgrid(np.arange(h), np.arange(w), indexing="ij")
    ys, xs = ys.reshape(-1), xs.reshape(-1)
    m = np.zeros((k * k, 1, hw), np.float32)
    t = 0
    for di in range(k):
        for dj in range(k):
            valid = ((ys + di - half >= 0) & (ys + di - half < h)
                     & (xs + dj - half >= 0) & (xs + dj - half < w))
            m[t, 0, :] = valid.astype(np.float32)
            t += 1
    return jnp.asarray(np.tile(m, (1, 1, n)))          # batch folded on lanes


@functools.lru_cache(maxsize=None)
def stride_select(h, w, s, n):
    """(n*h*w, n*ho*wo) bf16 0/1 selector: folds stride-s subsampling into
    a matmul (output position (yo,xo) <- input position (s*yo, s*xo))."""
    ho, wo = (h - 1) // s + 1, (w - 1) // s + 1
    sel = np.zeros((n * h * w, n * ho * wo), np.float32)
    for img in range(n):
        for yo in range(ho):
            for xo in range(wo):
                sel[img * h * w + (s * yo) * w + (s * xo),
                    img * ho * wo + yo * wo + xo] = 1.0
    return jnp.asarray(sel, jnp.bfloat16)


@functools.lru_cache(maxsize=None)
def pool_matrix(h, w, n):
    """(n*h*w, n) bf16 per-image average-pooling matrix."""
    hw = h * w
    p = np.zeros((n * hw, n), np.float32)
    for img in range(n):
        p[img * hw:(img + 1) * hw, img] = 1.0 / hw
    return jnp.asarray(p, jnp.bfloat16)


# ----------------------------------------------------------------------------
# The single fused kernel.  `plan` is static per-block metadata.
# ----------------------------------------------------------------------------
def _fused_kernel(*refs, plan):
    o_ref = refs[-1]
    it = iter(refs[:-1])
    bf16, f32 = jnp.bfloat16, jnp.float32

    # ---- stem: 3x3 conv (single matmul over pre-stacked taps) + BN + relu6
    xt_ref, ws_ref, bs_ref = next(it), next(it), next(it)
    x = _relu6(jnp.dot(ws_ref[...], xt_ref[...],
                       preferred_element_type=f32) + bs_ref[...])   # (C0, N*HW)

    # ---- inverted-residual blocks: expand -> depthwise -> linear project
    for bp in plan:
        we_ref, be_ref = next(it), next(it)
        dw_ref, db_ref, mk_ref = next(it), next(it), next(it)
        wp_ref, pb_ref = next(it), next(it)
        sel_ref = next(it) if bp["stride"] > 1 else None

        # expand 1x1 + BN + relu6
        h = _relu6(jnp.dot(we_ref[...], x.astype(bf16),
                           preferred_element_type=f32) + be_ref[...])

        # depthwise kxk via static lane rolls (XLU) + boundary masks (VPU)
        k, w, half = bp["k"], bp["w"], bp["k"] // 2
        nhw = h.shape[1]
        acc = jnp.zeros_like(h)
        t = 0
        for di in range(k):
            for dj in range(k):
                s_t = (di - half) * w + (dj - half)
                sh = h if s_t == 0 else pltpu.roll(h, shift=(-s_t) % nhw, axis=1)
                # dw_ref[t]: (Ch,1) per-channel weight (BN scale folded in);
                # mk_ref[t]: (1,nhw) zero-padding mask.
                acc = acc + sh * dw_ref[t] * mk_ref[t]
                t += 1
        d = _relu6(acc + db_ref[...])

        # fold stride-2 in-kernel, before the project matmul (lane-dense)
        if sel_ref is not None:
            d = jnp.dot(d.astype(bf16), sel_ref[...], preferred_element_type=f32)

        # project 1x1 + BN (linear) + optional residual
        y = jnp.dot(wp_ref[...], d.astype(bf16),
                    preferred_element_type=f32) + pb_ref[...]
        if bp["residual"]:
            y = y + x
        x = y

    # ---- head: 1x1 conv + BN + relu6, per-image avg pool (matmul), fc
    wo_ref, ob_ref, pool_ref, fw_ref, fb_ref = (next(it), next(it), next(it),
                                                next(it), next(it))
    z = _relu6(jnp.dot(wo_ref[...], x.astype(bf16),
                       preferred_element_type=f32) + ob_ref[...])
    pooled = jnp.dot(z.astype(bf16), pool_ref[...], preferred_element_type=f32)
    o_ref[...] = jnp.dot(fw_ref[...], pooled.astype(bf16),
                         preferred_element_type=f32) + fb_ref[...]


def _full_spec(shape):
    nd = len(shape)
    return pl.BlockSpec(tuple(shape), lambda i: (0,) * nd)


# ----------------------------------------------------------------------------
# Wrapper: build the tap-stacked input + spatial constants, call the kernel.
# ----------------------------------------------------------------------------
def eval_forward(kp, x_nchw):
    N, Cin, H, W = x_nchw.shape

    # im2col of the 3x3 stem input (tiny tensor; layout plumbing only).
    xp = jnp.pad(x_nchw, ((0, 0), (0, 0), (1, 1), (1, 1)))
    taps = [xp[:, :, di:di + H, dj:dj + W]
            for di in range(3) for dj in range(3)]
    xt = jnp.stack(taps, axis=0)                                 # (9,N,Cin,H,W)
    xt = jnp.transpose(xt, (0, 2, 1, 3, 4)).reshape(
        9 * Cin, N * H * W).astype(jnp.bfloat16)                 # (9*Cin, N*HW)

    args = [xt, kp["stem_w"], kp["stem_b"]]
    plan = []
    h, w = H, W
    for blk in kp["blocks"]:
        mk = spatial_masks(h, w, blk["k"], N)
        args += [blk["we"], blk["be"], blk["dw"], blk["db"], mk,
                 blk["wp"], blk["pb"]]
        plan.append({"k": blk["k"], "w": w, "stride": blk["s"],
                     "residual": blk["residual"]})
        if blk["s"] > 1:
            args.append(stride_select(h, w, blk["s"], N))
            h, w = (h - 1) // blk["s"] + 1, (w - 1) // blk["s"] + 1
    args += [kp["head_w"], kp["head_b"], pool_matrix(h, w, N),
             kp["fc_w"], kp["fc_b"]]

    num_classes = kp["fc_w"].shape[0]
    out = pl.pallas_call(
        functools.partial(_fused_kernel, plan=plan),
        out_shape=jax.ShapeDtypeStruct((num_classes, N), jnp.float32),
        grid=(1,),
        in_specs=[_full_spec(a.shape) for a in args],
        out_specs=_full_spec((num_classes, N)),
        compiler_params=pltpu.CompilerParams(
            dimension_semantics=("arbitrary",)),
    )(*args)
    return out.T                                                  # (N, classes)


# ----------------------------------------------------------------------------
# Deterministic synthetic parameters (PyTorch-like raw form) + kernel folding.
# ----------------------------------------------------------------------------
def make_raw_params(key, input_channel, num_classes):
    keys = iter(jax.random.split(key, 64))

    def conv_w(shape):
        fan_in = int(np.prod(shape[1:]))
        return jax.random.normal(next(keys), shape, jnp.float32) * np.sqrt(
            2.0 / fan_in)

    def bn_params(c):
        k1, k2, k3, k4 = jax.random.split(next(keys), 4)
        gamma = 1.0 + 0.1 * jax.random.normal(k1, (c,), jnp.float32)
        beta = 0.1 * jax.random.normal(k2, (c,), jnp.float32)
        mean = 0.1 * jax.random.normal(k3, (c,), jnp.float32)
        var = jnp.abs(jax.random.normal(k4, (c,), jnp.float32)) + 0.5
        return (gamma, beta, mean, var)

    raw = {}
    c0 = CONFIG["layer"]["conv_in"]
    raw["conv_in_w"] = conv_w((c0, input_channel, 3, 3))
    raw["bn_in"] = bn_params(c0)

    out_planes = c0
    blocks = []
    for bc in CONFIG["block"]:
        in_planes, hidden, k, c2, s = out_planes, bc["c1"], bc["k"], bc["c2"], bc["s"]
        blocks.append({
            "expand_w": conv_w((hidden, in_planes, 1, 1)),
            "expand_bn": bn_params(hidden),
            "dw_w": conv_w((hidden, 1, k, k)),
            "dw_bn": bn_params(hidden),
            "proj_w": conv_w((c2, hidden, 1, 1)),
            "proj_bn": bn_params(c2),
            "k": k, "s": s, "residual": (s == 1 and in_planes == c2),
        })
        out_planes = c2
    raw["blocks"] = blocks

    c_out = CONFIG["layer"]["conv_out"]
    raw["conv_out_w"] = conv_w((c_out, out_planes, 1, 1))
    raw["bn_out"] = bn_params(c_out)
    raw["fc_w"] = jax.random.normal(next(keys), (num_classes, c_out),
                                    jnp.float32) * np.sqrt(1.0 / c_out)
    raw["fc_b"] = 0.1 * jax.random.normal(next(keys), (num_classes,), jnp.float32)
    return raw


def _fold_bn(bn):
    gamma, beta, mean, var = bn
    scale = gamma / jnp.sqrt(var + EPS)
    return scale, beta - mean * scale


def prepare_kernel_params(raw):
    bf16 = jnp.bfloat16
    kp = {}

    s, b = _fold_bn(raw["bn_in"])
    c0, cin = raw["conv_in_w"].shape[:2]
    w = jnp.transpose(raw["conv_in_w"], (0, 2, 3, 1)).reshape(c0, 9 * cin)
    kp["stem_w"] = (w * s[:, None]).astype(bf16)          # (C0, 9*Cin)
    kp["stem_b"] = b.reshape(c0, 1)

    kp["blocks"] = []
    for blk in raw["blocks"]:
        k = blk["k"]
        hidden, c2 = blk["expand_w"].shape[0], blk["proj_w"].shape[0]
        es, eb = _fold_bn(blk["expand_bn"])
        ds, db = _fold_bn(blk["dw_bn"])
        ps, pb = _fold_bn(blk["proj_bn"])
        kp["blocks"].append({
            "we": (blk["expand_w"][:, :, 0, 0] * es[:, None]).astype(bf16),
            "be": eb.reshape(hidden, 1),
            "dw": (blk["dw_w"].reshape(hidden, k * k) * ds[:, None]
                   ).T.reshape(k * k, hidden, 1),          # (kk, Ch, 1) f32
            "db": db.reshape(hidden, 1),
            "wp": (blk["proj_w"][:, :, 0, 0] * ps[:, None]).astype(bf16),
            "pb": pb.reshape(c2, 1),
            "k": k, "s": blk["s"], "residual": blk["residual"],
        })

    os_, ob = _fold_bn(raw["bn_out"])
    cout = raw["conv_out_w"].shape[0]
    kp["head_w"] = (raw["conv_out_w"][:, :, 0, 0] * os_[:, None]).astype(bf16)
    kp["head_b"] = ob.reshape(cout, 1)
    kp["fc_w"] = raw["fc_w"].astype(bf16)
    kp["fc_b"] = raw["fc_b"].reshape(-1, 1)
    return kp


# ----------------------------------------------------------------------------
# Pure-JAX (XLA) reference of the same forward, for a numerical sanity check.
# ----------------------------------------------------------------------------
def _bn_ref(x, bn):
    gamma, beta, mean, var = bn
    inv = gamma / jnp.sqrt(var + EPS)
    return (x - mean[None, :, None, None]) * inv[None, :, None, None] \
        + beta[None, :, None, None]


def _conv_ref(x, w, stride=1, padding=0, groups=1):
    return jax.lax.conv_general_dilated(
        x, w, window_strides=(stride, stride),
        padding=((padding, padding), (padding, padding)),
        dimension_numbers=("NCHW", "OIHW", "NCHW"),
        feature_group_count=groups)


def reference_forward(raw, x):
    x = jax.nn.relu6(_bn_ref(_conv_ref(x, raw["conv_in_w"], padding=1),
                             raw["bn_in"]))
    for blk in raw["blocks"]:
        inp = x
        h = jax.nn.relu6(_bn_ref(_conv_ref(x, blk["expand_w"]), blk["expand_bn"]))
        h = jax.nn.relu6(_bn_ref(
            _conv_ref(h, blk["dw_w"], stride=blk["s"], padding=blk["k"] // 2,
                      groups=h.shape[1]), blk["dw_bn"]))
        y = _bn_ref(_conv_ref(h, blk["proj_w"]), blk["proj_bn"])
        x = y + inp if blk["residual"] else y
    z = jax.nn.relu6(_bn_ref(_conv_ref(x, raw["conv_out_w"]), raw["bn_out"]))
    pooled = jnp.mean(z, axis=(2, 3))
    return pooled @ raw["fc_w"].T + raw["fc_b"][None, :]


if __name__ == "__main__":
    key = jax.random.PRNGKey(0)
    kx, kparam = jax.random.split(key)

    batch, input_channel, spatial, num_classes = 2, 4, 16, 10
    x = jax.random.normal(kx, (batch, input_channel, spatial, spatial),
                          jnp.float32)                    # NCHW, like PyTorch

    raw = make_raw_params(kparam, input_channel, num_classes)
    kp = prepare_kernel_params(raw)

    logits = eval_forward(kp, x)
    jax.block_until_ready(logits)
    assert logits.shape == (batch, num_classes)

    ref = reference_forward(raw, x)
    np.testing.assert_allclose(np.asarray(logits), np.asarray(ref),
                               rtol=0.05, atol=0.1)       # bf16 tolerance
    print("KERNEL_OK")
</pallas_src>

<mosaic_0001>
module attributes {stable_mosaic.version = 11 : i64} {
  func.func @_fused_kernel(%arg0: i32, %arg1: memref<36x512xbf16, #tpu.memory_space<vmem>>, %arg2: memref<16x36xbf16, #tpu.memory_space<vmem>>, %arg3: memref<16x1xf32, #tpu.memory_space<vmem>>, %arg4: memref<32x16xbf16, #tpu.memory_space<vmem>>, %arg5: memref<32x1xf32, #tpu.memory_space<vmem>>, %arg6: memref<9x32x1xf32, #tpu.memory_space<vmem>>, %arg7: memref<32x1xf32, #tpu.memory_space<vmem>>, %arg8: memref<9x1x512xf32, #tpu.memory_space<vmem>>, %arg9: memref<24x32xbf16, #tpu.memory_space<vmem>>, %arg10: memref<24x1xf32, #tpu.memory_space<vmem>>, %arg11: memref<512x128xbf16, #tpu.memory_space<vmem>>, %arg12: memref<48x24xbf16, #tpu.memory_space<vmem>>, %arg13: memref<48x1xf32, #tpu.memory_space<vmem>>, %arg14: memref<9x48x1xf32, #tpu.memory_space<vmem>>, %arg15: memref<48x1xf32, #tpu.memory_space<vmem>>, %arg16: memref<9x1x128xf32, #tpu.memory_space<vmem>>, %arg17: memref<24x48xbf16, #tpu.memory_space<vmem>>, %arg18: memref<24x1xf32, #tpu.memory_space<vmem>>, %arg19: memref<64x24xbf16, #tpu.memory_space<vmem>>, %arg20: memref<64x1xf32, #tpu.memory_space<vmem>>, %arg21: memref<128x2xbf16, #tpu.memory_space<vmem>>, %arg22: memref<10x64xbf16, #tpu.memory_space<vmem>>, %arg23: memref<10x1xf32, #tpu.memory_space<vmem>>, %arg24: memref<10x2xf32, #tpu.memory_space<vmem>>) attributes {dimension_semantics = [#tpu.dimension_semantics<arbitrary>], iteration_bounds = array<i64: 1>, scalar_prefetch = 0 : i64, scratch_operands = 0 : i64, tpu.core_type = #tpu.core_type<tc>, window_params = [{pipeline_mode = #tpu.pipeline_mode<synchronous>, transform_indices = @transform_0, window_bounds = array<i64: 36, 512>}, {pipeline_mode = #tpu.pipeline_mode<synchronous>, transform_indices = @transform_1, window_bounds = array<i64: 16, 36>}, {pipeline_mode = #tpu.pipeline_mode<synchronous>, transform_indices = @transform_2, window_bounds = array<i64: 16, 1>}, {pipeline_mode = #tpu.pipeline_mode<synchronous>, transform_indices = @transform_3, window_bounds = array<i64: 32, 16>}, {pipeline_mode = #tpu.pipeline_mode<synchronous>, transform_indices = @transform_4, window_bounds = array<i64: 32, 1>}, {pipeline_mode = #tpu.pipeline_mode<synchronous>, transform_indices = @transform_5, window_bounds = array<i64: 9, 32, 1>}, {pipeline_mode = #tpu.pipeline_mode<synchronous>, transform_indices = @transform_6, window_bounds = array<i64: 32, 1>}, {pipeline_mode = #tpu.pipeline_mode<synchronous>, transform_indices = @transform_7, window_bounds = array<i64: 9, 1, 512>}, {pipeline_mode = #tpu.pipeline_mode<synchronous>, transform_indices = @transform_8, window_bounds = array<i64: 24, 32>}, {pipeline_mode = #tpu.pipeline_mode<synchronous>, transform_indices = @transform_9, window_bounds = array<i64: 24, 1>}, {pipeline_mode = #tpu.pipeline_mode<synchronous>, transform_indices = @transform_10, window_bounds = array<i64: 512, 128>}, {pipeline_mode = #tpu.pipeline_mode<synchronous>, transform_indices = @transform_11, window_bounds = array<i64: 48, 24>}, {pipeline_mode = #tpu.pipeline_mode<synchronous>, transform_indices = @transform_12, window_bounds = array<i64: 48, 1>}, {pipeline_mode = #tpu.pipeline_mode<synchronous>, transform_indices = @transform_13, window_bounds = array<i64: 9, 48, 1>}, {pipeline_mode = #tpu.pipeline_mode<synchronous>, transform_indices = @transform_14, window_bounds = array<i64: 48, 1>}, {pipeline_mode = #tpu.pipeline_mode<synchronous>, transform_indices = @transform_15, window_bounds = array<i64: 9, 1, 128>}, {pipeline_mode = #tpu.pipeline_mode<synchronous>, transform_indices = @transform_16, window_bounds = array<i64: 24, 48>}, {pipeline_mode = #tpu.pipeline_mode<synchronous>, transform_indices = @transform_17, window_bounds = array<i64: 24, 1>}, {pipeline_mode = #tpu.pipeline_mode<synchronous>, transform_indices = @transform_18, window_bounds = array<i64: 64, 24>}, {pipeline_mode = #tpu.pipeline_mode<synchronous>, transform_indices = @transform_19, window_bounds = array<i64: 64, 1>}, {pipeline_mode = #tpu.pipeline_mode<synchronous>, transform_indices = @transform_20, window_bounds = array<i64: 128, 2>}, {pipeline_mode = #tpu.pipeline_mode<synchronous>, transform_indices = @transform_21, window_bounds = array<i64: 10, 64>}, {pipeline_mode = #tpu.pipeline_mode<synchronous>, transform_indices = @transform_22, window_bounds = array<i64: 10, 1>}, {pipeline_mode = #tpu.pipeline_mode<synchronous>, transform_indices = @transform_23, window_bounds = array<i64: 10, 2>}]} {
    %c0 = arith.constant 0 : index
    %c0_0 = arith.constant 0 : index
    %0 = vector.load %arg2[%c0, %c0_0] : memref<16x36xbf16, #tpu.memory_space<vmem>>, vector<16x36xbf16>
    %c0_1 = arith.constant 0 : index
    %c0_2 = arith.constant 0 : index
    %1 = vector.load %arg1[%c0_1, %c0_2] : memref<36x512xbf16, #tpu.memory_space<vmem>>, vector<36x512xbf16>
    %cst = arith.constant dense<0.000000e+00> : vector<16x512xf32>
    %2 = tpu.matmul %0, %1, %cst {dimension_numbers = #tpu.dot_dimension_numbers<[1], [0], [0], [1], [0, 0, 1, 1], [], []>} : vector<16x36xbf16>, vector<36x512xbf16>, vector<16x512xf32> -> vector<16x512xf32>
    %c0_3 = arith.constant 0 : index
    %c0_4 = arith.constant 0 : index
    %3 = vector.load %arg3[%c0_3, %c0_4] : memref<16x1xf32, #tpu.memory_space<vmem>>, vector<16x1xf32>
    %4 = vector.broadcast %3 : vector<16x1xf32> to vector<16x512xf32>
    %5 = arith.addf %2, %4 : vector<16x512xf32>
    %cst_5 = arith.constant 0.000000e+00 : f32
    %cst_6 = arith.constant 6.000000e+00 : f32
    %6 = vector.broadcast %cst_5 : f32 to vector<16x512xf32>
    %7 = arith.maximumf %6, %5 : vector<16x512xf32>
    %8 = vector.broadcast %cst_6 : f32 to vector<16x512xf32>
    %9 = arith.minimumf %8, %7 : vector<16x512xf32>
    %c0_7 = arith.constant 0 : index
    %c0_8 = arith.constant 0 : index
    %10 = vector.load %arg4[%c0_7, %c0_8] : memref<32x16xbf16, #tpu.memory_space<vmem>>, vector<32x16xbf16>
    %11 = arith.truncf %9 : vector<16x512xf32> to vector<16x512xbf16>
    %cst_9 = arith.constant dense<0.000000e+00> : vector<32x512xf32>
    %12 = tpu.matmul %10, %11, %cst_9 {dimension_numbers = #tpu.dot_dimension_numbers<[1], [0], [0], [1], [0, 0, 1, 1], [], []>} : vector<32x16xbf16>, vector<16x512xbf16>, vector<32x512xf32> -> vector<32x512xf32>
    %c0_10 = arith.constant 0 : index
    %c0_11 = arith.constant 0 : index
    %13 = vector.load %arg5[%c0_10, %c0_11] : memref<32x1xf32, #tpu.memory_space<vmem>>, vector<32x1xf32>
    %14 = vector.broadcast %13 : vector<32x1xf32> to vector<32x512xf32>
    %15 = arith.addf %12, %14 : vector<32x512xf32>
    %cst_12 = arith.constant 0.000000e+00 : f32
    %cst_13 = arith.constant 6.000000e+00 : f32
    %16 = vector.broadcast %cst_12 : f32 to vector<32x512xf32>
    %17 = arith.maximumf %16, %15 : vector<32x512xf32>
    %18 = vector.broadcast %cst_13 : f32 to vector<32x512xf32>
    %19 = arith.minimumf %18, %17 : vector<32x512xf32>
    %cst_14 = arith.constant 0.000000e+00 : f32
    %20 = vector.broadcast %cst_14 : f32 to vector<32x512xf32>
    %c17_i32 = arith.constant 17 : i32
    %21 = tpu.dynamic_rotate %19 by %c17_i32 dim 1 : vector<32x512xf32>, i32 -> vector<32x512xf32>
    %c0_15 = arith.constant 0 : index
    %c0_16 = arith.constant 0 : index
    %c0_17 = arith.constant 0 : index
    %22 = vector.load %arg6[%c0_15, %c0_16, %c0_17] : memref<9x32x1xf32, #tpu.memory_space<vmem>>, vector<1x32x1xf32>
    %23 = vector.shape_cast %22 : vector<1x32x1xf32> to vector<32x1xf32>
    %24 = vector.broadcast %23 : vector<32x1xf32> to vector<32x512xf32>
    %25 = arith.mulf %21, %24 : vector<32x512xf32>
    %c0_18 = arith.constant 0 : index
    %c0_19 = arith.constant 0 : index
    %c0_20 = arith.constant 0 : index
    %26 = vector.load %arg8[%c0_18, %c0_19, %c0_20] : memref<9x1x512xf32, #tpu.memory_space<vmem>>, vector<1x1x512xf32>
    %27 = vector.shape_cast %26 : vector<1x1x512xf32> to vector<1x512xf32>
    %28 = vector.broadcast %27 : vector<1x512xf32> to vector<32x512xf32>
    %29 = arith.mulf %25, %28 : vector<32x512xf32>
    %30 = arith.addf %20, %29 : vector<32x512xf32>
    %c16_i32 = arith.constant 16 : i32
    %31 = tpu.dynamic_rotate %19 by %c16_i32 dim 1 : vector<32x512xf32>, i32 -> vector<32x512xf32>
    %c1 = arith.constant 1 : index
    %c0_21 = arith.constant 0 : index
    %c0_22 = arith.constant 0 : index
    %32 = vector.load %arg6[%c1, %c0_21, %c0_22] : memref<9x32x1xf32, #tpu.memory_space<vmem>>, vector<1x32x1xf32>
    %33 = vector.shape_cast %32 : vector<1x32x1xf32> to vector<32x1xf32>
    %34 = vector.broadcast %33 : vector<32x1xf32> to vector<32x512xf32>
    %35 = arith.mulf %31, %34 : vector<32x512xf32>
    %c1_23 = arith.constant 1 : index
    %c0_24 = arith.constant 0 : index
    %c0_25 = arith.constant 0 : index
    %36 = vector.load %arg8[%c1_23, %c0_24, %c0_25] : memref<9x1x512xf32, #tpu.memory_space<vmem>>, vector<1x1x512xf32>
    %37 = vector.shape_cast %36 : vector<1x1x512xf32> to vector<1x512xf32>
    %38 = vector.broadcast %37 : vector<1x512xf32> to vector<32x512xf32>
    %39 = arith.mulf %35, %38 : vector<32x512xf32>
    %40 = arith.addf %30, %39 : vector<32x512xf32>
    %c15_i32 = arith.constant 15 : i32
    %41 = tpu.dynamic_rotate %19 by %c15_i32 dim 1 : vector<32x512xf32>, i32 -> vector<32x512xf32>
    %c2 = arith.constant 2 : index
    %c0_26 = arith.constant 0 : index
    %c0_27 = arith.constant 0 : index
    %42 = vector.load %arg6[%c2, %c0_26, %c0_27] : memref<9x32x1xf32, #tpu.memory_space<vmem>>, vector<1x32x1xf32>
    %43 = vector.shape_cast %42 : vector<1x32x1xf32> to vector<32x1xf32>
    %44 = vector.broadcast %43 : vector<32x1xf32> to vector<32x512xf32>
    %45 = arith.mulf %41, %44 : vector<32x512xf32>
    %c2_28 = arith.constant 2 : index
    %c0_29 = arith.constant 0 : index
    %c0_30 = arith.constant 0 : index
    %46 = vector.load %arg8[%c2_28, %c0_29, %c0_30] : memref<9x1x512xf32, #tpu.memory_space<vmem>>, vector<1x1x512xf32>
    %47 = vector.shape_cast %46 : vector<1x1x512xf32> to vector<1x512xf32>
    %48 = vector.broadcast %47 : vector<1x512xf32> to vector<32x512xf32>
    %49 = arith.mulf %45, %48 : vector<32x512xf32>
    %50 = arith.addf %40, %49 : vector<32x512xf32>
    %c1_i32 = arith.constant 1 : i32
    %51 = tpu.dynamic_rotate %19 by %c1_i32 dim 1 : vector<32x512xf32>, i32 -> vector<32x512xf32>
    %c3 = arith.constant 3 : index
    %c0_31 = arith.constant 0 : index
    %c0_32 = arith.constant 0 : index
    %52 = vector.load %arg6[%c3, %c0_31, %c0_32] : memref<9x32x1xf32, #tpu.memory_space<vmem>>, vector<1x32x1xf32>
    %53 = vector.shape_cast %52 : vector<1x32x1xf32> to vector<32x1xf32>
    %54 = vector.broadcast %53 : vector<32x1xf32> to vector<32x512xf32>
    %55 = arith.mulf %51, %54 : vector<32x512xf32>
    %c3_33 = arith.constant 3 : index
    %c0_34 = arith.constant 0 : index
    %c0_35 = arith.constant 0 : index
    %56 = vector.load %arg8[%c3_33, %c0_34, %c0_35] : memref<9x1x512xf32, #tpu.memory_space<vmem>>, vector<1x1x512xf32>
    %57 = vector.shape_cast %56 : vector<1x1x512xf32> to vector<1x512xf32>
    %58 = vector.broadcast %57 : vector<1x512xf32> to vector<32x512xf32>
    %59 = arith.mulf %55, %58 : vector<32x512xf32>
    %60 = arith.addf %50, %59 : vector<32x512xf32>
    %c4 = arith.constant 4 : index
    %c0_36 = arith.constant 0 : index
    %c0_37 = arith.constant 0 : index
    %61 = vector.load %arg6[%c4, %c0_36, %c0_37] : memref<9x32x1xf32, #tpu.memory_space<vmem>>, vector<1x32x1xf32>
    %62 = vector.shape_cast %61 : vector<1x32x1xf32> to vector<32x1xf32>
    %63 = vector.broadcast %62 : vector<32x1xf32> to vector<32x512xf32>
    %64 = arith.mulf %19, %63 : vector<32x512xf32>
    %c4_38 = arith.constant 4 : index
    %c0_39 = arith.constant 0 : index
    %c0_40 = arith.constant 0 : index
    %65 = vector.load %arg8[%c4_38, %c0_39, %c0_40] : memref<9x1x512xf32, #tpu.memory_space<vmem>>, vector<1x1x512xf32>
    %66 = vector.shape_cast %65 : vector<1x1x512xf32> to vector<1x512xf32>
    %67 = vector.broadcast %66 : vector<1x512xf32> to vector<32x512xf32>
    %68 = arith.mulf %64, %67 : vector<32x512xf32>
    %69 = arith.addf %60, %68 : vector<32x512xf32>
    %c511_i32 = arith.constant 511 : i32
    %70 = tpu.dynamic_rotate %19 by %c511_i32 dim 1 : vector<32x512xf32>, i32 -> vector<32x512xf32>
    %c5 = arith.constant 5 : index
    %c0_41 = arith.constant 0 : index
    %c0_42 = arith.constant 0 : index
    %71 = vector.load %arg6[%c5, %c0_41, %c0_42] : memref<9x32x1xf32, #tpu.memory_space<vmem>>, vector<1x32x1xf32>
    %72 = vector.shape_cast %71 : vector<1x32x1xf32> to vector<32x1xf32>
    %73 = vector.broadcast %72 : vector<32x1xf32> to vector<32x512xf32>
    %74 = arith.mulf %70, %73 : vector<32x512xf32>
    %c5_43 = arith.constant 5 : index
    %c0_44 = arith.constant 0 : index
    %c0_45 = arith.constant 0 : index
    %75 = vector.load %arg8[%c5_43, %c0_44, %c0_45] : memref<9x1x512xf32, #tpu.memory_space<vmem>>, vector<1x1x512xf32>
    %76 = vector.shape_cast %75 : vector<1x1x512xf32> to vector<1x512xf32>
    %77 = vector.broadcast %76 : vector<1x512xf32> to vector<32x512xf32>
    %78 = arith.mulf %74, %77 : vector<32x512xf32>
    %79 = arith.addf %69, %78 : vector<32x512xf32>
    %c497_i32 = arith.constant 497 : i32
    %80 = tpu.dynamic_rotate %19 by %c497_i32 dim 1 : vector<32x512xf32>, i32 -> vector<32x512xf32>
    %c6 = arith.constant 6 : index
    %c0_46 = arith.constant 0 : index
    %c0_47 = arith.constant 0 : index
    %81 = vector.load %arg6[%c6, %c0_46, %c0_47] : memref<9x32x1xf32, #tpu.memory_space<vmem>>, vector<1x32x1xf32>
    %82 = vector.shape_cast %81 : vector<1x32x1xf32> to vector<32x1xf32>
    %83 = vector.broadcast %82 : vector<32x1xf32> to vector<32x512xf32>
    %84 = arith.mulf %80, %83 : vector<32x512xf32>
    %c6_48 = arith.constant 6 : index
    %c0_49 = arith.constant 0 : index
    %c0_50 = arith.constant 0 : index
    %85 = vector.load %arg8[%c6_48, %c0_49, %c0_50] : memref<9x1x512xf32, #tpu.memory_space<vmem>>, vector<1x1x512xf32>
    %86 = vector.shape_cast %85 : vector<1x1x512xf32> to vector<1x512xf32>
    %87 = vector.broadcast %86 : vector<1x512xf32> to vector<32x512xf32>
    %88 = arith.mulf %84, %87 : vector<32x512xf32>
    %89 = arith.addf %79, %88 : vector<32x512xf32>
    %c496_i32 = arith.constant 496 : i32
    %90 = tpu.dynamic_rotate %19 by %c496_i32 dim 1 : vector<32x512xf32>, i32 -> vector<32x512xf32>
    %c7 = arith.constant 7 : index
    %c0_51 = arith.constant 0 : index
    %c0_52 = arith.constant 0 : index
    %91 = vector.load %arg6[%c7, %c0_51, %c0_52] : memref<9x32x1xf32, #tpu.memory_space<vmem>>, vector<1x32x1xf32>
    %92 = vector.shape_cast %91 : vector<1x32x1xf32> to vector<32x1xf32>
    %93 = vector.broadcast %92 : vector<32x1xf32> to vector<32x512xf32>
    %94 = arith.mulf %90, %93 : vector<32x512xf32>
    %c7_53 = arith.constant 7 : index
    %c0_54 = arith.constant 0 : index
    %c0_55 = arith.constant 0 : index
    %95 = vector.load %arg8[%c7_53, %c0_54, %c0_55] : memref<9x1x512xf32, #tpu.memory_space<vmem>>, vector<1x1x512xf32>
    %96 = vector.shape_cast %95 : vector<1x1x512xf32> to vector<1x512xf32>
    %97 = vector.broadcast %96 : vector<1x512xf32> to vector<32x512xf32>
    %98 = arith.mulf %94, %97 : vector<32x512xf32>
    %99 = arith.addf %89, %98 : vector<32x512xf32>
    %c495_i32 = arith.constant 495 : i32
    %100 = tpu.dynamic_rotate %19 by %c495_i32 dim 1 : vector<32x512xf32>, i32 -> vector<32x512xf32>
    %c8 = arith.constant 8 : index
    %c0_56 = arith.constant 0 : index
    %c0_57 = arith.constant 0 : index
    %101 = vector.load %arg6[%c8, %c0_56, %c0_57] : memref<9x32x1xf32, #tpu.memory_space<vmem>>, vector<1x32x1xf32>
    %102 = vector.shape_cast %101 : vector<1x32x1xf32> to vector<32x1xf32>
    %103 = vector.broadcast %102 : vector<32x1xf32> to vector<32x512xf32>
    %104 = arith.mulf %100, %103 : vector<32x512xf32>
    %c8_58 = arith.constant 8 : index
    %c0_59 = arith.constant 0 : index
    %c0_60 = arith.constant 0 : index
    %105 = vector.load %arg8[%c8_58, %c0_59, %c0_60] : memref<9x1x512xf32, #tpu.memory_space<vmem>>, vector<1x1x512xf32>
    %106 = vector.shape_cast %105 : vector<1x1x512xf32> to vector<1x512xf32>
    %107 = vector.broadcast %106 : vector<1x512xf32> to vector<32x512xf32>
    %108 = arith.mulf %104, %107 : vector<32x512xf32>
    %109 = arith.addf %99, %108 : vector<32x512xf32>
    %c0_61 = arith.constant 0 : index
    %c0_62 = arith.constant 0 : index
    %110 = vector.load %arg7[%c0_61, %c0_62] : memref<32x1xf32, #tpu.memory_space<vmem>>, vector<32x1xf32>
    %111 = vector.broadcast %110 : vector<32x1xf32> to vector<32x512xf32>
    %112 = arith.addf %109, %111 : vector<32x512xf32>
    %cst_63 = arith.constant 0.000000e+00 : f32
    %cst_64 = arith.constant 6.000000e+00 : f32
    %113 = vector.broadcast %cst_63 : f32 to vector<32x512xf32>
    %114 = arith.maximumf %113, %112 : vector<32x512xf32>
    %115 = vector.broadcast %cst_64 : f32 to vector<32x512xf32>
    %116 = arith.minimumf %115, %114 : vector<32x512xf32>
    %117 = arith.truncf %116 : vector<32x512xf32> to vector<32x512xbf16>
    %c0_65 = arith.constant 0 : index
    %c0_66 = arith.constant 0 : index
    %118 = vector.load %arg11[%c0_65, %c0_66] : memref<512x128xbf16, #tpu.memory_space<vmem>>, vector<512x128xbf16>
    %cst_67 = arith.constant dense<0.000000e+00> : vector<32x128xf32>
    %119 = tpu.matmul %117, %118, %cst_67 {dimension_numbers = #tpu.dot_dimension_numbers<[1], [0], [0], [1], [0, 0, 1, 1], [], []>} : vector<32x512xbf16>, vector<512x128xbf16>, vector<32x128xf32> -> vector<32x128xf32>
    %c0_68 = arith.constant 0 : index
    %c0_69 = arith.constant 0 : index
    %120 = vector.load %arg9[%c0_68, %c0_69] : memref<24x32xbf16, #tpu.memory_space<vmem>>, vector<24x32xbf16>
    %121 = arith.truncf %119 : vector<32x128xf32> to vector<32x128xbf16>
    %cst_70 = arith.constant dense<0.000000e+00> : vector<24x128xf32>
    %122 = tpu.matmul %120, %121, %cst_70 {dimension_numbers = #tpu.dot_dimension_numbers<[1], [0], [0], [1], [0, 0, 1, 1], [], []>} : vector<24x32xbf16>, vector<32x128xbf16>, vector<24x128xf32> -> vector<24x128xf32>
    %c0_71 = arith.constant 0 : index
    %c0_72 = arith.constant 0 : index
    %123 = vector.load %arg10[%c0_71, %c0_72] : memref<24x1xf32, #tpu.memory_space<vmem>>, vector<24x1xf32>
    %124 = vector.broadcast %123 : vector<24x1xf32> to vector<24x128xf32>
    %125 = arith.addf %122, %124 : vector<24x128xf32>
    %c0_73 = arith.constant 0 : index
    %c0_74 = arith.constant 0 : index
    %126 = vector.load %arg12[%c0_73, %c0_74] : memref<48x24xbf16, #tpu.memory_space<vmem>>, vector<48x24xbf16>
    %127 = arith.truncf %125 : vector<24x128xf32> to vector<24x128xbf16>
    %cst_75 = arith.constant dense<0.000000e+00> : vector<48x128xf32>
    %128 = tpu.matmul %126, %127, %cst_75 {dimension_numbers = #tpu.dot_dimension_numbers<[1], [0], [0], [1], [0, 0, 1, 1], [], []>} : vector<48x24xbf16>, vector<24x128xbf16>, vector<48x128xf32> -> vector<48x128xf32>
    %c0_76 = arith.constant 0 : index
    %c0_77 = arith.constant 0 : index
    %129 = vector.load %arg13[%c0_76, %c0_77] : memref<48x1xf32, #tpu.memory_space<vmem>>, vector<48x1xf32>
    %130 = vector.broadcast %129 : vector<48x1xf32> to vector<48x128xf32>
    %131 = arith.addf %128, %130 : vector<48x128xf32>
    %cst_78 = arith.constant 0.000000e+00 : f32
    %cst_79 = arith.constant 6.000000e+00 : f32
    %132 = vector.broadcast %cst_78 : f32 to vector<48x128xf32>
    %133 = arith.maximumf %132, %131 : vector<48x128xf32>
    %134 = vector.broadcast %cst_79 : f32 to vector<48x128xf32>
    %135 = arith.minimumf %134, %133 : vector<48x128xf32>
    %cst_80 = arith.constant 0.000000e+00 : f32
    %136 = vector.broadcast %cst_80 : f32 to vector<48x128xf32>
    %c9_i32 = arith.constant 9 : i32
    %137 = tpu.dynamic_rotate %135 by %c9_i32 dim 1 : vector<48x128xf32>, i32 -> vector<48x128xf32>
    %c0_81 = arith.constant 0 : index
    %c0_82 = arith.constant 0 : index
    %c0_83 = arith.constant 0 : index
    %138 = vector.load %arg14[%c0_81, %c0_82, %c0_83] : memref<9x48x1xf32, #tpu.memory_space<vmem>>, vector<1x48x1xf32>
    %139 = vector.shape_cast %138 : vector<1x48x1xf32> to vector<48x1xf32>
    %140 = vector.broadcast %139 : vector<48x1xf32> to vector<48x128xf32>
    %141 = arith.mulf %137, %140 : vector<48x128xf32>
    %c0_84 = arith.constant 0 : index
    %c0_85 = arith.constant 0 : index
    %c0_86 = arith.constant 0 : index
    %142 = vector.load %arg16[%c0_84, %c0_85, %c0_86] : memref<9x1x128xf32, #tpu.memory_space<vmem>>, vector<1x1x128xf32>
    %143 = vector.shape_cast %142 : vector<1x1x128xf32> to vector<1x128xf32>
    %144 = vector.broadcast %143 : vector<1x128xf32> to vector<48x128xf32>
    %145 = arith.mulf %141, %144 : vector<48x128xf32>
    %146 = arith.addf %136, %145 : vector<48x128xf32>
    %c8_i32 = arith.constant 8 : i32
    %147 = tpu.dynamic_rotate %135 by %c8_i32 dim 1 : vector<48x128xf32>, i32 -> vector<48x128xf32>
    %c1_87 = arith.constant 1 : index
    %c0_88 = arith.constant 0 : index
    %c0_89 = arith.constant 0 : index
    %148 = vector.load %arg14[%c1_87, %c0_88, %c0_89] : memref<9x48x1xf32, #tpu.memory_space<vmem>>, vector<1x48x1xf32>
    %149 = vector.shape_cast %148 : vector<1x48x1xf32> to vector<48x1xf32>
    %150 = vector.broadcast %149 : vector<48x1xf32> to vector<48x128xf32>
    %151 = arith.mulf %147, %150 : vector<48x128xf32>
    %c1_90 = arith.constant 1 : index
    %c0_91 = arith.constant 0 : index
    %c0_92 = arith.constant 0 : index
    %152 = vector.load %arg16[%c1_90, %c0_91, %c0_92] : memref<9x1x128xf32, #tpu.memory_space<vmem>>, vector<1x1x128xf32>
    %153 = vector.shape_cast %152 : vector<1x1x128xf32> to vector<1x128xf32>
    %154 = vector.broadcast %153 : vector<1x128xf32> to vector<48x128xf32>
    %155 = arith.mulf %151, %154 : vector<48x128xf32>
    %156 = arith.addf %146, %155 : vector<48x128xf32>
    %c7_i32 = arith.constant 7 : i32
    %157 = tpu.dynamic_rotate %135 by %c7_i32 dim 1 : vector<48x128xf32>, i32 -> vector<48x128xf32>
    %c2_93 = arith.constant 2 : index
    %c0_94 = arith.constant 0 : index
    %c0_95 = arith.constant 0 : index
    %158 = vector.load %arg14[%c2_93, %c0_94, %c0_95] : memref<9x48x1xf32, #tpu.memory_space<vmem>>, vector<1x48x1xf32>
    %159 = vector.shape_cast %158 : vector<1x48x1xf32> to vector<48x1xf32>
    %160 = vector.broadcast %159 : vector<48x1xf32> to vector<48x128xf32>
    %161 = arith.mulf %157, %160 : vector<48x128xf32>
    %c2_96 = arith.constant 2 : index
    %c0_97 = arith.constant 0 : index
    %c0_98 = arith.constant 0 : index
    %162 = vector.load %arg16[%c2_96, %c0_97, %c0_98] : memref<9x1x128xf32, #tpu.memory_space<vmem>>, vector<1x1x128xf32>
    %163 = vector.shape_cast %162 : vector<1x1x128xf32> to vector<1x128xf32>
    %164 = vector.broadcast %163 : vector<1x128xf32> to vector<48x128xf32>
    %165 = arith.mulf %161, %164 : vector<48x128xf32>
    %166 = arith.addf %156, %165 : vector<48x128xf32>
    %c1_i32_99 = arith.constant 1 : i32
    %167 = tpu.dynamic_rotate %135 by %c1_i32_99 dim 1 : vector<48x128xf32>, i32 -> vector<48x128xf32>
    %c3_100 = arith.constant 3 : index
    %c0_101 = arith.constant 0 : index
    %c0_102 = arith.constant 0 : index
    %168 = vector.load %arg14[%c3_100, %c0_101, %c0_102] : memref<9x48x1xf32, #tpu.memory_space<vmem>>, vector<1x48x1xf32>
    %169 = vector.shape_cast %168 : vector<1x48x1xf32> to vector<48x1xf32>
    %170 = vector.broadcast %169 : vector<48x1xf32> to vector<48x128xf32>
    %171 = arith.mulf %167, %170 : vector<48x128xf32>
    %c3_103 = arith.constant 3 : index
    %c0_104 = arith.constant 0 : index
    %c0_105 = arith.constant 0 : index
    %172 = vector.load %arg16[%c3_103, %c0_104, %c0_105] : memref<9x1x128xf32, #tpu.memory_space<vmem>>, vector<1x1x128xf32>
    %173 = vector.shape_cast %172 : vector<1x1x128xf32> to vector<1x128xf32>
    %174 = vector.broadcast %173 : vector<1x128xf32> to vector<48x128xf32>
    %175 = arith.mulf %171, %174 : vector<48x128xf32>
    %176 = arith.addf %166, %175 : vector<48x128xf32>
    %c4_106 = arith.constant 4 : index
    %c0_107 = arith.constant 0 : index
    %c0_108 = arith.constant 0 : index
    %177 = vector.load %arg14[%c4_106, %c0_107, %c0_108] : memref<9x48x1xf32, #tpu.memory_space<vmem>>, vector<1x48x1xf32>
    %178 = vector.shape_cast %177 : vector<1x48x1xf32> to vector<48x1xf32>
    %179 = vector.broadcast %178 : vector<48x1xf32> to vector<48x128xf32>
    %180 = arith.mulf %135, %179 : vector<48x128xf32>
    %c4_109 = arith.constant 4 : index
    %c0_110 = arith.constant 0 : index
    %c0_111 = arith.constant 0 : index
    %181 = vector.load %arg16[%c4_109, %c0_110, %c0_111] : memref<9x1x128xf32, #tpu.memory_space<vmem>>, vector<1x1x128xf32>
    %182 = vector.shape_cast %181 : vector<1x1x128xf32> to vector<1x128xf32>
    %183 = vector.broadcast %182 : vector<1x128xf32> to vector<48x128xf32>
    %184 = arith.mulf %180, %183 : vector<48x128xf32>
    %185 = arith.addf %176, %184 : vector<48x128xf32>
    %c127_i32 = arith.constant 127 : i32
    %186 = tpu.dynamic_rotate %135 by %c127_i32 dim 1 : vector<48x128xf32>, i32 -> vector<48x128xf32>
    %c5_112 = arith.constant 5 : index
    %c0_113 = arith.constant 0 : index
    %c0_114 = arith.constant 0 : index
    %187 = vector.load %arg14[%c5_112, %c0_113, %c0_114] : memref<9x48x1xf32, #tpu.memory_space<vmem>>, vector<1x48x1xf32>
    %188 = vector.shape_cast %187 : vector<1x48x1xf32> to vector<48x1xf32>
    %189 = vector.broadcast %188 : vector<48x1xf32> to vector<48x128xf32>
    %190 = arith.mulf %186, %189 : vector<48x128xf32>
    %c5_115 = arith.constant 5 : index
    %c0_116 = arith.constant 0 : index
    %c0_117 = arith.constant 0 : index
    %191 = vector.load %arg16[%c5_115, %c0_116, %c0_117] : memref<9x1x128xf32, #tpu.memory_space<vmem>>, vector<1x1x128xf32>
    %192 = vector.shape_cast %191 : vector<1x1x128xf32> to vector<1x128xf32>
    %193 = vector.broadcast %192 : vector<1x128xf32> to vector<48x128xf32>
    %194 = arith.mulf %190, %193 : vector<48x128xf32>
    %195 = arith.addf %185, %194 : vector<48x128xf32>
    %c121_i32 = arith.constant 121 : i32
    %196 = tpu.dynamic_rotate %135 by %c121_i32 dim 1 : vector<48x128xf32>, i32 -> vector<48x128xf32>
    %c6_118 = arith.constant 6 : index
    %c0_119 = arith.constant 0 : index
    %c0_120 = arith.constant 0 : index
    %197 = vector.load %arg14[%c6_118, %c0_119, %c0_120] : memref<9x48x1xf32, #tpu.memory_space<vmem>>, vector<1x48x1xf32>
    %198 = vector.shape_cast %197 : vector<1x48x1xf32> to vector<48x1xf32>
    %199 = vector.broadcast %198 : vector<48x1xf32> to vector<48x128xf32>
    %200 = arith.mulf %196, %199 : vector<48x128xf32>
    %c6_121 = arith.constant 6 : index
    %c0_122 = arith.constant 0 : index
    %c0_123 = arith.constant 0 : index
    %201 = vector.load %arg16[%c6_121, %c0_122, %c0_123] : memref<9x1x128xf32, #tpu.memory_space<vmem>>, vector<1x1x128xf32>
    %202 = vector.shape_cast %201 : vector<1x1x128xf32> to vector<1x128xf32>
    %203 = vector.broadcast %202 : vector<1x128xf32> to vector<48x128xf32>
    %204 = arith.mulf %200, %203 : vector<48x128xf32>
    %205 = arith.addf %195, %204 : vector<48x128xf32>
    %c120_i32 = arith.constant 120 : i32
    %206 = tpu.dynamic_rotate %135 by %c120_i32 dim 1 : vector<48x128xf32>, i32 -> vector<48x128xf32>
    %c7_124 = arith.constant 7 : index
    %c0_125 = arith.constant 0 : index
    %c0_126 = arith.constant 0 : index
    %207 = vector.load %arg14[%c7_124, %c0_125, %c0_126] : memref<9x48x1xf32, #tpu.memory_space<vmem>>, vector<1x48x1xf32>
    %208 = vector.shape_cast %207 : vector<1x48x1xf32> to vector<48x1xf32>
    %209 = vector.broadcast %208 : vector<48x1xf32> to vector<48x128xf32>
    %210 = arith.mulf %206, %209 : vector<48x128xf32>
    %c7_127 = arith.constant 7 : index
    %c0_128 = arith.constant 0 : index
    %c0_129 = arith.constant 0 : index
    %211 = vector.load %arg16[%c7_127, %c0_128, %c0_129] : memref<9x1x128xf32, #tpu.memory_space<vmem>>, vector<1x1x128xf32>
    %212 = vector.shape_cast %211 : vector<1x1x128xf32> to vector<1x128xf32>
    %213 = vector.broadcast %212 : vector<1x128xf32> to vector<48x128xf32>
    %214 = arith.mulf %210, %213 : vector<48x128xf32>
    %215 = arith.addf %205, %214 : vector<48x128xf32>
    %c119_i32 = arith.constant 119 : i32
    %216 = tpu.dynamic_rotate %135 by %c119_i32 dim 1 : vector<48x128xf32>, i32 -> vector<48x128xf32>
    %c8_130 = arith.constant 8 : index
    %c0_131 = arith.constant 0 : index
    %c0_132 = arith.constant 0 : index
    %217 = vector.load %arg14[%c8_130, %c0_131, %c0_132] : memref<9x48x1xf32, #tpu.memory_space<vmem>>, vector<1x48x1xf32>
    %218 = vector.shape_cast %217 : vector<1x48x1xf32> to vector<48x1xf32>
    %219 = vector.broadcast %218 : vector<48x1xf32> to vector<48x128xf32>
    %220 = arith.mulf %216, %219 : vector<48x128xf32>
    %c8_133 = arith.constant 8 : index
    %c0_134 = arith.constant 0 : index
    %c0_135 = arith.constant 0 : index
    %221 = vector.load %arg16[%c8_133, %c0_134, %c0_135] : memref<9x1x128xf32, #tpu.memory_space<vmem>>, vector<1x1x128xf32>
    %222 = vector.shape_cast %221 : vector<1x1x128xf32> to vector<1x128xf32>
    %223 = vector.broadcast %222 : vector<1x128xf32> to vector<48x128xf32>
    %224 = arith.mulf %220, %223 : vector<48x128xf32>
    %225 = arith.addf %215, %224 : vector<48x128xf32>
    %c0_136 = arith.constant 0 : index
    %c0_137 = arith.constant 0 : index
    %226 = vector.load %arg15[%c0_136, %c0_137] : memref<48x1xf32, #tpu.memory_space<vmem>>, vector<48x1xf32>
    %227 = vector.broadcast %226 : vector<48x1xf32> to vector<48x128xf32>
    %228 = arith.addf %225, %227 : vector<48x128xf32>
    %cst_138 = arith.constant 0.000000e+00 : f32
    %cst_139 = arith.constant 6.000000e+00 : f32
    %229 = vector.broadcast %cst_138 : f32 to vector<48x128xf32>
    %230 = arith.maximumf %229, %228 : vector<48x128xf32>
    %231 = vector.broadcast %cst_139 : f32 to vector<48x128xf32>
    %232 = arith.minimumf %231, %230 : vector<48x128xf32>
    %c0_140 = arith.constant 0 : index
    %c0_141 = arith.constant 0 : index
    %233 = vector.load %arg17[%c0_140, %c0_141] : memref<24x48xbf16, #tpu.memory_space<vmem>>, vector<24x48xbf16>
    %234 = arith.truncf %232 : vector<48x128xf32> to vector<48x128xbf16>
    %cst_142 = arith.constant dense<0.000000e+00> : vector<24x128xf32>
    %235 = tpu.matmul %233, %234, %cst_142 {dimension_numbers = #tpu.dot_dimension_numbers<[1], [0], [0], [1], [0, 0, 1, 1], [], []>} : vector<24x48xbf16>, vector<48x128xbf16>, vector<24x128xf32> -> vector<24x128xf32>
    %c0_143 = arith.constant 0 : index
    %c0_144 = arith.constant 0 : index
    %236 = vector.load %arg18[%c0_143, %c0_144] : memref<24x1xf32, #tpu.memory_space<vmem>>, vector<24x1xf32>
    %237 = vector.broadcast %236 : vector<24x1xf32> to vector<24x128xf32>
    %238 = arith.addf %235, %237 : vector<24x128xf32>
    %239 = arith.addf %238, %125 : vector<24x128xf32>
    %c0_145 = arith.constant 0 : index
    %c0_146 = arith.constant 0 : index
    %240 = vector.load %arg19[%c0_145, %c0_146] : memref<64x24xbf16, #tpu.memory_space<vmem>>, vector<64x24xbf16>
    %241 = arith.truncf %239 : vector<24x128xf32> to vector<24x128xbf16>
    %cst_147 = arith.constant dense<0.000000e+00> : vector<64x128xf32>
    %242 = tpu.matmul %240, %241, %cst_147 {dimension_numbers = #tpu.dot_dimension_numbers<[1], [0], [0], [1], [0, 0, 1, 1], [], []>} : vector<64x24xbf16>, vector<24x128xbf16>, vector<64x128xf32> -> vector<64x128xf32>
    %c0_148 = arith.constant 0 : index
    %c0_149 = arith.constant 0 : index
    %243 = vector.load %arg20[%c0_148, %c0_149] : memref<64x1xf32, #tpu.memory_space<vmem>>, vector<64x1xf32>
    %244 = vector.broadcast %243 : vector<64x1xf32> to vector<64x128xf32>
    %245 = arith.addf %242, %244 : vector<64x128xf32>
    %cst_150 = arith.constant 0.000000e+00 : f32
    %cst_151 = arith.constant 6.000000e+00 : f32
    %246 = vector.broadcast %cst_150 : f32 to vector<64x128xf32>
    %247 = arith.maximumf %246, %245 : vector<64x128xf32>
    %248 = vector.broadcast %cst_151 : f32 to vector<64x128xf32>
    %249 = arith.minimumf %248, %247 : vector<64x128xf32>
    %250 = arith.truncf %249 : vector<64x128xf32> to vector<64x128xbf16>
    %c0_152 = arith.constant 0 : index
    %c0_153 = arith.constant 0 : index
    %251 = vector.load %arg21[%c0_152, %c0_153] : memref<128x2xbf16, #tpu.memory_space<vmem>>, vector<128x2xbf16>
    %cst_154 = arith.constant dense<0.000000e+00> : vector<64x2xf32>
    %252 = tpu.matmul %250, %251, %cst_154 {dimension_numbers = #tpu.dot_dimension_numbers<[1], [0], [0], [1], [0, 0, 1, 1], [], []>} : vector<64x128xbf16>, vector<128x2xbf16>, vector<64x2xf32> -> vector<64x2xf32>
    %c0_155 = arith.constant 0 : index
    %c0_156 = arith.constant 0 : index
    %253 = vector.load %arg22[%c0_155, %c0_156] : memref<10x64xbf16, #tpu.memory_space<vmem>>, vector<10x64xbf16>
    %254 = arith.truncf %252 : vector<64x2xf32> to vector<64x2xbf16>
    %cst_157 = arith.constant dense<0.000000e+00> : vector<10x2xf32>
    %255 = tpu.matmul %253, %254, %cst_157 {dimension_numbers = #tpu.dot_dimension_numbers<[1], [0], [0], [1], [0, 0, 1, 1], [], []>} : vector<10x64xbf16>, vector<64x2xbf16>, vector<10x2xf32> -> vector<10x2xf32>
    %c0_158 = arith.constant 0 : index
    %c0_159 = arith.constant 0 : index
    %256 = vector.load %arg23[%c0_158, %c0_159] : memref<10x1xf32, #tpu.memory_space<vmem>>, vector<10x1xf32>
    %257 = vector.broadcast %256 : vector<10x1xf32> to vector<10x2xf32>
    %258 = arith.addf %255, %257 : vector<10x2xf32>
    %c0_160 = arith.constant 0 : index
    %c0_161 = arith.constant 0 : index
    %259 = vector.load %arg24[%c0_160, %c0_161] : memref<10x2xf32, #tpu.memory_space<vmem>>, vector<10x2xf32>
    tpu.vector_store %arg24[%c0_160, %c0_161], %258 {strides = array<i32>} : memref<10x2xf32, #tpu.memory_space<vmem>>, vector<10x2xf32>,
    return
  }
  func.func @transform_0(%arg0: i32) -> (i32, i32) {
    %c0_i32 = arith.constant 0 : i32
    %c0_i32_0 = arith.constant 0 : i32
    %c0_i32_1 = arith.constant 0 : i32
    return %c0_i32, %c0_i32_0 : i32, i32
  }
  func.func @transform_1(%arg0: i32) -> (i32, i32) {
    %c0_i32 = arith.constant 0 : i32
    %c0_i32_0 = arith.constant 0 : i32
    %c0_i32_1 = arith.constant 0 : i32
    return %c0_i32, %c0_i32_0 : i32, i32
  }
  func.func @transform_2(%arg0: i32) -> (i32, i32) {
    %c0_i32 = arith.constant 0 : i32
    %c0_i32_0 = arith.constant 0 : i32
    %c0_i32_1 = arith.constant 0 : i32
    return %c0_i32, %c0_i32_0 : i32, i32
  }
  func.func @transform_3(%arg0: i32) -> (i32, i32) {
    %c0_i32 = arith.constant 0 : i32
    %c0_i32_0 = arith.constant 0 : i32
    %c0_i32_1 = arith.constant 0 : i32
    return %c0_i32, %c0_i32_0 : i32, i32
  }
  func.func @transform_4(%arg0: i32) -> (i32, i32) {
    %c0_i32 = arith.constant 0 : i32
    %c0_i32_0 = arith.constant 0 : i32
    %c0_i32_1 = arith.constant 0 : i32
    return %c0_i32, %c0_i32_0 : i32, i32
  }
  func.func @transform_5(%arg0: i32) -> (i32, i32, i32) {
    %c0_i32 = arith.constant 0 : i32
    %c0_i32_0 = arith.constant 0 : i32
    %c0_i32_1 = arith.constant 0 : i32
    %c0_i32_2 = arith.constant 0 : i32
    return %c0_i32, %c0_i32_0, %c0_i32_1 : i32, i32, i32
  }
  func.func @transform_6(%arg0: i32) -> (i32, i32) {
    %c0_i32 = arith.constant 0 : i32
    %c0_i32_0 = arith.constant 0 : i32
    %c0_i32_1 = arith.constant 0 : i32
    return %c0_i32, %c0_i32_0 : i32, i32
  }
  func.func @transform_7(%arg0: i32) -> (i32, i32, i32) {
    %c0_i32 = arith.constant 0 : i32
    %c0_i32_0 = arith.constant 0 : i32
    %c0_i32_1 = arith.constant 0 : i32
    %c0_i32_2 = arith.constant 0 : i32
    return %c0_i32, %c0_i32_0, %c0_i32_1 : i32, i32, i32
  }
  func.func @transform_8(%arg0: i32) -> (i32, i32) {
    %c0_i32 = arith.constant 0 : i32
    %c0_i32_0 = arith.constant 0 : i32
    %c0_i32_1 = arith.constant 0 : i32
    return %c0_i32, %c0_i32_0 : i32, i32
  }
  func.func @transform_9(%arg0: i32) -> (i32, i32) {
    %c0_i32 = arith.constant 0 : i32
    %c0_i32_0 = arith.constant 0 : i32
    %c0_i32_1 = arith.constant 0 : i32
    return %c0_i32, %c0_i32_0 : i32, i32
  }
  func.func @transform_10(%arg0: i32) -> (i32, i32) {
    %c0_i32 = arith.constant 0 : i32
    %c0_i32_0 = arith.constant 0 : i32
    %c0_i32_1 = arith.constant 0 : i32
    return %c0_i32, %c0_i32_0 : i32, i32
  }
  func.func @transform_11(%arg0: i32) -> (i32, i32) {
    %c0_i32 = arith.constant 0 : i32
    %c0_i32_0 = arith.constant 0 : i32
    %c0_i32_1 = arith.constant 0 : i32
    return %c0_i32, %c0_i32_0 : i32, i32
  }
  func.func @transform_12(%arg0: i32) -> (i32, i32) {
    %c0_i32 = arith.constant 0 : i32
    %c0_i32_0 = arith.constant 0 : i32
    %c0_i32_1 = arith.constant 0 : i32
    return %c0_i32, %c0_i32_0 : i32, i32
  }
  func.func @transform_13(%arg0: i32) -> (i32, i32, i32) {
    %c0_i32 = arith.constant 0 : i32
    %c0_i32_0 = arith.constant 0 : i32
    %c0_i32_1 = arith.constant 0 : i32
    %c0_i32_2 = arith.constant 0 : i32
    return %c0_i32, %c0_i32_0, %c0_i32_1 : i32, i32, i32
  }
  func.func @transform_14(%arg0: i32) -> (i32, i32) {
    %c0_i32 = arith.constant 0 : i32
    %c0_i32_0 = arith.constant 0 : i32
    %c0_i32_1 = arith.constant 0 : i32
    return %c0_i32, %c0_i32_0 : i32, i32
  }
  func.func @transform_15(%arg0: i32) -> (i32, i32, i32) {
    %c0_i32 = arith.constant 0 : i32
    %c0_i32_0 = arith.constant 0 : i32
    %c0_i32_1 = arith.constant 0 : i32
    %c0_i32_2 = arith.constant 0 : i32
    return %c0_i32, %c0_i32_0, %c0_i32_1 : i32, i32, i32
  }
  func.func @transform_16(%arg0: i32) -> (i32, i32) {
    %c0_i32 = arith.constant 0 : i32
    %c0_i32_0 = arith.constant 0 : i32
    %c0_i32_1 = arith.constant 0 : i32
    return %c0_i32, %c0_i32_0 : i32, i32
  }
  func.func @transform_17(%arg0: i32) -> (i32, i32) {
    %c0_i32 = arith.constant 0 : i32
    %c0_i32_0 = arith.constant 0 : i32
    %c0_i32_1 = arith.constant 0 : i32
    return %c0_i32, %c0_i32_0 : i32, i32
  }
  func.func @transform_18(%arg0: i32) -> (i32, i32) {
    %c0_i32 = arith.constant 0 : i32
    %c0_i32_0 = arith.constant 0 : i32
    %c0_i32_1 = arith.constant 0 : i32
    return %c0_i32, %c0_i32_0 : i32, i32
  }
  func.func @transform_19(%arg0: i32) -> (i32, i32) {
    %c0_i32 = arith.constant 0 : i32
    %c0_i32_0 = arith.constant 0 : i32
    %c0_i32_1 = arith.constant 0 : i32
    return %c0_i32, %c0_i32_0 : i32, i32
  }
  func.func @transform_20(%arg0: i32) -> (i32, i32) {
    %c0_i32 = arith.constant 0 : i32
    %c0_i32_0 = arith.constant 0 : i32
    %c0_i32_1 = arith.constant 0 : i32
    return %c0_i32, %c0_i32_0 : i32, i32
  }
  func.func @transform_21(%arg0: i32) -> (i32, i32) {
    %c0_i32 = arith.constant 0 : i32
    %c0_i32_0 = arith.constant 0 : i32
    %c0_i32_1 = arith.constant 0 : i32
    return %c0_i32, %c0_i32_0 : i32, i32
  }
  func.func @transform_22(%arg0: i32) -> (i32, i32) {
    %c0_i32 = arith.constant 0 : i32
    %c0_i32_0 = arith.constant 0 : i32
    %c0_i32_1 = arith.constant 0 : i32
    return %c0_i32, %c0_i32_0 : i32, i32
  }
  func.func @transform_23(%arg0: i32) -> (i32, i32) {
    %c0_i32 = arith.constant 0 : i32
    %c0_i32_0 = arith.constant 0 : i32
    %c0_i32_1 = arith.constant 0 : i32
    return %c0_i32, %c0_i32_0 : i32, i32
  }
}

</mosaic_0001>

<llo_original>
// kernel: tpu_custom_call.1
$region0: #{tpu_custom_call.1}
  #allocation0 [shape = 'u32[]', space=smem, size = 0x4, offset = 0x4, fixed_abs, tag = 'smem constant byte address 0x4 - core index']
  #allocation1 [shape = 'u32[144,128]{1,0:T(1,128)}', space=vmem, size = 0x12000, scoped, tag = 'internal scratch']
  %s0 = inlined_call_operand.vmem [shape: bf16[36,512], index: 0, kind: input, shape index: {}]
  %s1 = inlined_call_operand.vmem [shape: bf16[16,36], index: 1, kind: input, shape index: {}]
  %s2 = inlined_call_operand.vmem [shape: f32[16,1], index: 2, kind: input, shape index: {}]
  %s3 = inlined_call_operand.vmem [shape: bf16[32,16], index: 3, kind: input, shape index: {}]
  %s4 = inlined_call_operand.vmem [shape: f32[32,1], index: 4, kind: input, shape index: {}]
  %s5 = inlined_call_operand.vmem [shape: f32[9,32,1], index: 5, kind: input, shape index: {}]
  %s6 = inlined_call_operand.vmem [shape: f32[32,1], index: 6, kind: input, shape index: {}]
  %s7 = inlined_call_operand.vmem [shape: f32[9,1,512], index: 7, kind: input, shape index: {}]
  %s8 = inlined_call_operand.vmem [shape: bf16[24,32], index: 8, kind: input, shape index: {}]
  %s9 = inlined_call_operand.vmem [shape: f32[24,1], index: 9, kind: input, shape index: {}]
  %s10 = inlined_call_operand.vmem [shape: bf16[512,128], index: 10, kind: input, shape index: {}]
  %s11 = inlined_call_operand.vmem [shape: bf16[48,24], index: 11, kind: input, shape index: {}]
  %s12 = inlined_call_operand.vmem [shape: f32[48,1], index: 12, kind: input, shape index: {}]
  %s13 = inlined_call_operand.vmem [shape: f32[9,48,1], index: 13, kind: input, shape index: {}]
  %s14 = inlined_call_operand.vmem [shape: f32[48,1], index: 14, kind: input, shape index: {}]
  %s15 = inlined_call_operand.vmem [shape: f32[9,1,128], index: 15, kind: input, shape index: {}]
  %s16 = inlined_call_operand.vmem [shape: bf16[24,48], index: 16, kind: input, shape index: {}]
  %s17 = inlined_call_operand.vmem [shape: f32[24,1], index: 17, kind: input, shape index: {}]
  %s18 = inlined_call_operand.vmem [shape: bf16[64,24], index: 18, kind: input, shape index: {}]
  %s19 = inlined_call_operand.vmem [shape: f32[64,1], index: 19, kind: input, shape index: {}]
  %s20 = inlined_call_operand.vmem [shape: bf16[128,2], index: 20, kind: input, shape index: {}]
  %s21 = inlined_call_operand.vmem [shape: bf16[10,64], index: 21, kind: input, shape index: {}]
  %s22 = inlined_call_operand.vmem [shape: f32[10,1], index: 22, kind: input, shape index: {}]
  %s23 = inlined_call_operand.vmem [shape: f32[10,2], index: 23, kind: output, shape index: {}]
  %s24 = sld [smem:[#allocation0]]
  $region102: #{tpu_custom_call.1} parent=0
    _
  %s26 = ssub.s32 1, %s24
  %s27 = scalar_select 0, %s26, %s24
  // Predicated region
  $region2: #{tpu_custom_call.1} parent=0 // pred_check
    _
  $region3: #{tpu_custom_call.1} parent=0 // pred_check_branch
    %29 = sbr.rel (0) target = $region5
  $region4: #{tpu_custom_call.1} parent=0 // pred_region
    _
  $region5: #{tpu_custom_call.1} parent=0 // pred_fallthru
    _
  // Predicated region
  $region6: #{tpu_custom_call.1} parent=0 // pred_check
    _
  $region7: #{tpu_custom_call.1} parent=0 // pred_check_branch
    %31 = sbr.rel (0) target = $region9
  $region8: #{tpu_custom_call.1} parent=0 // pred_region
    _
  $region9: #{tpu_custom_call.1} parent=0 // pred_fallthru
    _
  // Predicated region
  $region10: #{tpu_custom_call.1} parent=0 // pred_check
    _
  $region11: #{tpu_custom_call.1} parent=0 // pred_check_branch
    %33 = sbr.rel (0) target = $region13
  $region12: #{tpu_custom_call.1} parent=0 // pred_region
    _
  $region13: #{tpu_custom_call.1} parent=0 // pred_fallthru
    _
  // Predicated region
  $region14: #{tpu_custom_call.1} parent=0 // pred_check
    _
  $region15: #{tpu_custom_call.1} parent=0 // pred_check_branch
    %35 = sbr.rel (0) target = $region17
  $region16: #{tpu_custom_call.1} parent=0 // pred_region
    _
  $region17: #{tpu_custom_call.1} parent=0 // pred_fallthru
    _
  // Predicated region
  $region18: #{tpu_custom_call.1} parent=0 // pred_check
    _
  $region19: #{tpu_custom_call.1} parent=0 // pred_check_branch
    %37 = sbr.rel (0) target = $region21
  $region20: #{tpu_custom_call.1} parent=0 // pred_region
    _
  $region21: #{tpu_custom_call.1} parent=0 // pred_fallthru
    _
  // Predicated region
  $region22: #{tpu_custom_call.1} parent=0 // pred_check
    _
  $region23: #{tpu_custom_call.1} parent=0 // pred_check_branch
    %39 = sbr.rel (0) target = $region25
  $region24: #{tpu_custom_call.1} parent=0 // pred_region
    _
  $region25: #{tpu_custom_call.1} parent=0 // pred_fallthru
    _
  // Predicated region
  $region26: #{tpu_custom_call.1} parent=0 // pred_check
    _
  $region27: #{tpu_custom_call.1} parent=0 // pred_check_branch
    %41 = sbr.rel (0) target = $region29
  $region28: #{tpu_custom_call.1} parent=0 // pred_region
    _
  $region29: #{tpu_custom_call.1} parent=0 // pred_fallthru
    _
  // Predicated region
  $region30: #{tpu_custom_call.1} parent=0 // pred_check
    _
  $region31: #{tpu_custom_call.1} parent=0 // pred_check_branch
    %43 = sbr.rel (0) target = $region33
  $region32: #{tpu_custom_call.1} parent=0 // pred_region
    _
  $region33: #{tpu_custom_call.1} parent=0 // pred_fallthru
    _
  // Predicated region
  $region34: #{tpu_custom_call.1} parent=0 // pred_check
    _
  $region35: #{tpu_custom_call.1} parent=0 // pred_check_branch
    %45 = sbr.rel (0) target = $region37
  $region36: #{tpu_custom_call.1} parent=0 // pred_region
    _
  $region37: #{tpu_custom_call.1} parent=0 // pred_fallthru
    _
  // Predicated region
  $region38: #{tpu_custom_call.1} parent=0 // pred_check
    _
  $region39: #{tpu_custom_call.1} parent=0 // pred_check_branch
    %47 = sbr.rel (0) target = $region41
  $region40: #{tpu_custom_call.1} parent=0 // pred_region
    _
  $region41: #{tpu_custom_call.1} parent=0 // pred_fallthru
    _
  // Predicated region
  $region42: #{tpu_custom_call.1} parent=0 // pred_check
    _
  $region43: #{tpu_custom_call.1} parent=0 // pred_check_branch
    %49 = sbr.rel (0) target = $region45
  $region44: #{tpu_custom_call.1} parent=0 // pred_region
    _
  $region45: #{tpu_custom_call.1} parent=0 // pred_fallthru
    _
  // Predicated region
  $region46: #{tpu_custom_call.1} parent=0 // pred_check
    _
  $region47: #{tpu_custom_call.1} parent=0 // pred_check_branch
    %51 = sbr.rel (0) target = $region49
  $region48: #{tpu_custom_call.1} parent=0 // pred_region
    _
  $region49: #{tpu_custom_call.1} parent=0 // pred_fallthru
    _
  // Predicated region
  $region50: #{tpu_custom_call.1} parent=0 // pred_check
    _
  $region51: #{tpu_custom_call.1} parent=0 // pred_check_branch
    %53 = sbr.rel (0) target = $region53
  $region52: #{tpu_custom_call.1} parent=0 // pred_region
    _
  $region53: #{tpu_custom_call.1} parent=0 // pred_fallthru
    _
  // Predicated region
  $region54: #{tpu_custom_call.1} parent=0 // pred_check
    _
  $region55: #{tpu_custom_call.1} parent=0 // pred_check_branch
    %55 = sbr.rel (0) target = $region57
  $region56: #{tpu_custom_call.1} parent=0 // pred_region
    _
  $region57: #{tpu_custom_call.1} parent=0 // pred_fallthru
    _
  // Predicated region
  $region58: #{tpu_custom_call.1} parent=0 // pred_check
    _
  $region59: #{tpu_custom_call.1} parent=0 // pred_check_branch
    %57 = sbr.rel (0) target = $region61
  $region60: #{tpu_custom_call.1} parent=0 // pred_region
    _
  $region61: #{tpu_custom_call.1} parent=0 // pred_fallthru
    _
  // Predicated region
  $region62: #{tpu_custom_call.1} parent=0 // pred_check
    _
  $region63: #{tpu_custom_call.1} parent=0 // pred_check_branch
    %59 = sbr.rel (0) target = $region65
  $region64: #{tpu_custom_call.1} parent=0 // pred_region
    _
  $region65: #{tpu_custom_call.1} parent=0 // pred_fallthru
    _
  // Predicated region
  $region66: #{tpu_custom_call.1} parent=0 // pred_check
    _
  $region67: #{tpu_custom_call.1} parent=0 // pred_check_branch
    %61 = sbr.rel (0) target = $region69
  $region68: #{tpu_custom_call.1} parent=0 // pred_region
    _
  $region69: #{tpu_custom_call.1} parent=0 // pred_fallthru
    _
  // Predicated region
  $region70: #{tpu_custom_call.1} parent=0 // pred_check
    _
  $region71: #{tpu_custom_call.1} parent=0 // pred_check_branch
    %63 = sbr.rel (0) target = $region73
  $region72: #{tpu_custom_call.1} parent=0 // pred_region
    _
  $region73: #{tpu_custom_call.1} parent=0 // pred_fallthru
    _
  // Predicated region
  $region74: #{tpu_custom_call.1} parent=0 // pred_check
    _
  $region75: #{tpu_custom_call.1} parent=0 // pred_check_branch
    %65 = sbr.rel (0) target = $region77
  $region76: #{tpu_custom_call.1} parent=0 // pred_region
    _
  $region77: #{tpu_custom_call.1} parent=0 // pred_fallthru
    _
  // Predicated region
  $region78: #{tpu_custom_call.1} parent=0 // pred_check
    _
  $region79: #{tpu_custom_call.1} parent=0 // pred_check_branch
    %67 = sbr.rel (0) target = $region81
  $region80: #{tpu_custom_call.1} parent=0 // pred_region
    _
  $region81: #{tpu_custom_call.1} parent=0 // pred_fallthru
    _
  // Predicated region
  $region82: #{tpu_custom_call.1} parent=0 // pred_check
    _
  $region83: #{tpu_custom_call.1} parent=0 // pred_check_branch
    %69 = sbr.rel (0) target = $region85
  $region84: #{tpu_custom_call.1} parent=0 // pred_region
    _
  $region85: #{tpu_custom_call.1} parent=0 // pred_fallthru
    _
  // Predicated region
  $region86: #{tpu_custom_call.1} parent=0 // pred_check
    _
  $region87: #{tpu_custom_call.1} parent=0 // pred_check_branch
    %71 = sbr.rel (0) target = $region89
  $region88: #{tpu_custom_call.1} parent=0 // pred_region
    _
  $region89: #{tpu_custom_call.1} parent=0 // pred_fallthru
    _
  // Predicated region
  $region90: #{tpu_custom_call.1} parent=0 // pred_check
    _
  $region91: #{tpu_custom_call.1} parent=0 // pred_check_branch
    %73 = sbr.rel (0) target = $region93
  $region92: #{tpu_custom_call.1} parent=0 // pred_region
    _
  $region93: #{tpu_custom_call.1} parent=0 // pred_fallthru
    _
  %v75 = vld [vmem:[%s1] sm:$0xf]
  %v76 = vld [vmem:[%s1 + $0x4] sm:$0xf]
  %v77 = vld [vmem:[%s0] sm:$0xff]
  %v78 = vld [vmem:[%s0 + $0x8] sm:$0xff]
  %v79 = vld [vmem:[%s0 + $0x10] sm:$0xff]
  %v80 = vld [vmem:[%s0 + $0x18] sm:$0xff]
  %v81 = vld [vmem:[%s0 + $0x20] sm:$0xff]
  %v82 = vld [vmem:[%s0 + $0x28] sm:$0xff]
  %v83 = vld [vmem:[%s0 + $0x30] sm:$0xff]
  %v84 = vld [vmem:[%s0 + $0x38] sm:$0xff]
  %v85 = vld [vmem:[%s0 + $0x40] sm:$0x33]
  %v86 = vld [vmem:[%s0 + $0x48] sm:$0x33]
  %v87 = vld [vmem:[%s2] sm:$0xff]
  %v88 = vld [vmem:[%s2 + $0x8] sm:$0xff]
  %90 = vset.pattern.permute.xlu0 0
  %91 = vperm.xlu0 %90, %v87
  %v92 = vpop.permute.xlu0 %91
  %95 = vset.pattern.permute.xlu0 0
  %96 = vperm.xlu0 %95, %v88
  %v97 = vpop.permute.xlu0 %96
  %v101 = vunpack.c.l.b16 %v75
  %v102 = vunpack.c.l.b16 %v76
  %v103 = vpack.c.b16 %v102, %v101
  %v114 = vunpack.c.l.b16 %v77
  %v115 = vunpack.c.h.b16 %v77
  %v116 = vunpack.c.l.b16 %v78
  %v117 = vunpack.c.h.b16 %v78
  %v118 = vunpack.c.l.b16 %v79
  %v119 = vunpack.c.h.b16 %v79
  %v120 = vunpack.c.l.b16 %v80
  %v121 = vunpack.c.h.b16 %v80
  %v122 = vunpack.c.l.b16 %v81
  %v123 = vunpack.c.h.b16 %v81
  %v124 = vunpack.c.l.b16 %v82
  %v125 = vunpack.c.h.b16 %v82
  %v126 = vunpack.c.l.b16 %v83
  %v127 = vunpack.c.h.b16 %v83
  %v128 = vunpack.c.l.b16 %v84
  %v129 = vunpack.c.h.b16 %v84
  %v130 = vunpack.c.l.b16 %v85
  %v131 = vunpack.c.h.b16 %v85
  %v132 = vunpack.c.l.b16 %v86
  %v133 = vunpack.c.h.b16 %v86
  %v134 = vpack.c.b16 %v118, %v114
  %v135 = vpack.c.b16 %v119, %v115
  %v136 = vpack.c.b16 %v120, %v116
  %v137 = vpack.c.b16 %v121, %v117
  %v138 = vpack.c.b16 %v126, %v122
  %v139 = vpack.c.b16 %v127, %v123
  %v140 = vpack.c.b16 %v128, %v124
  %v141 = vpack.c.b16 %v129, %v125
  %v142 = vpack.c.b16 %v130, %v130
  %v143 = vpack.c.b16 %v131, %v131
  %v144 = vpack.c.b16 %v132, %v132
  %v145 = vpack.c.b16 %v133, %v133
  %vm154 = vcmask 293888
  %v156 = vsel %vm154, %v103, 0
  %vm158 = vcmask 1041408
  %v160 = vsel %vm158, %v142, 0
  %v163 = vsel %vm158, %v143, 0
  %v166 = vsel %vm158, %v144, 0
  %v169 = vsel %vm158, %v145, 0
  %171 = vmatprep.subr.bf16.mxu0 0
  %172 = vmatpush1.bf16.msra.mxu0 0
  %173 = vmatprep.subr.bf16.mxu0 0
  %174 = vmatpush1.bf16.msra.mxu0 0
  %175 = vmatprep.subr.bf16.mxu0 0
  %176 = vmatpush1.bf16.msra.mxu0 0
  %177 = vmatprep.subr.bf16.mxu0 0
  %178 = vmatpush1.bf16.msra.mxu0 0
  %179 = vmatprep.subr.bf16.mxu0 0
  %180 = vmatpush1.bf16.msra.mxu0 0
  %181 = vmatprep.subr.bf16.mxu0 %v163
  %182 = vmatpush1.bf16.msra.mxu0 %v160
  %183 = vmatprep.subr.bf16.mxu0 %v139
  %184 = vmatpush1.bf16.msra.mxu0 %v138
  %185 = vmatprep.subr.bf16.mxu0 %v135
  %186 = vmatpush1.bf16.msra.mxu0 %v134
  %187 = vmatprep.subr.bf16.mxu0 0
  %188 = vmatpush2.bf16.msra.mxu0 0
  %189 = vmatprep.subr.bf16.mxu0 0
  %190 = vmatpush2.bf16.msra.mxu0 0
  %191 = vmatprep.subr.bf16.mxu0 0
  %192 = vmatpush2.bf16.msra.mxu0 0
  %193 = vmatprep.subr.bf16.mxu0 0
  %194 = vmatpush2.bf16.msra.mxu0 0
  %195 = vmatprep.subr.bf16.mxu0 0
  %196 = vmatpush2.bf16.msra.mxu0 0
  %197 = vmatprep.subr.bf16.mxu0 0
  %198 = vmatpush2.bf16.msra.mxu0 0
  %199 = vmatprep.subr.bf16.mxu0 0
  %200 = vmatpush2.bf16.msra.mxu0 0
  %201 = vmatprep.subr.bf16.mxu0 0
  %202 = vmatpush2.bf16.msra.mxu0 0
  %203 = vmatprep.mubr.bf16.mxu0 0
  %204 = vmatmul.mubr.bf16.gmra.mxu0 %v156
  %v205 = vpop.f32.mrf.mxu0
  %v206 = vadd.f32 %v92, %v205
  %v207 = vpop.f32.mrf.mxu0
  %v208 = vadd.f32 %v92, %v207
  %v209 = vpop.f32.mrf.mxu0
  %v210 = vadd.f32 %v97, %v209
  %v211 = vpop.f32.mrf.mxu0
  %v212 = vadd.f32 %v97, %v211
  %213 = vdwg.mxu0
  %214 = vmatprep.subr.bf16.mxu0 0
  %215 = vmatpush1.bf16.msra.mxu0 0
  %216 = vmatprep.subr.bf16.mxu0 0
  %217 = vmatpush1.bf16.msra.mxu0 0
  %218 = vmatprep.subr.bf16.mxu0 0
  %219 = vmatpush1.bf16.msra.mxu0 0
  %220 = vmatprep.subr.bf16.mxu0 0
  %221 = vmatpush1.bf16.msra.mxu0 0
  %222 = vmatprep.subr.bf16.mxu0 0
  %223 = vmatpush1.bf16.msra.mxu0 0
  %224 = vmatprep.subr.bf16.mxu0 %v169
  %225 = vmatpush1.bf16.msra.mxu0 %v166
  %226 = vmatprep.subr.bf16.mxu0 %v141
  %227 = vmatpush1.bf16.msra.mxu0 %v140
  %228 = vmatprep.subr.bf16.mxu0 %v137
  %229 = vmatpush1.bf16.msra.mxu0 %v136
  %230 = vmatprep.subr.bf16.mxu0 0
  %231 = vmatpush2.bf16.msra.mxu0 0
  %232 = vmatprep.subr.bf16.mxu0 0
  %233 = vmatpush2.bf16.msra.mxu0 0
  %234 = vmatprep.subr.bf16.mxu0 0
  %235 = vmatpush2.bf16.msra.mxu0 0
  %236 = vmatprep.subr.bf16.mxu0 0
  %237 = vmatpush2.bf16.msra.mxu0 0
  %238 = vmatprep.subr.bf16.mxu0 0
  %239 = vmatpush2.bf16.msra.mxu0 0
  %240 = vmatprep.subr.bf16.mxu0 0
  %241 = vmatpush2.bf16.msra.mxu0 0
  %242 = vmatprep.subr.bf16.mxu0 0
  %243 = vmatpush2.bf16.msra.mxu0 0
  %244 = vmatprep.subr.bf16.mxu0 0
  %245 = vmatpush2.bf16.msra.mxu0 0
  %246 = vmatprep.mubr.bf16.mxu0 0
  %247 = vmatmul.mubr.bf16.gmra.mxu0 %v156
  %v248 = vpop.f32.mrf.mxu0
  %v249 = vadd.f32 %v92, %v248
  %v250 = vpop.f32.mrf.mxu0
  %v251 = vadd.f32 %v92, %v250
  %v252 = vpop.f32.mrf.mxu0
  %v253 = vadd.f32 %v97, %v252
  %v254 = vpop.f32.mrf.mxu0
  %v255 = vadd.f32 %v97, %v254
  %256 = vdwg.mxu0
  %v257 = vmax.f32 %v206, 0.0
  %v258 = vmax.f32 %v208, 0.0
  %v259 = vmax.f32 %v249, 0.0
  %v260 = vmax.f32 %v251, 0.0
  %v261 = vmax.f32 %v210, 0.0
  %v262 = vmax.f32 %v212, 0.0
  %v263 = vmax.f32 %v253, 0.0
  %v264 = vmax.f32 %v255, 0.0
  %v265 = vmin.f32 %v257, 6.0
  %v266 = vmin.f32 %v258, 6.0
  %v267 = vmin.f32 %v259, 6.0
  %v268 = vmin.f32 %v260, 6.0
  %v269 = vmin.f32 %v261, 6.0
  %v270 = vmin.f32 %v262, 6.0
  %v271 = vmin.f32 %v263, 6.0
  %v272 = vmin.f32 %v264, 6.0
  %v273 = vld [vmem:[%s3] sm:$0xf]
  %v274 = vld [vmem:[%s3 + $0x4] sm:$0xf]
  %v275 = vld [vmem:[%s3 + $0x8] sm:$0xf]
  %v276 = vld [vmem:[%s3 + $0xc] sm:$0xf]
  %v277 = vpack.c.bf16 %v269, %v265
  %v278 = vpack.c.bf16 %v270, %v266
  %v279 = vpack.c.bf16 %v271, %v267
  %v280 = vpack.c.bf16 %v272, %v268
  %v281 = vld [vmem:[%s4] sm:$0xff]
  %v282 = vld [vmem:[%s4 + $0x8] sm:$0xff]
  %v283 = vld [vmem:[%s4 + $0x10] sm:$0xff]
  %v284 = vld [vmem:[%s4 + $0x18] sm:$0xff]
  %286 = vset.pattern.permute.xlu0 0
  %287 = vperm.xlu0 %286, %v281
  %v288 = vpop.permute.xlu0 %287
  %291 = vset.pattern.permute.xlu0 0
  %292 = vperm.xlu0 %291, %v282
  %v293 = vpop.permute.xlu0 %292
  %296 = vset.pattern.permute.xlu0 0
  %297 = vperm.xlu0 %296, %v283
  %v298 = vpop.permute.xlu0 %297
  %301 = vset.pattern.permute.xlu0 0
  %302 = vperm.xlu0 %301, %v284
  %v303 = vpop.permute.xlu0 %302
  %v309 = vunpack.c.l.b16 %v273
  %v310 = vunpack.c.l.b16 %v274
  %v311 = vunpack.c.l.b16 %v275
  %v312 = vunpack.c.l.b16 %v276
  %v313 = vpack.c.b16 %v310, %v309
  %v314 = vpack.c.b16 %v312, %v311
  %vm315 = vcmask 130048
  %v317 = vsel %vm315, %v313, 0
  %v320 = vsel %vm315, %v314, 0
  %322 = vmatprep.subr.bf16.mxu0 0
  %323 = vmatpush1.bf16.msra.mxu0 0
  %324 = vmatprep.subr.bf16.mxu0 0
  %325 = vmatpush1.bf16.msra.mxu0 0
  %326 = vmatprep.subr.bf16.mxu0 0
  %327 = vmatpush1.bf16.msra.mxu0 0
  %328 = vmatprep.subr.bf16.mxu0 0
  %329 = vmatpush1.bf16.msra.mxu0 0
  %330 = vmatprep.subr.bf16.mxu0 0
  %331 = vmatpush1.bf16.msra.mxu0 0
  %332 = vmatprep.subr.bf16.mxu0 0
  %333 = vmatpush1.bf16.msra.mxu0 0
  %334 = vmatprep.subr.bf16.mxu0 0
  %335 = vmatpush1.bf16.msra.mxu0 0
  %336 = vmatprep.subr.bf16.mxu0 %v278
  %337 = vmatpush1.bf16.msra.mxu0 %v277
  %338 = vmatprep.subr.bf16.mxu0 0
  %339 = vmatpush2.bf16.msra.mxu0 0
  %340 = vmatprep.subr.bf16.mxu0 0
  %341 = vmatpush2.bf16.msra.mxu0 0
  %342 = vmatprep.subr.bf16.mxu0 0
  %343 = vmatpush2.bf16.msra.mxu0 0
  %344 = vmatprep.subr.bf16.mxu0 0
  %345 = vmatpush2.bf16.msra.mxu0 0
  %346 = vmatprep.subr.bf16.mxu0 0
  %347 = vmatpush2.bf16.msra.mxu0 0
  %348 = vmatprep.subr.bf16.mxu0 0
  %349 = vmatpush2.bf16.msra.mxu0 0
  %350 = vmatprep.subr.bf16.mxu0 0
  %351 = vmatpush2.bf16.msra.mxu0 0
  %352 = vmatprep.subr.bf16.mxu0 0
  %353 = vmatpush2.bf16.msra.mxu0 0
  %354 = vmatprep.mubr.bf16.mxu0 0
  %355 = vmatmul.mubr.bf16.gmra.mxu0 %v317
  %v356 = vpop.f32.mrf.mxu0
  %v357 = vadd.f32 %v288, %v356
  %v358 = vpop.f32.mrf.mxu0
  %v359 = vadd.f32 %v288, %v358
  %v360 = vpop.f32.mrf.mxu0
  %v361 = vadd.f32 %v293, %v360
  %v362 = vpop.f32.mrf.mxu0
  %v363 = vadd.f32 %v293, %v362
  %364 = vmatprep.mubr.bf16.mxu0 0
  %365 = vmatmul.mubr.bf16.gmra.mxu0 %v320
  %v366 = vpop.f32.mrf.mxu0
  %v367 = vadd.f32 %v298, %v366
  %v368 = vpop.f32.mrf.mxu0
  %v369 = vadd.f32 %v298, %v368
  %v370 = vpop.f32.mrf.mxu0
  %v371 = vadd.f32 %v303, %v370
  %v372 = vpop.f32.mrf.mxu0
  %v373 = vadd.f32 %v303, %v372
  %374 = vdwg.mxu0
  %375 = vmatprep.subr.bf16.mxu0 0
  %376 = vmatpush1.bf16.msra.mxu0 0
  %377 = vmatprep.subr.bf16.mxu0 0
  %378 = vmatpush1.bf16.msra.mxu0 0
  %379 = vmatprep.subr.bf16.mxu0 0
  %380 = vmatpush1.bf16.msra.mxu0 0
  %381 = vmatprep.subr.bf16.mxu0 0
  %382 = vmatpush1.bf16.msra.mxu0 0
  %383 = vmatprep.subr.bf16.mxu0 0
  %384 = vmatpush1.bf16.msra.mxu0 0
  %385 = vmatprep.subr.bf16.mxu0 0
  %386 = vmatpush1.bf16.msra.mxu0 0
  %387 = vmatprep.subr.bf16.mxu0 0
  %388 = vmatpush1.bf16.msra.mxu0 0
  %389 = vmatprep.subr.bf16.mxu0 %v280
  %390 = vmatpush1.bf16.msra.mxu0 %v279
  %391 = vmatprep.subr.bf16.mxu0 0
  %392 = vmatpush2.bf16.msra.mxu0 0
  %393 = vmatprep.subr.bf16.mxu0 0
  %394 = vmatpush2.bf16.msra.mxu0 0
  %395 = vmatprep.subr.bf16.mxu0 0
  %396 = vmatpush2.bf16.msra.mxu0 0
  %397 = vmatprep.subr.bf16.mxu0 0
  %398 = vmatpush2.bf16.msra.mxu0 0
  %399 = vmatprep.subr.bf16.mxu0 0
  %400 = vmatpush2.bf16.msra.mxu0 0
  %401 = vmatprep.subr.bf16.mxu0 0
  %402 = vmatpush2.bf16.msra.mxu0 0
  %403 = vmatprep.subr.bf16.mxu0 0
  %404 = vmatpush2.bf16.msra.mxu0 0
  %405 = vmatprep.subr.bf16.mxu0 0
  %406 = vmatpush2.bf16.msra.mxu0 0
  %407 = vmatprep.mubr.bf16.mxu0 0
  %408 = vmatmul.mubr.bf16.gmra.mxu0 %v317
  %v409 = vpop.f32.mrf.mxu0
  %v410 = vadd.f32 %v288, %v409
  %v411 = vpop.f32.mrf.mxu0
  %v412 = vadd.f32 %v288, %v411
  %v413 = vpop.f32.mrf.mxu0
  %v414 = vadd.f32 %v293, %v413
  %v415 = vpop.f32.mrf.mxu0
  %v416 = vadd.f32 %v293, %v415
  %417 = vmatprep.mubr.bf16.mxu0 0
  %418 = vmatmul.mubr.bf16.gmra.mxu0 %v320
  %v419 = vpop.f32.mrf.mxu0
  %v420 = vadd.f32 %v298, %v419
  %v421 = vpop.f32.mrf.mxu0
  %v422 = vadd.f32 %v298, %v421
  %v423 = vpop.f32.mrf.mxu0
  %v424 = vadd.f32 %v303, %v423
  %v425 = vpop.f32.mrf.mxu0
  %v426 = vadd.f32 %v303, %v425
  %427 = vdwg.mxu0
  %v428 = vmax.f32 %v357, 0.0
  %v429 = vmax.f32 %v359, 0.0
  %v430 = vmax.f32 %v410, 0.0
  %v431 = vmax.f32 %v412, 0.0
  %v432 = vmax.f32 %v361, 0.0
  %v433 = vmax.f32 %v363, 0.0
  %v434 = vmax.f32 %v414, 0.0
  %v435 = vmax.f32 %v416, 0.0
  %v436 = vmax.f32 %v367, 0.0
  %v437 = vmax.f32 %v369, 0.0
  %v438 = vmax.f32 %v420, 0.0
  %v439 = vmax.f32 %v422, 0.0
  %v440 = vmax.f32 %v371, 0.0
  %v441 = vmax.f32 %v373, 0.0
  %v442 = vmax.f32 %v424, 0.0
  %v443 = vmax.f32 %v426, 0.0
  %v444 = vmin.f32 %v428, 6.0
  %v445 = vmin.f32 %v429, 6.0
  %v446 = vmin.f32 %v430, 6.0
  %v447 = vmin.f32 %v431, 6.0
  %v448 = vmin.f32 %v432, 6.0
  %v449 = vmin.f32 %v433, 6.0
  %v450 = vmin.f32 %v434, 6.0
  %v451 = vmin.f32 %v435, 6.0
  %v452 = vmin.f32 %v436, 6.0
  %v453 = vmin.f32 %v437, 6.0
  %v454 = vmin.f32 %v438, 6.0
  %v455 = vmin.f32 %v439, 6.0
  %v456 = vmin.f32 %v440, 6.0
  %v457 = vmin.f32 %v441, 6.0
  %v458 = vmin.f32 %v442, 6.0
  %v459 = vmin.f32 %v443, 6.0
  %460 = vrot.lane.b32.xlu0 %v444, 17
  %v461 = vpop.permute.xlu0 %460
  %462 = vrot.lane.b32.xlu0 %v448, 17
  %v463 = vpop.permute.xlu0 %462
  %464 = vrot.lane.b32.xlu0 %v452, 17
  %v465 = vpop.permute.xlu0 %464
  %466 = vrot.lane.b32.xlu0 %v456, 17
  %v467 = vpop.permute.xlu0 %466
  %468 = vrot.lane.b32.xlu0 %v445, 17
  %v469 = vpop.permute.xlu0 %468
  %470 = vrot.lane.b32.xlu0 %v449, 17
  %v471 = vpop.permute.xlu0 %470
  %472 = vrot.lane.b32.xlu0 %v453, 17
  %v473 = vpop.permute.xlu0 %472
  %474 = vrot.lane.b32.xlu0 %v457, 17
  %v475 = vpop.permute.xlu0 %474
  %476 = vrot.lane.b32.xlu0 %v446, 17
  %v477 = vpop.permute.xlu0 %476
  %478 = vrot.lane.b32.xlu0 %v450, 17
  %v479 = vpop.permute.xlu0 %478
  %480 = vrot.lane.b32.xlu0 %v454, 17
  %v481 = vpop.permute.xlu0 %480
  %482 = vrot.lane.b32.xlu0 %v458, 17
  %v483 = vpop.permute.xlu0 %482
  %484 = vrot.lane.b32.xlu0 %v447, 17
  %v485 = vpop.permute.xlu0 %484
  %486 = vrot.lane.b32.xlu0 %v451, 17
  %v487 = vpop.permute.xlu0 %486
  %488 = vrot.lane.b32.xlu0 %v455, 17
  %v489 = vpop.permute.xlu0 %488
  %490 = vrot.lane.b32.xlu0 %v459, 17
  %v491 = vpop.permute.xlu0 %490
  %v492 = vlaneseq
  %v493 = vand.u32 %v492, 127
  %vm494 = vcmp.lt.s32.totalorder %v493, 17
  %v495 = vsel %vm494, %v477, %v485
  %v496 = vsel %vm494, %v479, %v487
  %v497 = vsel %vm494, %v481, %v489
  %v498 = vsel %vm494, %v483, %v491
  %v499 = vsel %vm494, %v469, %v477
  %v500 = vsel %vm494, %v471, %v479
  %v501 = vsel %vm494, %v473, %v481
  %v502 = vsel %vm494, %v475, %v483
  %v503 = vsel %vm494, %v461, %v469
  %v504 = vsel %vm494, %v463, %v471
  %v505 = vsel %vm494, %v465, %v473
  %v506 = vsel %vm494, %v467, %v475
  %v507 = vsel %vm494, %v485, %v461
  %v508 = vsel %vm494, %v487, %v463
  %v509 = vsel %vm494, %v489, %v465
  %v510 = vsel %vm494, %v491, %v467
  %v511 = vld [vmem:[%s5] sm:$0xff]
  %v512 = vld [vmem:[%s5 + $0x8] sm:$0xff]
  %v513 = vld [vmem:[%s5 + $0x10] sm:$0xff]
  %v514 = vld [vmem:[%s5 + $0x18] sm:$0xff]
  %516 = vset.pattern.permute.xlu0 0
  %517 = vperm.xlu0 %516, %v511
  %v518 = vpop.permute.xlu0 %517
  %521 = vset.pattern.permute.xlu0 0
  %522 = vperm.xlu0 %521, %v512
  %v523 = vpop.permute.xlu0 %522
  %526 = vset.pattern.permute.xlu0 0
  %527 = vperm.xlu0 %526, %v513
  %v528 = vpop.permute.xlu0 %527
  %531 = vset.pattern.permute.xlu0 0
  %532 = vperm.xlu0 %531, %v514
  %v533 = vpop.permute.xlu0 %532
  %v535 = vmul.f32 %v507, %v518
  %v536 = vmul.f32 %v503, %v518
  %v537 = vmul.f32 %v499, %v518
  %v538 = vmul.f32 %v495, %v518
  %v539 = vmul.f32 %v508, %v523
  %v540 = vmul.f32 %v504, %v523
  %v541 = vmul.f32 %v500, %v523
  %v542 = vmul.f32 %v496, %v523
  %v543 = vmul.f32 %v509, %v528
  %v544 = vmul.f32 %v505, %v528
  %v545 = vmul.f32 %v501, %v528
  %v546 = vmul.f32 %v497, %v528
  %v547 = vmul.f32 %v510, %v533
  %v548 = vmul.f32 %v506, %v533
  %v549 = vmul.f32 %v502, %v533
  %v550 = vmul.f32 %v498, %v533
  %v551 = vld [vmem:[%s7] sm:$0xf]
  %v553 = vlaneseq
  %v554 = vshrl.u32 %v553, 7
  %v555 = vsub.s32 0, %v554
  %v556 = vrot.slane %v551, %v555
  %v557 = vlaneseq
  %v558 = vshrl.u32 %v557, 7
  %v559 = vsub.s32 1, %v558
  %v560 = vrot.slane %v551, %v559
  %v561 = vlaneseq
  %v562 = vshrl.u32 %v561, 7
  %v563 = vsub.s32 2, %v562
  %v564 = vrot.slane %v551, %v563
  %v565 = vlaneseq
  %v566 = vshrl.u32 %v565, 7
  %v567 = vsub.s32 3, %v566
  %v568 = vrot.slane %v551, %v567
  %v573 = vmul.f32 %v535, %v556
  %v574 = vmul.f32 %v536, %v560
  %v575 = vmul.f32 %v537, %v564
  %v576 = vmul.f32 %v538, %v568
  %v577 = vmul.f32 %v539, %v556
  %v578 = vmul.f32 %v540, %v560
  %v579 = vmul.f32 %v541, %v564
  %v580 = vmul.f32 %v542, %v568
  %v581 = vmul.f32 %v543, %v556
  %v582 = vmul.f32 %v544, %v560
  %v583 = vmul.f32 %v545, %v564
  %v584 = vmul.f32 %v546, %v568
  %v585 = vmul.f32 %v547, %v556
  %v586 = vmul.f32 %v548, %v560
  %v587 = vmul.f32 %v549, %v564
  %v588 = vmul.f32 %v550, %v568
  %v589 = vadd.f32 %v573, 0.0
  %v590 = vadd.f32 %v574, 0.0
  %v591 = vadd.f32 %v575, 0.0
  %v592 = vadd.f32 %v576, 0.0
  %v593 = vadd.f32 %v577, 0.0
  %v594 = vadd.f32 %v578, 0.0
  %v595 = vadd.f32 %v579, 0.0
  %v596 = vadd.f32 %v580, 0.0
  %v597 = vadd.f32 %v581, 0.0
  %v598 = vadd.f32 %v582, 0.0
  %v599 = vadd.f32 %v583, 0.0
  %v600 = vadd.f32 %v584, 0.0
  %v601 = vadd.f32 %v585, 0.0
  %v602 = vadd.f32 %v586, 0.0
  %v603 = vadd.f32 %v587, 0.0
  %v604 = vadd.f32 %v588, 0.0
  %605 = vrot.lane.b32.xlu0 %v444, 16
  %v606 = vpop.permute.xlu0 %605
  %607 = vrot.lane.b32.xlu0 %v448, 16
  %v608 = vpop.permute.xlu0 %607
  %609 = vrot.lane.b32.xlu0 %v452, 16
  %v610 = vpop.permute.xlu0 %609
  %611 = vrot.lane.b32.xlu0 %v456, 16
  %v612 = vpop.permute.xlu0 %611
  %613 = vrot.lane.b32.xlu0 %v445, 16
  %v614 = vpop.permute.xlu0 %613
  %615 = vrot.lane.b32.xlu0 %v449, 16
  %v616 = vpop.permute.xlu0 %615
  %617 = vrot.lane.b32.xlu0 %v453, 16
  %v618 = vpop.permute.xlu0 %617
  %619 = vrot.lane.b32.xlu0 %v457, 16
  %v620 = vpop.permute.xlu0 %619
  %621 = vrot.lane.b32.xlu0 %v446, 16
  %v622 = vpop.permute.xlu0 %621
  %623 = vrot.lane.b32.xlu0 %v450, 16
  %v624 = vpop.permute.xlu0 %623
  %625 = vrot.lane.b32.xlu0 %v454, 16
  %v626 = vpop.permute.xlu0 %625
  %627 = vrot.lane.b32.xlu0 %v458, 16
  %v628 = vpop.permute.xlu0 %627
  %629 = vrot.lane.b32.xlu0 %v447, 16
  %v630 = vpop.permute.xlu0 %629
  %631 = vrot.lane.b32.xlu0 %v451, 16
  %v632 = vpop.permute.xlu0 %631
  %633 = vrot.lane.b32.xlu0 %v455, 16
  %v634 = vpop.permute.xlu0 %633
  %635 = vrot.lane.b32.xlu0 %v459, 16
  %v636 = vpop.permute.xlu0 %635
  %vm637 = vcmp.lt.s32.totalorder %v493, 16
  %v638 = vsel %vm637, %v622, %v630
  %v639 = vsel %vm637, %v624, %v632
  %v640 = vsel %vm637, %v626, %v634
  %v641 = vsel %vm637, %v628, %v636
  %v642 = vsel %vm637, %v614, %v622
  %v643 = vsel %vm637, %v616, %v624
  %v644 = vsel %vm637, %v618, %v626
  %v645 = vsel %vm637, %v620, %v628
  %v646 = vsel %vm637, %v606, %v614
  %v647 = vsel %vm637, %v608, %v616
  %v648 = vsel %vm637, %v610, %v618
  %v649 = vsel %vm637, %v612, %v620
  %v650 = vsel %vm637, %v630, %v606
  %v651 = vsel %vm637, %v632, %v608
  %v652 = vsel %vm637, %v634, %v610
  %v653 = vsel %vm637, %v636, %v612
  %s654 = scalar_lea.vmem %s5, 32
  %v655 = vld [vmem:[%s654] sm:$0xff]
  %v656 = vld [vmem:[%s654 + $0x8] sm:$0xff]
  %v657 = vld [vmem:[%s654 + $0x10] sm:$0xff]
  %v658 = vld [vmem:[%s654 + $0x18] sm:$0xff]
  %660 = vset.pattern.permute.xlu0 0
  %661 = vperm.xlu0 %660, %v655
  %v662 = vpop.permute.xlu0 %661
  %665 = vset.pattern.permute.xlu0 0
  %666 = vperm.xlu0 %665, %v656
  %v667 = vpop.permute.xlu0 %666
  %670 = vset.pattern.permute.xlu0 0
  %671 = vperm.xlu0 %670, %v657
  %v672 = vpop.permute.xlu0 %671
  %675 = vset.pattern.permute.xlu0 0
  %676 = vperm.xlu0 %675, %v658
  %v677 = vpop.permute.xlu0 %676
  %v679 = vmul.f32 %v650, %v662
  %v680 = vmul.f32 %v646, %v662
  %v681 = vmul.f32 %v642, %v662
  %v682 = vmul.f32 %v638, %v662
  %v683 = vmul.f32 %v651, %v667
  %v684 = vmul.f32 %v647, %v667
  %v685 = vmul.f32 %v643, %v667
  %v686 = vmul.f32 %v639, %v667
  %v687 = vmul.f32 %v652, %v672
  %v688 = vmul.f32 %v648, %v672
  %v689 = vmul.f32 %v644, %v672
  %v690 = vmul.f32 %v640, %v672
  %v691 = vmul.f32 %v653, %v677
  %v692 = vmul.f32 %v649, %v677
  %v693 = vmul.f32 %v645, %v677
  %v694 = vmul.f32 %v641, %v677
  %s695 = scalar_lea.vmem %s7, 4
  %v696 = vld [vmem:[%s695] sm:$0xf]
  %v698 = vlaneseq
  %v699 = vshrl.u32 %v698, 7
  %v700 = vsub.s32 0, %v699
  %v701 = vrot.slane %v696, %v700
  %v702 = vlaneseq
  %v703 = vshrl.u32 %v702, 7
  %v704 = vsub.s32 1, %v703
  %v705 = vrot.slane %v696, %v704
  %v706 = vlaneseq
  %v707 = vshrl.u32 %v706, 7
  %v708 = vsub.s32 2, %v707
  %v709 = vrot.slane %v696, %v708
  %v710 = vlaneseq
  %v711 = vshrl.u32 %v710, 7
  %v712 = vsub.s32 3, %v711
  %v713 = vrot.slane %v696, %v712
  %v718 = vmul.f32 %v679, %v701
  %v719 = vmul.f32 %v680, %v705
  %v720 = vmul.f32 %v681, %v709
  %v721 = vmul.f32 %v682, %v713
  %v722 = vmul.f32 %v683, %v701
  %v723 = vmul.f32 %v684, %v705
  %v724 = vmul.f32 %v685, %v709
  %v725 = vmul.f32 %v686, %v713
  %v726 = vmul.f32 %v687, %v701
  %v727 = vmul.f32 %v688, %v705
  %v728 = vmul.f32 %v689, %v709
  %v729 = vmul.f32 %v690, %v713
  %v730 = vmul.f32 %v691, %v701
  %v731 = vmul.f32 %v692, %v705
  %v732 = vmul.f32 %v693, %v709
  %v733 = vmul.f32 %v694, %v713
  %v734 = vadd.f32 %v589, %v718
  %v735 = vadd.f32 %v590, %v719
  %v736 = vadd.f32 %v591, %v720
  %v737 = vadd.f32 %v592, %v721
  %v738 = vadd.f32 %v593, %v722
  %v739 = vadd.f32 %v594, %v723
  %v740 = vadd.f32 %v595, %v724
  %v741 = vadd.f32 %v596, %v725
  %v742 = vadd.f32 %v597, %v726
  %v743 = vadd.f32 %v598, %v727
  %v744 = vadd.f32 %v599, %v728
  %v745 = vadd.f32 %v600, %v729
  %v746 = vadd.f32 %v601, %v730
  %v747 = vadd.f32 %v602, %v731
  %v748 = vadd.f32 %v603, %v732
  %v749 = vadd.f32 %v604, %v733
  %750 = vrot.lane.b32.xlu0 %v444, 15
  %v751 = vpop.permute.xlu0 %750
  %752 = vrot.lane.b32.xlu0 %v448, 15
  %v753 = vpop.permute.xlu0 %752
  %754 = vrot.lane.b32.xlu0 %v452, 15
  %v755 = vpop.permute.xlu0 %754
  %756 = vrot.lane.b32.xlu0 %v456, 15
  %v757 = vpop.permute.xlu0 %756
  %758 = vrot.lane.b32.xlu0 %v445, 15
  %v759 = vpop.permute.xlu0 %758
  %760 = vrot.lane.b32.xlu0 %v449, 15
  %v761 = vpop.permute.xlu0 %760
  %762 = vrot.lane.b32.xlu0 %v453, 15
  %v763 = vpop.permute.xlu0 %762
  %764 = vrot.lane.b32.xlu0 %v457, 15
  %v765 = vpop.permute.xlu0 %764
  %766 = vrot.lane.b32.xlu0 %v446, 15
  %v767 = vpop.permute.xlu0 %766
  %768 = vrot.lane.b32.xlu0 %v450, 15
  %v769 = vpop.permute.xlu0 %768
  %770 = vrot.lane.b32.xlu0 %v454, 15
  %v771 = vpop.permute.xlu0 %770
  %772 = vrot.lane.b32.xlu0 %v458, 15
  %v773 = vpop.permute.xlu0 %772
  %774 = vrot.lane.b32.xlu0 %v447, 15
  %v775 = vpop.permute.xlu0 %774
  %776 = vrot.lane.b32.xlu0 %v451, 15
  %v777 = vpop.permute.xlu0 %776
  %778 = vrot.lane.b32.xlu0 %v455, 15
  %v779 = vpop.permute.xlu0 %778
  %780 = vrot.lane.b32.xlu0 %v459, 15
  %v781 = vpop.permute.xlu0 %780
  %vm782 = vcmp.lt.s32.totalorder %v493, 15
  %v783 = vsel %vm782, %v767, %v775
  %v784 = vsel %vm782, %v769, %v777
  %v785 = vsel %vm782, %v771, %v779
  %v786 = vsel %vm782, %v773, %v781
  %v787 = vsel %vm782, %v759, %v767
  %v788 = vsel %vm782, %v761, %v769
  %v789 = vsel %vm782, %v763, %v771
  %v790 = vsel %vm782, %v765, %v773
  %v791 = vsel %vm782, %v751, %v759
  %v792 = vsel %vm782, %v753, %v761
  %v793 = vsel %vm782, %v755, %v763
  %v794 = vsel %vm782, %v757, %v765
  %v795 = vsel %vm782, %v775, %v751
  %v796 = vsel %vm782, %v777, %v753
  %v797 = vsel %vm782, %v779, %v755
  %v798 = vsel %vm782, %v781, %v757
  %s799 = scalar_lea.vmem %s5, 64
  %v800 = vld [vmem:[%s799] sm:$0xff]
  %v801 = vld [vmem:[%s799 + $0x8] sm:$0xff]
  %v802 = vld [vmem:[%s799 + $0x10] sm:$0xff]
  %v803 = vld [vmem:[%s799 + $0x18] sm:$0xff]
  %805 = vset.pattern.permute.xlu0 0
  %806 = vperm.xlu0 %805, %v800
  %v807 = vpop.permute.xlu0 %806
  %810 = vset.pattern.permute.xlu0 0
  %811 = vperm.xlu0 %810, %v801
  %v812 = vpop.permute.xlu0 %811
  %815 = vset.pattern.permute.xlu0 0
  %816 = vperm.xlu0 %815, %v802
  %v817 = vpop.permute.xlu0 %816
  %820 = vset.pattern.permute.xlu0 0
  %821 = vperm.xlu0 %820, %v803
  %v822 = vpop.permute.xlu0 %821
  %v824 = vmul.f32 %v795, %v807
  %v825 = vmul.f32 %v791, %v807
  %v826 = vmul.f32 %v787, %v807
  %v827 = vmul.f32 %v783, %v807
  %v828 = vmul.f32 %v796, %v812
  %v829 = vmul.f32 %v792, %v812
  %v830 = vmul.f32 %v788, %v812
  %v831 = vmul.f32 %v784, %v812
  %v832 = vmul.f32 %v797, %v817
  %v833 = vmul.f32 %v793, %v817
  %v834 = vmul.f32 %v789, %v817
  %v835 = vmul.f32 %v785, %v817
  %v836 = vmul.f32 %v798, %v822
  %v837 = vmul.f32 %v794, %v822
  %v838 = vmul.f32 %v790, %v822
  %v839 = vmul.f32 %v786, %v822
  %s840 = scalar_lea.vmem %s7, 8
  %v841 = vld [vmem:[%s840] sm:$0xf]
  %v843 = vlaneseq
  %v844 = vshrl.u32 %v843, 7
  %v845 = vsub.s32 0, %v844
  %v846 = vrot.slane %v841, %v845
  %v847 = vlaneseq
  %v848 = vshrl.u32 %v847, 7
  %v849 = vsub.s32 1, %v848
  %v850 = vrot.slane %v841, %v849
  %v851 = vlaneseq
  %v852 = vshrl.u32 %v851, 7
  %v853 = vsub.s32 2, %v852
  %v854 = vrot.slane %v841, %v853
  %v855 = vlaneseq
  %v856 = vshrl.u32 %v855, 7
  %v857 = vsub.s32 3, %v856
  %v858 = vrot.slane %v841, %v857
  %v863 = vmul.f32 %v824, %v846
  %v864 = vmul.f32 %v825, %v850
  %v865 = vmul.f32 %v826, %v854
  %v866 = vmul.f32 %v827, %v858
  %v867 = vmul.f32 %v828, %v846
  %v868 = vmul.f32 %v829, %v850
  %v869 = vmul.f32 %v830, %v854
  %v870 = vmul.f32 %v831, %v858
  %v871 = vmul.f32 %v832, %v846
  %v872 = vmul.f32 %v833, %v850
  %v873 = vmul.f32 %v834, %v854
  %v874 = vmul.f32 %v835, %v858
  %v875 = vmul.f32 %v836, %v846
  %v876 = vmul.f32 %v837, %v850
  %v877 = vmul.f32 %v838, %v854
  %v878 = vmul.f32 %v839, %v858
  %v879 = vadd.f32 %v734, %v863
  %v880 = vadd.f32 %v735, %v864
  %v881 = vadd.f32 %v736, %v865
  %v882 = vadd.f32 %v737, %v866
  %v883 = vadd.f32 %v738, %v867
  %v884 = vadd.f32 %v739, %v868
  %v885 = vadd.f32 %v740, %v869
  %v886 = vadd.f32 %v741, %v870
  %v887 = vadd.f32 %v742, %v871
  %v888 = vadd.f32 %v743, %v872
  %v889 = vadd.f32 %v744, %v873
  %v890 = vadd.f32 %v745, %v874
  %v891 = vadd.f32 %v746, %v875
  %v892 = vadd.f32 %v747, %v876
  %v893 = vadd.f32 %v748, %v877
  %v894 = vadd.f32 %v749, %v878
  %895 = vrot.lane.b32.xlu0 %v444, 1
  %v896 = vpop.permute.xlu0 %895
  %897 = vrot.lane.b32.xlu0 %v448, 1
  %v898 = vpop.permute.xlu0 %897
  %899 = vrot.lane.b32.xlu0 %v452, 1
  %v900 = vpop.permute.xlu0 %899
  %901 = vrot.lane.b32.xlu0 %v456, 1
  %v902 = vpop.permute.xlu0 %901
  %903 = vrot.lane.b32.xlu0 %v445, 1
  %v904 = vpop.permute.xlu0 %903
  %905 = vrot.lane.b32.xlu0 %v449, 1
  %v906 = vpop.permute.xlu0 %905
  %907 = vrot.lane.b32.xlu0 %v453, 1
  %v908 = vpop.permute.xlu0 %907
  %909 = vrot.lane.b32.xlu0 %v457, 1
  %v910 = vpop.permute.xlu0 %909
  %911 = vrot.lane.b32.xlu0 %v446, 1
  %v912 = vpop.permute.xlu0 %911
  %913 = vrot.lane.b32.xlu0 %v450, 1
  %v914 = vpop.permute.xlu0 %913
  %915 = vrot.lane.b32.xlu0 %v454, 1
  %v916 = vpop.permute.xlu0 %915
  %917 = vrot.lane.b32.xlu0 %v458, 1
  %v918 = vpop.permute.xlu0 %917
  %919 = vrot.lane.b32.xlu0 %v447, 1
  %v920 = vpop.permute.xlu0 %919
  %921 = vrot.lane.b32.xlu0 %v451, 1
  %v922 = vpop.permute.xlu0 %921
  %923 = vrot.lane.b32.xlu0 %v455, 1
  %v924 = vpop.permute.xlu0 %923
  %925 = vrot.lane.b32.xlu0 %v459, 1
  %v926 = vpop.permute.xlu0 %925
  %vm927 = vcmp.lt.s32.totalorder %v493, 1
  %v928 = vsel %vm927, %v912, %v920
  %v929 = vsel %vm927, %v914, %v922
  %v930 = vsel %vm927, %v916, %v924
  %v931 = vsel %vm927, %v918, %v926
  %v932 = vsel %vm927, %v904, %v912
  %v933 = vsel %vm927, %v906, %v914
  %v934 = vsel %vm927, %v908, %v916
  %v935 = vsel %vm927, %v910, %v918
  %v936 = vsel %vm927, %v896, %v904
  %v937 = vsel %vm927, %v898, %v906
  %v938 = vsel %vm927, %v900, %v908
  %v939 = vsel %vm927, %v902, %v910
  %v940 = vsel %vm927, %v920, %v896
  %v941 = vsel %vm927, %v922, %v898
  %v942 = vsel %vm927, %v924, %v900
  %v943 = vsel %vm927, %v926, %v902
  %s944 = scalar_lea.vmem %s5, 96
  %v945 = vld [vmem:[%s944] sm:$0xff]
  %v946 = vld [vmem:[%s944 + $0x8] sm:$0xff]
  %v947 = vld [vmem:[%s944 + $0x10] sm:$0xff]
  %v948 = vld [vmem:[%s944 + $0x18] sm:$0xff]
  %950 = vset.pattern.permute.xlu0 0
  %951 = vperm.xlu0 %950, %v945
  %v952 = vpop.permute.xlu0 %951
  %955 = vset.pattern.permute.xlu0 0
  %956 = vperm.xlu0 %955, %v946
  %v957 = vpop.permute.xlu0 %956
  %960 = vset.pattern.permute.xlu0 0
  %961 = vperm.xlu0 %960, %v947
  %v962 = vpop.permute.xlu0 %961
  %965 = vset.pattern.permute.xlu0 0
  %966 = vperm.xlu0 %965, %v948
  %v967 = vpop.permute.xlu0 %966
  %v969 = vmul.f32 %v940, %v952
  %v970 = vmul.f32 %v936, %v952
  %v971 = vmul.f32 %v932, %v952
  %v972 = vmul.f32 %v928, %v952
  %v973 = vmul.f32 %v941, %v957
  %v974 = vmul.f32 %v937, %v957
  %v975 = vmul.f32 %v933, %v957
  %v976 = vmul.f32 %v929, %v957
  %v977 = vmul.f32 %v942, %v962
  %v978 = vmul.f32 %v938, %v962
  %v979 = vmul.f32 %v934, %v962
  %v980 = vmul.f32 %v930, %v962
  %v981 = vmul.f32 %v943, %v967
  %v982 = vmul.f32 %v939, %v967
  %v983 = vmul.f32 %v935, %v967
  %v984 = vmul.f32 %v931, %v967
  %s985 = scalar_lea.vmem %s7, 12
  %v986 = vld [vmem:[%s985] sm:$0xf]
  %v988 = vlaneseq
  %v989 = vshrl.u32 %v988, 7
  %v990 = vsub.s32 0, %v989
  %v991 = vrot.slane %v986, %v990
  %v992 = vlaneseq
  %v993 = vshrl.u32 %v992, 7
  %v994 = vsub.s32 1, %v993
  %v995 = vrot.slane %v986, %v994
  %v996 = vlaneseq
  %v997 = vshrl.u32 %v996, 7
  %v998 = vsub.s32 2, %v997
  %v999 = vrot.slane %v986, %v998
  %v1000 = vlaneseq
  %v1001 = vshrl.u32 %v1000, 7
  %v1002 = vsub.s32 3, %v1001
  %v1003 = vrot.slane %v986, %v1002
  %v1008 = vmul.f32 %v969, %v991
  %v1009 = vmul.f32 %v970, %v995
  %v1010 = vmul.f32 %v971, %v999
  %v1011 = vmul.f32 %v972, %v1003
  %v1012 = vmul.f32 %v973, %v991
  %v1013 = vmul.f32 %v974, %v995
  %v1014 = vmul.f32 %v975, %v999
  %v1015 = vmul.f32 %v976, %v1003
  %v1016 = vmul.f32 %v977, %v991
  %v1017 = vmul.f32 %v978, %v995
  %v1018 = vmul.f32 %v979, %v999
  %v1019 = vmul.f32 %v980, %v1003
  %v1020 = vmul.f32 %v981, %v991
  %v1021 = vmul.f32 %v982, %v995
  %v1022 = vmul.f32 %v983, %v999
  %v1023 = vmul.f32 %v984, %v1003
  %v1024 = vadd.f32 %v879, %v1008
  %v1025 = vadd.f32 %v880, %v1009
  %v1026 = vadd.f32 %v881, %v1010
  %v1027 = vadd.f32 %v882, %v1011
  %v1028 = vadd.f32 %v883, %v1012
  %v1029 = vadd.f32 %v884, %v1013
  %v1030 = vadd.f32 %v885, %v1014
  %v1031 = vadd.f32 %v886, %v1015
  %v1032 = vadd.f32 %v887, %v1016
  %v1033 = vadd.f32 %v888, %v1017
  %v1034 = vadd.f32 %v889, %v1018
  %v1035 = vadd.f32 %v890, %v1019
  %v1036 = vadd.f32 %v891, %v1020
  %v1037 = vadd.f32 %v892, %v1021
  %v1038 = vadd.f32 %v893, %v1022
  %v1039 = vadd.f32 %v894, %v1023
  %s1040 = scalar_lea.vmem %s5, 128
  %v1041 = vld [vmem:[%s1040] sm:$0xff]
  %v1042 = vld [vmem:[%s1040 + $0x8] sm:$0xff]
  %v1043 = vld [vmem:[%s1040 + $0x10] sm:$0xff]
  %v1044 = vld [vmem:[%s1040 + $0x18] sm:$0xff]
  %1046 = vset.pattern.permute.xlu0 0
  %1047 = vperm.xlu0 %1046, %v1041
  %v1048 = vpop.permute.xlu0 %1047
  %1051 = vset.pattern.permute.xlu0 0
  %1052 = vperm.xlu0 %1051, %v1042
  %v1053 = vpop.permute.xlu0 %1052
  %1056 = vset.pattern.permute.xlu0 0
  %1057 = vperm.xlu0 %1056, %v1043
  %v1058 = vpop.permute.xlu0 %1057
  %1061 = vset.pattern.permute.xlu0 0
  %1062 = vperm.xlu0 %1061, %v1044
  %v1063 = vpop.permute.xlu0 %1062
  %v1065 = vmul.f32 %v444, %v1048
  %v1066 = vmul.f32 %v445, %v1048
  %v1067 = vmul.f32 %v446, %v1048
  %v1068 = vmul.f32 %v447, %v1048
  %v1069 = vmul.f32 %v448, %v1053
  %v1070 = vmul.f32 %v449, %v1053
  %v1071 = vmul.f32 %v450, %v1053
  %v1072 = vmul.f32 %v451, %v1053
  %v1073 = vmul.f32 %v452, %v1058
  %v1074 = vmul.f32 %v453, %v1058
  %v1075 = vmul.f32 %v454, %v1058
  %v1076 = vmul.f32 %v455, %v1058
  %v1077 = vmul.f32 %v456, %v1063
  %v1078 = vmul.f32 %v457, %v1063
  %v1079 = vmul.f32 %v458, %v1063
  %v1080 = vmul.f32 %v459, %v1063
  %s1081 = scalar_lea.vmem %s7, 16
  %v1082 = vld [vmem:[%s1081] sm:$0xf]
  %v1084 = vlaneseq
  %v1085 = vshrl.u32 %v1084, 7
  %v1086 = vsub.s32 0, %v1085
  %v1087 = vrot.slane %v1082, %v1086
  %v1088 = vlaneseq
  %v1089 = vshrl.u32 %v1088, 7
  %v1090 = vsub.s32 1, %v1089
  %v1091 = vrot.slane %v1082, %v1090
  %v1092 = vlaneseq
  %v1093 = vshrl.u32 %v1092, 7
  %v1094 = vsub.s32 2, %v1093
  %v1095 = vrot.slane %v1082, %v1094
  %v1096 = vlaneseq
  %v1097 = vshrl.u32 %v1096, 7
  %v1098 = vsub.s32 3, %v1097
  %v1099 = vrot.slane %v1082, %v1098
  %v1104 = vmul.f32 %v1065, %v1087
  %v1105 = vmul.f32 %v1066, %v1091
  %v1106 = vmul.f32 %v1067, %v1095
  %v1107 = vmul.f32 %v1068, %v1099
  %v1108 = vmul.f32 %v1069, %v1087
  %v1109 = vmul.f32 %v1070, %v1091
  %v1110 = vmul.f32 %v1071, %v1095
  %v1111 = vmul.f32 %v1072, %v1099
  %v1112 = vmul.f32 %v1073, %v1087
  %v1113 = vmul.f32 %v1074, %v1091
  %v1114 = vmul.f32 %v1075, %v1095
  %v1115 = vmul.f32 %v1076, %v1099
  %v1116 = vmul.f32 %v1077, %v1087
  %v1117 = vmul.f32 %v1078, %v1091
  %v1118 = vmul.f32 %v1079, %v1095
  %v1119 = vmul.f32 %v1080, %v1099
  %v1120 = vadd.f32 %v1024, %v1104
  %v1121 = vadd.f32 %v1025, %v1105
  %v1122 = vadd.f32 %v1026, %v1106
  %v1123 = vadd.f32 %v1027, %v1107
  %v1124 = vadd.f32 %v1028, %v1108
  %v1125 = vadd.f32 %v1029, %v1109
  %v1126 = vadd.f32 %v1030, %v1110
  %v1127 = vadd.f32 %v1031, %v1111
  %v1128 = vadd.f32 %v1032, %v1112
  %v1129 = vadd.f32 %v1033, %v1113
  %v1130 = vadd.f32 %v1034, %v1114
  %v1131 = vadd.f32 %v1035, %v1115
  %v1132 = vadd.f32 %v1036, %v1116
  %v1133 = vadd.f32 %v1037, %v1117
  %v1134 = vadd.f32 %v1038, %v1118
  %v1135 = vadd.f32 %v1039, %v1119
  %1136 = vrot.lane.b32.xlu0 %v444, 127
  %v1137 = vpop.permute.xlu0 %1136
  %1138 = vrot.lane.b32.xlu0 %v448, 127
  %v1139 = vpop.permute.xlu0 %1138
  %1140 = vrot.lane.b32.xlu0 %v452, 127
  %v1141 = vpop.permute.xlu0 %1140
  %1142 = vrot.lane.b32.xlu0 %v456, 127
  %v1143 = vpop.permute.xlu0 %1142
  %1144 = vrot.lane.b32.xlu0 %v445, 127
  %v1145 = vpop.permute.xlu0 %1144
  %1146 = vrot.lane.b32.xlu0 %v449, 127
  %v1147 = vpop.permute.xlu0 %1146
  %1148 = vrot.lane.b32.xlu0 %v453, 127
  %v1149 = vpop.permute.xlu0 %1148
  %1150 = vrot.lane.b32.xlu0 %v457, 127
  %v1151 = vpop.permute.xlu0 %1150
  %1152 = vrot.lane.b32.xlu0 %v446, 127
  %v1153 = vpop.permute.xlu0 %1152
  %1154 = vrot.lane.b32.xlu0 %v450, 127
  %v1155 = vpop.permute.xlu0 %1154
  %1156 = vrot.lane.b32.xlu0 %v454, 127
  %v1157 = vpop.permute.xlu0 %1156
  %1158 = vrot.lane.b32.xlu0 %v458, 127
  %v1159 = vpop.permute.xlu0 %1158
  %1160 = vrot.lane.b32.xlu0 %v447, 127
  %v1161 = vpop.permute.xlu0 %1160
  %1162 = vrot.lane.b32.xlu0 %v451, 127
  %v1163 = vpop.permute.xlu0 %1162
  %1164 = vrot.lane.b32.xlu0 %v455, 127
  %v1165 = vpop.permute.xlu0 %1164
  %1166 = vrot.lane.b32.xlu0 %v459, 127
  %v1167 = vpop.permute.xlu0 %1166
  %vm1168 = vcmp.lt.s32.totalorder %v493, 127
  %v1169 = vsel %vm1168, %v1153, %v1161
  %v1170 = vsel %vm1168, %v1155, %v1163
  %v1171 = vsel %vm1168, %v1157, %v1165
  %v1172 = vsel %vm1168, %v1159, %v1167
  %v1173 = vsel %vm1168, %v1145, %v1153
  %v1174 = vsel %vm1168, %v1147, %v1155
  %v1175 = vsel %vm1168, %v1149, %v1157
  %v1176 = vsel %vm1168, %v1151, %v1159
  %v1177 = vsel %vm1168, %v1137, %v1145
  %v1178 = vsel %vm1168, %v1139, %v1147
  %v1179 = vsel %vm1168, %v1141, %v1149
  %v1180 = vsel %vm1168, %v1143, %v1151
  %v1181 = vsel %vm1168, %v1161, %v1137
  %v1182 = vsel %vm1168, %v1163, %v1139
  %v1183 = vsel %vm1168, %v1165, %v1141
  %v1184 = vsel %vm1168, %v1167, %v1143
  %s1185 = scalar_lea.vmem %s5, 160
  %v1186 = vld [vmem:[%s1185] sm:$0xff]
  %v1187 = vld [vmem:[%s1185 + $0x8] sm:$0xff]
  %v1188 = vld [vmem:[%s1185 + $0x10] sm:$0xff]
  %v1189 = vld [vmem:[%s1185 + $0x18] sm:$0xff]
  %1191 = vset.pattern.permute.xlu0 0
  %1192 = vperm.xlu0 %1191, %v1186
  %v1193 = vpop.permute.xlu0 %1192
  %1196 = vset.pattern.permute.xlu0 0
  %1197 = vperm.xlu0 %1196, %v1187
  %v1198 = vpop.permute.xlu0 %1197
  %1201 = vset.pattern.permute.xlu0 0
  %1202 = vperm.xlu0 %1201, %v1188
  %v1203 = vpop.permute.xlu0 %1202
  %1206 = vset.pattern.permute.xlu0 0
  %1207 = vperm.xlu0 %1206, %v1189
  %v1208 = vpop.permute.xlu0 %1207
  %v1210 = vmul.f32 %v1177, %v1193
  %v1211 = vmul.f32 %v1173, %v1193
  %v1212 = vmul.f32 %v1169, %v1193
  %v1213 = vmul.f32 %v1181, %v1193
  %v1214 = vmul.f32 %v1178, %v1198
  %v1215 = vmul.f32 %v1174, %v1198
  %v1216 = vmul.f32 %v1170, %v1198
  %v1217 = vmul.f32 %v1182, %v1198
  %v1218 = vmul.f32 %v1179, %v1203
  %v1219 = vmul.f32 %v1175, %v1203
  %v1220 = vmul.f32 %v1171, %v1203
  %v1221 = vmul.f32 %v1183, %v1203
  %v1222 = vmul.f32 %v1180, %v1208
  %v1223 = vmul.f32 %v1176, %v1208
  %v1224 = vmul.f32 %v1172, %v1208
  %v1225 = vmul.f32 %v1184, %v1208
  %s1226 = scalar_lea.vmem %s7, 20
  %v1227 = vld [vmem:[%s1226] sm:$0xf]
  %v1229 = vlaneseq
  %v1230 = vshrl.u32 %v1229, 7
  %v1231 = vsub.s32 0, %v1230
  %v1232 = vrot.slane %v1227, %v1231
  %v1233 = vlaneseq
  %v1234 = vshrl.u32 %v1233, 7
  %v1235 = vsub.s32 1, %v1234
  %v1236 = vrot.slane %v1227, %v1235
  %v1237 = vlaneseq
  %v1238 = vshrl.u32 %v1237, 7
  %v1239 = vsub.s32 2, %v1238
  %v1240 = vrot.slane %v1227, %v1239
  %v1241 = vlaneseq
  %v1242 = vshrl.u32 %v1241, 7
  %v1243 = vsub.s32 3, %v1242
  %v1244 = vrot.slane %v1227, %v1243
  %v1249 = vmul.f32 %v1210, %v1232
  %v1250 = vmul.f32 %v1211, %v1236
  %v1251 = vmul.f32 %v1212, %v1240
  %v1252 = vmul.f32 %v1213, %v1244
  %v1253 = vmul.f32 %v1214, %v1232
  %v1254 = vmul.f32 %v1215, %v1236
  %v1255 = vmul.f32 %v1216, %v1240
  %v1256 = vmul.f32 %v1217, %v1244
  %v1257 = vmul.f32 %v1218, %v1232
  %v1258 = vmul.f32 %v1219, %v1236
  %v1259 = vmul.f32 %v1220, %v1240
  %v1260 = vmul.f32 %v1221, %v1244
  %v1261 = vmul.f32 %v1222, %v1232
  %v1262 = vmul.f32 %v1223, %v1236
  %v1263 = vmul.f32 %v1224, %v1240
  %v1264 = vmul.f32 %v1225, %v1244
  %v1265 = vadd.f32 %v1120, %v1249
  %v1266 = vadd.f32 %v1121, %v1250
  %v1267 = vadd.f32 %v1122, %v1251
  %v1268 = vadd.f32 %v1123, %v1252
  %v1269 = vadd.f32 %v1124, %v1253
  %v1270 = vadd.f32 %v1125, %v1254
  %v1271 = vadd.f32 %v1126, %v1255
  %v1272 = vadd.f32 %v1127, %v1256
  %v1273 = vadd.f32 %v1128, %v1257
  %v1274 = vadd.f32 %v1129, %v1258
  %v1275 = vadd.f32 %v1130, %v1259
  %v1276 = vadd.f32 %v1131, %v1260
  %v1277 = vadd.f32 %v1132, %v1261
  %v1278 = vadd.f32 %v1133, %v1262
  %v1279 = vadd.f32 %v1134, %v1263
  %v1280 = vadd.f32 %v1135, %v1264
  %1281 = vrot.lane.b32.xlu0 %v444, 113
  %v1282 = vpop.permute.xlu0 %1281
  %1283 = vrot.lane.b32.xlu0 %v448, 113
  %v1284 = vpop.permute.xlu0 %1283
  %1285 = vrot.lane.b32.xlu0 %v452, 113
  %v1286 = vpop.permute.xlu0 %1285
  %1287 = vrot.lane.b32.xlu0 %v456, 113
  %v1288 = vpop.permute.xlu0 %1287
  %1289 = vrot.lane.b32.xlu0 %v445, 113
  %v1290 = vpop.permute.xlu0 %1289
  %1291 = vrot.lane.b32.xlu0 %v449, 113
  %v1292 = vpop.permute.xlu0 %1291
  %1293 = vrot.lane.b32.xlu0 %v453, 113
  %v1294 = vpop.permute.xlu0 %1293
  %1295 = vrot.lane.b32.xlu0 %v457, 113
  %v1296 = vpop.permute.xlu0 %1295
  %1297 = vrot.lane.b32.xlu0 %v446, 113
  %v1298 = vpop.permute.xlu0 %1297
  %1299 = vrot.lane.b32.xlu0 %v450, 113
  %v1300 = vpop.permute.xlu0 %1299
  %1301 = vrot.lane.b32.xlu0 %v454, 113
  %v1302 = vpop.permute.xlu0 %1301
  %1303 = vrot.lane.b32.xlu0 %v458, 113
  %v1304 = vpop.permute.xlu0 %1303
  %1305 = vrot.lane.b32.xlu0 %v447, 113
  %v1306 = vpop.permute.xlu0 %1305
  %1307 = vrot.lane.b32.xlu0 %v451, 113
  %v1308 = vpop.permute.xlu0 %1307
  %1309 = vrot.lane.b32.xlu0 %v455, 113
  %v1310 = vpop.permute.xlu0 %1309
  %1311 = vrot.lane.b32.xlu0 %v459, 113
  %v1312 = vpop.permute.xlu0 %1311
  %vm1313 = vcmp.lt.s32.totalorder %v493, 113
  %v1314 = vsel %vm1313, %v1298, %v1306
  %v1315 = vsel %vm1313, %v1300, %v1308
  %v1316 = vsel %vm1313, %v1302, %v1310
  %v1317 = vsel %vm1313, %v1304, %v1312
  %v1318 = vsel %vm1313, %v1290, %v1298
  %v1319 = vsel %vm1313, %v1292, %v1300
  %v1320 = vsel %vm1313, %v1294, %v1302
  %v1321 = vsel %vm1313, %v1296, %v1304
  %v1322 = vsel %vm1313, %v1282, %v1290
  %v1323 = vsel %vm1313, %v1284, %v1292
  %v1324 = vsel %vm1313, %v1286, %v1294
  %v1325 = vsel %vm1313, %v1288, %v1296
  %v1326 = vsel %vm1313, %v1306, %v1282
  %v1327 = vsel %vm1313, %v1308, %v1284
  %v1328 = vsel %vm1313, %v1310, %v1286
  %v1329 = vsel %vm1313, %v1312, %v1288
  %s1330 = scalar_lea.vmem %s5, 192
  %v1331 = vld [vmem:[%s1330] sm:$0xff]
  %v1332 = vld [vmem:[%s1330 + $0x8] sm:$0xff]
  %v1333 = vld [vmem:[%s1330 + $0x10] sm:$0xff]
  %v1334 = vld [vmem:[%s1330 + $0x18] sm:$0xff]
  %1336 = vset.pattern.permute.xlu0 0
  %1337 = vperm.xlu0 %1336, %v1331
  %v1338 = vpop.permute.xlu0 %1337
  %1341 = vset.pattern.permute.xlu0 0
  %1342 = vperm.xlu0 %1341, %v1332
  %v1343 = vpop.permute.xlu0 %1342
  %1346 = vset.pattern.permute.xlu0 0
  %1347 = vperm.xlu0 %1346, %v1333
  %v1348 = vpop.permute.xlu0 %1347
  %1351 = vset.pattern.permute.xlu0 0
  %1352 = vperm.xlu0 %1351, %v1334
  %v1353 = vpop.permute.xlu0 %1352
  %v1355 = vmul.f32 %v1322, %v1338
  %v1356 = vmul.f32 %v1318, %v1338
  %v1357 = vmul.f32 %v1314, %v1338
  %v1358 = vmul.f32 %v1326, %v1338
  %v1359 = vmul.f32 %v1323, %v1343
  %v1360 = vmul.f32 %v1319, %v1343
  %v1361 = vmul.f32 %v1315, %v1343
  %v1362 = vmul.f32 %v1327, %v1343
  %v1363 = vmul.f32 %v1324, %v1348
  %v1364 = vmul.f32 %v1320, %v1348
  %v1365 = vmul.f32 %v1316, %v1348
  %v1366 = vmul.f32 %v1328, %v1348
  %v1367 = vmul.f32 %v1325, %v1353
  %v1368 = vmul.f32 %v1321, %v1353
  %v1369 = vmul.f32 %v1317, %v1353
  %v1370 = vmul.f32 %v1329, %v1353
  %s1371 = scalar_lea.vmem %s7, 24
  %v1372 = vld [vmem:[%s1371] sm:$0xf]
  %v1374 = vlaneseq
  %v1375 = vshrl.u32 %v1374, 7
  %v1376 = vsub.s32 0, %v1375
  %v1377 = vrot.slane %v1372, %v1376
  %v1378 = vlaneseq
  %v1379 = vshrl.u32 %v1378, 7
  %v1380 = vsub.s32 1, %v1379
  %v1381 = vrot.slane %v1372, %v1380
  %v1382 = vlaneseq
  %v1383 = vshrl.u32 %v1382, 7
  %v1384 = vsub.s32 2, %v1383
  %v1385 = vrot.slane %v1372, %v1384
  %v1386 = vlaneseq
  %v1387 = vshrl.u32 %v1386, 7
  %v1388 = vsub.s32 3, %v1387
  %v1389 = vrot.slane %v1372, %v1388
  %v1394 = vmul.f32 %v1355, %v1377
  %v1395 = vmul.f32 %v1356, %v1381
  %v1396 = vmul.f32 %v1357, %v1385
  %v1397 = vmul.f32 %v1358, %v1389
  %v1398 = vmul.f32 %v1359, %v1377
  %v1399 = vmul.f32 %v1360, %v1381
  %v1400 = vmul.f32 %v1361, %v1385
  %v1401 = vmul.f32 %v1362, %v1389
  %v1402 = vmul.f32 %v1363, %v1377
  %v1403 = vmul.f32 %v1364, %v1381
  %v1404 = vmul.f32 %v1365, %v1385
  %v1405 = vmul.f32 %v1366, %v1389
  %v1406 = vmul.f32 %v1367, %v1377
  %v1407 = vmul.f32 %v1368, %v1381
  %v1408 = vmul.f32 %v1369, %v1385
  %v1409 = vmul.f32 %v1370, %v1389
  %v1410 = vadd.f32 %v1265, %v1394
  %v1411 = vadd.f32 %v1266, %v1395
  %v1412 = vadd.f32 %v1267, %v1396
  %v1413 = vadd.f32 %v1268, %v1397
  %v1414 = vadd.f32 %v1269, %v1398
  %v1415 = vadd.f32 %v1270, %v1399
  %v1416 = vadd.f32 %v1271, %v1400
  %v1417 = vadd.f32 %v1272, %v1401
  %v1418 = vadd.f32 %v1273, %v1402
  %v1419 = vadd.f32 %v1274, %v1403
  %v1420 = vadd.f32 %v1275, %v1404
  %v1421 = vadd.f32 %v1276, %v1405
  %v1422 = vadd.f32 %v1277, %v1406
  %v1423 = vadd.f32 %v1278, %v1407
  %v1424 = vadd.f32 %v1279, %v1408
  %v1425 = vadd.f32 %v1280, %v1409
  %1426 = vrot.lane.b32.xlu0 %v444, 112
  %v1427 = vpop.permute.xlu0 %1426
  %1428 = vrot.lane.b32.xlu0 %v448, 112
  %v1429 = vpop.permute.xlu0 %1428
  %1430 = vrot.lane.b32.xlu0 %v452, 112
  %v1431 = vpop.permute.xlu0 %1430
  %1432 = vrot.lane.b32.xlu0 %v456, 112
  %v1433 = vpop.permute.xlu0 %1432
  %1434 = vrot.lane.b32.xlu0 %v445, 112
  %v1435 = vpop.permute.xlu0 %1434
  %1436 = vrot.lane.b32.xlu0 %v449, 112
  %v1437 = vpop.permute.xlu0 %1436
  %1438 = vrot.lane.b32.xlu0 %v453, 112
  %v1439 = vpop.permute.xlu0 %1438
  %1440 = vrot.lane.b32.xlu0 %v457, 112
  %v1441 = vpop.permute.xlu0 %1440
  %1442 = vrot.lane.b32.xlu0 %v446, 112
  %v1443 = vpop.permute.xlu0 %1442
  %1444 = vrot.lane.b32.xlu0 %v450, 112
  %v1445 = vpop.permute.xlu0 %1444
  %1446 = vrot.lane.b32.xlu0 %v454, 112
  %v1447 = vpop.permute.xlu0 %1446
  %1448 = vrot.lane.b32.xlu0 %v458, 112
  %v1449 = vpop.permute.xlu0 %1448
  %1450 = vrot.lane.b32.xlu0 %v447, 112
  %v1451 = vpop.permute.xlu0 %1450
  %1452 = vrot.lane.b32.xlu0 %v451, 112
  %v1453 = vpop.permute.xlu0 %1452
  %1454 = vrot.lane.b32.xlu0 %v455, 112
  %v1455 = vpop.permute.xlu0 %1454
  %1456 = vrot.lane.b32.xlu0 %v459, 112
  %v1457 = vpop.permute.xlu0 %1456
  %vm1458 = vcmp.lt.s32.totalorder %v493, 112
  %v1459 = vsel %vm1458, %v1443, %v1451
  %v1460 = vsel %vm1458, %v1445, %v1453
  %v1461 = vsel %vm1458, %v1447, %v1455
  %v1462 = vsel %vm1458, %v1449, %v1457
  %v1463 = vsel %vm1458, %v1435, %v1443
  %v1464 = vsel %vm1458, %v1437, %v1445
  %v1465 = vsel %vm1458, %v1439, %v1447
  %v1466 = vsel %vm1458, %v1441, %v1449
  %v1467 = vsel %vm1458, %v1427, %v1435
  %v1468 = vsel %vm1458, %v1429, %v1437
  %v1469 = vsel %vm1458, %v1431, %v1439
  %v1470 = vsel %vm1458, %v1433, %v1441
  %v1471 = vsel %vm1458, %v1451, %v1427
  %v1472 = vsel %vm1458, %v1453, %v1429
  %v1473 = vsel %vm1458, %v1455, %v1431
  %v1474 = vsel %vm1458, %v1457, %v1433
  %s1475 = scalar_lea.vmem %s5, 224
  %v1476 = vld [vmem:[%s1475] sm:$0xff]
  %v1477 = vld [vmem:[%s1475 + $0x8] sm:$0xff]
  %v1478 = vld [vmem:[%s1475 + $0x10] sm:$0xff]
  %v1479 = vld [vmem:[%s1475 + $0x18] sm:$0xff]
  %1481 = vset.pattern.permute.xlu0 0
  %1482 = vperm.xlu0 %1481, %v1476
  %v1483 = vpop.permute.xlu0 %1482
  %1486 = vset.pattern.permute.xlu0 0
  %1487 = vperm.xlu0 %1486, %v1477
  %v1488 = vpop.permute.xlu0 %1487
  %1491 = vset.pattern.permute.xlu0 0
  %1492 = vperm.xlu0 %1491, %v1478
  %v1493 = vpop.permute.xlu0 %1492
  %1496 = vset.pattern.permute.xlu0 0
  %1497 = vperm.xlu0 %1496, %v1479
  %v1498 = vpop.permute.xlu0 %1497
  %v1500 = vmul.f32 %v1467, %v1483
  %v1501 = vmul.f32 %v1463, %v1483
  %v1502 = vmul.f32 %v1459, %v1483
  %v1503 = vmul.f32 %v1471, %v1483
  %v1504 = vmul.f32 %v1468, %v1488
  %v1505 = vmul.f32 %v1464, %v1488
  %v1506 = vmul.f32 %v1460, %v1488
  %v1507 = vmul.f32 %v1472, %v1488
  %v1508 = vmul.f32 %v1469, %v1493
  %v1509 = vmul.f32 %v1465, %v1493
  %v1510 = vmul.f32 %v1461, %v1493
  %v1511 = vmul.f32 %v1473, %v1493
  %v1512 = vmul.f32 %v1470, %v1498
  %v1513 = vmul.f32 %v1466, %v1498
  %v1514 = vmul.f32 %v1462, %v1498
  %v1515 = vmul.f32 %v1474, %v1498
  %s1516 = scalar_lea.vmem %s7, 28
  %v1517 = vld [vmem:[%s1516] sm:$0xf]
  %v1519 = vlaneseq
  %v1520 = vshrl.u32 %v1519, 7
  %v1521 = vsub.s32 0, %v1520
  %v1522 = vrot.slane %v1517, %v1521
  %v1523 = vlaneseq
  %v1524 = vshrl.u32 %v1523, 7
  %v1525 = vsub.s32 1, %v1524
  %v1526 = vrot.slane %v1517, %v1525
  %v1527 = vlaneseq
  %v1528 = vshrl.u32 %v1527, 7
  %v1529 = vsub.s32 2, %v1528
  %v1530 = vrot.slane %v1517, %v1529
  %v1531 = vlaneseq
  %v1532 = vshrl.u32 %v1531, 7
  %v1533 = vsub.s32 3, %v1532
  %v1534 = vrot.slane %v1517, %v1533
  %v1539 = vmul.f32 %v1500, %v1522
  %v1540 = vmul.f32 %v1501, %v1526
  %v1541 = vmul.f32 %v1502, %v1530
  %v1542 = vmul.f32 %v1503, %v1534
  %v1543 = vmul.f32 %v1504, %v1522
  %v1544 = vmul.f32 %v1505, %v1526
  %v1545 = vmul.f32 %v1506, %v1530
  %v1546 = vmul.f32 %v1507, %v1534
  %v1547 = vmul.f32 %v1508, %v1522
  %v1548 = vmul.f32 %v1509, %v1526
  %v1549 = vmul.f32 %v1510, %v1530
  %v1550 = vmul.f32 %v1511, %v1534
  %v1551 = vmul.f32 %v1512, %v1522
  %v1552 = vmul.f32 %v1513, %v1526
  %v1553 = vmul.f32 %v1514, %v1530
  %v1554 = vmul.f32 %v1515, %v1534
  %v1555 = vadd.f32 %v1410, %v1539
  %v1556 = vadd.f32 %v1411, %v1540
  %v1557 = vadd.f32 %v1412, %v1541
  %v1558 = vadd.f32 %v1413, %v1542
  %v1559 = vadd.f32 %v1414, %v1543
  %v1560 = vadd.f32 %v1415, %v1544
  %v1561 = vadd.f32 %v1416, %v1545
  %v1562 = vadd.f32 %v1417, %v1546
  %v1563 = vadd.f32 %v1418, %v1547
  %v1564 = vadd.f32 %v1419, %v1548
  %v1565 = vadd.f32 %v1420, %v1549
  %v1566 = vadd.f32 %v1421, %v1550
  %v1567 = vadd.f32 %v1422, %v1551
  %v1568 = vadd.f32 %v1423, %v1552
  %v1569 = vadd.f32 %v1424, %v1553
  %v1570 = vadd.f32 %v1425, %v1554
  %1571 = vrot.lane.b32.xlu0 %v444, 111
  %v1572 = vpop.permute.xlu0 %1571
  %1573 = vrot.lane.b32.xlu0 %v448, 111
  %v1574 = vpop.permute.xlu0 %1573
  %1575 = vrot.lane.b32.xlu0 %v452, 111
  %v1576 = vpop.permute.xlu0 %1575
  %1577 = vrot.lane.b32.xlu0 %v456, 111
  %v1578 = vpop.permute.xlu0 %1577
  %1579 = vrot.lane.b32.xlu0 %v445, 111
  %v1580 = vpop.permute.xlu0 %1579
  %1581 = vrot.lane.b32.xlu0 %v449, 111
  %v1582 = vpop.permute.xlu0 %1581
  %1583 = vrot.lane.b32.xlu0 %v453, 111
  %v1584 = vpop.permute.xlu0 %1583
  %1585 = vrot.lane.b32.xlu0 %v457, 111
  %v1586 = vpop.permute.xlu0 %1585
  %1587 = vrot.lane.b32.xlu0 %v446, 111
  %v1588 = vpop.permute.xlu0 %1587
  %1589 = vrot.lane.b32.xlu0 %v450, 111
  %v1590 = vpop.permute.xlu0 %1589
  %1591 = vrot.lane.b32.xlu0 %v454, 111
  %v1592 = vpop.permute.xlu0 %1591
  %1593 = vrot.lane.b32.xlu0 %v458, 111
  %v1594 = vpop.permute.xlu0 %1593
  %1595 = vrot.lane.b32.xlu0 %v447, 111
  %v1596 = vpop.permute.xlu0 %1595
  %1597 = vrot.lane.b32.xlu0 %v451, 111
  %v1598 = vpop.permute.xlu0 %1597
  %1599 = vrot.lane.b32.xlu0 %v455, 111
  %v1600 = vpop.permute.xlu0 %1599
  %1601 = vrot.lane.b32.xlu0 %v459, 111
  %v1602 = vpop.permute.xlu0 %1601
  %vm1603 = vcmp.lt.s32.totalorder %v493, 111
  %v1604 = vsel %vm1603, %v1588, %v1596
  %v1605 = vsel %vm1603, %v1590, %v1598
  %v1606 = vsel %vm1603, %v1592, %v1600
  %v1607 = vsel %vm1603, %v1594, %v1602
  %v1608 = vsel %vm1603, %v1580, %v1588
  %v1609 = vsel %vm1603, %v1582, %v1590
  %v1610 = vsel %vm1603, %v1584, %v1592
  %v1611 = vsel %vm1603, %v1586, %v1594
  %v1612 = vsel %vm1603, %v1572, %v1580
  %v1613 = vsel %vm1603, %v1574, %v1582
  %v1614 = vsel %vm1603, %v1576, %v1584
  %v1615 = vsel %vm1603, %v1578, %v1586
  %v1616 = vsel %vm1603, %v1596, %v1572
  %v1617 = vsel %vm1603, %v1598, %v1574
  %v1618 = vsel %vm1603, %v1600, %v1576
  %v1619 = vsel %vm1603, %v1602, %v1578
  %s1620 = scalar_lea.vmem %s5, 256
  %v1621 = vld [vmem:[%s1620] sm:$0xff]
  %v1622 = vld [vmem:[%s1620 + $0x8] sm:$0xff]
  %v1623 = vld [vmem:[%s1620 + $0x10] sm:$0xff]
  %v1624 = vld [vmem:[%s1620 + $0x18] sm:$0xff]
  %1626 = vset.pattern.permute.xlu0 0
  %1627 = vperm.xlu0 %1626, %v1621
  %v1628 = vpop.permute.xlu0 %1627
  %1631 = vset.pattern.permute.xlu0 0
  %1632 = vperm.xlu0 %1631, %v1622
  %v1633 = vpop.permute.xlu0 %1632
  %1636 = vset.pattern.permute.xlu0 0
  %1637 = vperm.xlu0 %1636, %v1623
  %v1638 = vpop.permute.xlu0 %1637
  %1641 = vset.pattern.permute.xlu0 0
  %1642 = vperm.xlu0 %1641, %v1624
  %v1643 = vpop.permute.xlu0 %1642
  %v1645 = vmul.f32 %v1612, %v1628
  %v1646 = vmul.f32 %v1608, %v1628
  %v1647 = vmul.f32 %v1604, %v1628
  %v1648 = vmul.f32 %v1616, %v1628
  %v1649 = vmul.f32 %v1613, %v1633
  %v1650 = vmul.f32 %v1609, %v1633
  %v1651 = vmul.f32 %v1605, %v1633
  %v1652 = vmul.f32 %v1617, %v1633
  %v1653 = vmul.f32 %v1614, %v1638
  %v1654 = vmul.f32 %v1610, %v1638
  %v1655 = vmul.f32 %v1606, %v1638
  %v1656 = vmul.f32 %v1618, %v1638
  %v1657 = vmul.f32 %v1615, %v1643
  %v1658 = vmul.f32 %v1611, %v1643
  %v1659 = vmul.f32 %v1607, %v1643
  %v1660 = vmul.f32 %v1619, %v1643
  %s1661 = scalar_lea.vmem %s7, 32
  %v1662 = vld [vmem:[%s1661] sm:$0xf]
  %v1664 = vlaneseq
  %v1665 = vshrl.u32 %v1664, 7
  %v1666 = vsub.s32 0, %v1665
  %v1667 = vrot.slane %v1662, %v1666
  %v1668 = vlaneseq
  %v1669 = vshrl.u32 %v1668, 7
  %v1670 = vsub.s32 1, %v1669
  %v1671 = vrot.slane %v1662, %v1670
  %v1672 = vlaneseq
  %v1673 = vshrl.u32 %v1672, 7
  %v1674 = vsub.s32 2, %v1673
  %v1675 = vrot.slane %v1662, %v1674
  %v1676 = vlaneseq
  %v1677 = vshrl.u32 %v1676, 7
  %v1678 = vsub.s32 3, %v1677
  %v1679 = vrot.slane %v1662, %v1678
  %v1684 = vmul.f32 %v1645, %v1667
  %v1685 = vmul.f32 %v1646, %v1671
  %v1686 = vmul.f32 %v1647, %v1675
  %v1687 = vmul.f32 %v1648, %v1679
  %v1688 = vmul.f32 %v1649, %v1667
  %v1689 = vmul.f32 %v1650, %v1671
  %v1690 = vmul.f32 %v1651, %v1675
  %v1691 = vmul.f32 %v1652, %v1679
  %v1692 = vmul.f32 %v1653, %v1667
  %v1693 = vmul.f32 %v1654, %v1671
  %v1694 = vmul.f32 %v1655, %v1675
  %v1695 = vmul.f32 %v1656, %v1679
  %v1696 = vmul.f32 %v1657, %v1667
  %v1697 = vmul.f32 %v1658, %v1671
  %v1698 = vmul.f32 %v1659, %v1675
  %v1699 = vmul.f32 %v1660, %v1679
  %v1700 = vadd.f32 %v1555, %v1684
  %v1701 = vadd.f32 %v1556, %v1685
  %v1702 = vadd.f32 %v1557, %v1686
  %v1703 = vadd.f32 %v1558, %v1687
  %v1704 = vadd.f32 %v1559, %v1688
  %v1705 = vadd.f32 %v1560, %v1689
  %v1706 = vadd.f32 %v1561, %v1690
  %v1707 = vadd.f32 %v1562, %v1691
  %v1708 = vadd.f32 %v1563, %v1692
  %v1709 = vadd.f32 %v1564, %v1693
  %v1710 = vadd.f32 %v1565, %v1694
  %v1711 = vadd.f32 %v1566, %v1695
  %v1712 = vadd.f32 %v1567, %v1696
  %v1713 = vadd.f32 %v1568, %v1697
  %v1714 = vadd.f32 %v1569, %v1698
  %v1715 = vadd.f32 %v1570, %v1699
  %v1716 = vld [vmem:[%s6] sm:$0xff]
  %v1717 = vld [vmem:[%s6 + $0x8] sm:$0xff]
  %v1718 = vld [vmem:[%s6 + $0x10] sm:$0xff]
  %v1719 = vld [vmem:[%s6 + $0x18] sm:$0xff]
  %1721 = vset.pattern.permute.xlu0 0
  %1722 = vperm.xlu0 %1721, %v1716
  %v1723 = vpop.permute.xlu0 %1722
  %1726 = vset.pattern.permute.xlu0 0
  %1727 = vperm.xlu0 %1726, %v1717
  %v1728 = vpop.permute.xlu0 %1727
  %1731 = vset.pattern.permute.xlu0 0
  %1732 = vperm.xlu0 %1731, %v1718
  %v1733 = vpop.permute.xlu0 %1732
  %1736 = vset.pattern.permute.xlu0 0
  %1737 = vperm.xlu0 %1736, %v1719
  %v1738 = vpop.permute.xlu0 %1737
  %v1740 = vadd.f32 %v1700, %v1723
  %v1741 = vadd.f32 %v1701, %v1723
  %v1742 = vadd.f32 %v1702, %v1723
  %v1743 = vadd.f32 %v1703, %v1723
  %v1744 = vadd.f32 %v1704, %v1728
  %v1745 = vadd.f32 %v1705, %v1728
  %v1746 = vadd.f32 %v1706, %v1728
  %v1747 = vadd.f32 %v1707, %v1728
  %v1748 = vadd.f32 %v1708, %v1733
  %v1749 = vadd.f32 %v1709, %v1733
  %v1750 = vadd.f32 %v1710, %v1733
  %v1751 = vadd.f32 %v1711, %v1733
  %v1752 = vadd.f32 %v1712, %v1738
  %v1753 = vadd.f32 %v1713, %v1738
  %v1754 = vadd.f32 %v1714, %v1738
  %v1755 = vadd.f32 %v1715, %v1738
  %v1756 = vmax.f32 %v1740, 0.0
  %v1757 = vmax.f32 %v1741, 0.0
  %v1758 = vmax.f32 %v1742, 0.0
  %v1759 = vmax.f32 %v1743, 0.0
  %v1760 = vmax.f32 %v1744, 0.0
  %v1761 = vmax.f32 %v1745, 0.0
  %v1762 = vmax.f32 %v1746, 0.0
  %v1763 = vmax.f32 %v1747, 0.0
  %v1764 = vmax.f32 %v1748, 0.0
  %v1765 = vmax.f32 %v1749, 0.0
  %v1766 = vmax.f32 %v1750, 0.0
  %v1767 = vmax.f32 %v1751, 0.0
  %v1768 = vmax.f32 %v1752, 0.0
  %v1769 = vmax.f32 %v1753, 0.0
  %v1770 = vmax.f32 %v1754, 0.0
  %v1771 = vmax.f32 %v1755, 0.0
  %v1772 = vmin.f32 %v1756, 6.0
  %v1773 = vmin.f32 %v1757, 6.0
  %v1774 = vmin.f32 %v1758, 6.0
  %v1775 = vmin.f32 %v1759, 6.0
  %v1776 = vmin.f32 %v1760, 6.0
  %v1777 = vmin.f32 %v1761, 6.0
  %v1778 = vmin.f32 %v1762, 6.0
  %v1779 = vmin.f32 %v1763, 6.0
  %v1780 = vmin.f32 %v1764, 6.0
  %v1781 = vmin.f32 %v1765, 6.0
  %v1782 = vmin.f32 %v1766, 6.0
  %v1783 = vmin.f32 %v1767, 6.0
  %v1784 = vmin.f32 %v1768, 6.0
  %v1785 = vmin.f32 %v1769, 6.0
  %v1786 = vmin.f32 %v1770, 6.0
  %v1787 = vmin.f32 %v1771, 6.0
  %v1788 = vpack.c.bf16 %v1776, %v1772
  %v1789 = vpack.c.bf16 %v1777, %v1773
  %v1790 = vpack.c.bf16 %v1778, %v1774
  %v1791 = vpack.c.bf16 %v1779, %v1775
  %v1792 = vpack.c.bf16 %v1784, %v1780
  %v1793 = vpack.c.bf16 %v1785, %v1781
  %v1794 = vpack.c.bf16 %v1786, %v1782
  %v1795 = vpack.c.bf16 %v1787, %v1783
  %v1796 = vld [vmem:[%s10] sm:$0xf]
  %v1797 = vld [vmem:[%s10 + $0x4] sm:$0xf]
  %v1798 = vld [vmem:[%s10 + $0x8] sm:$0xf]
  %v1799 = vld [vmem:[%s10 + $0xc] sm:$0xf]
  %v1800 = vld [vmem:[%s10 + $0x10] sm:$0xf]
  %v1801 = vld [vmem:[%s10 + $0x14] sm:$0xf]
  %v1802 = vld [vmem:[%s10 + $0x18] sm:$0xf]
  %v1803 = vld [vmem:[%s10 + $0x1c] sm:$0xf]
  %v1804 = vld [vmem:[%s10 + $0x20] sm:$0xf]
  %v1805 = vld [vmem:[%s10 + $0x24] sm:$0xf]
  %v1806 = vld [vmem:[%s10 + $0x28] sm:$0xf]
  %v1807 = vld [vmem:[%s10 + $0x2c] sm:$0xf]
  %v1808 = vld [vmem:[%s10 + $0x30] sm:$0xf]
  %v1809 = vld [vmem:[%s10 + $0x34] sm:$0xf]
  %v1810 = vld [vmem:[%s10 + $0x38] sm:$0xf]
  %v1811 = vld [vmem:[%s10 + $0x3c] sm:$0xf]
  %v1812 = vld [vmem:[%s10 + $0x40] sm:$0xf]
  %v1813 = vld [vmem:[%s10 + $0x44] sm:$0xf]
  %v1814 = vld [vmem:[%s10 + $0x48] sm:$0xf]
  %v1815 = vld [vmem:[%s10 + $0x4c] sm:$0xf]
  %v1816 = vld [vmem:[%s10 + $0x50] sm:$0xf]
  %v1817 = vld [vmem:[%s10 + $0x54] sm:$0xf]
  %v1818 = vld [vmem:[%s10 + $0x58] sm:$0xf]
  %v1819 = vld [vmem:[%s10 + $0x5c] sm:$0xf]
  %v1820 = vld [vmem:[%s10 + $0x60] sm:$0xf]
  %v1821 = vld [vmem:[%s10 + $0x64] sm:$0xf]
  %v1822 = vld [vmem:[%s10 + $0x68] sm:$0xf]
  %v1823 = vld [vmem:[%s10 + $0x6c] sm:$0xf]
  %v1824 = vld [vmem:[%s10 + $0x70] sm:$0xf]
  %v1825 = vld [vmem:[%s10 + $0x74] sm:$0xf]
  %v1826 = vld [vmem:[%s10 + $0x78] sm:$0xf]
  %v1827 = vld [vmem:[%s10 + $0x7c] sm:$0xf]
  %v1828 = vld [vmem:[%s10 + $0x80] sm:$0xf]
  %v1829 = vld [vmem:[%s10 + $0x84] sm:$0xf]
  %v1830 = vld [vmem:[%s10 + $0x88] sm:$0xf]
  %v1831 = vld [vmem:[%s10 + $0x8c] sm:$0xf]
  %v1832 = vld [vmem:[%s10 + $0x90] sm:$0xf]
  %v1833 = vld [vmem:[%s10 + $0x94] sm:$0xf]
  %v1834 = vld [vmem:[%s10 + $0x98] sm:$0xf]
  %v1835 = vld [vmem:[%s10 + $0x9c] sm:$0xf]
  %v1836 = vld [vmem:[%s10 + $0xa0] sm:$0xf]
  %v1837 = vld [vmem:[%s10 + $0xa4] sm:$0xf]
  %v1838 = vld [vmem:[%s10 + $0xa8] sm:$0xf]
  %v1839 = vld [vmem:[%s10 + $0xac] sm:$0xf]
  %v1840 = vld [vmem:[%s10 + $0xb0] sm:$0xf]
  %v1841 = vld [vmem:[%s10 + $0xb4] sm:$0xf]
  %v1842 = vld [vmem:[%s10 + $0xb8] sm:$0xf]
  %v1843 = vld [vmem:[%s10 + $0xbc] sm:$0xf]
  %v1844 = vld [vmem:[%s10 + $0xc0] sm:$0xf]
  %v1845 = vld [vmem:[%s10 + $0xc4] sm:$0xf]
  %v1846 = vld [vmem:[%s10 + $0xc8] sm:$0xf]
  %v1847 = vld [vmem:[%s10 + $0xcc] sm:$0xf]
  %v1848 = vld [vmem:[%s10 + $0xd0] sm:$0xf]
  %v1849 = vld [vmem:[%s10 + $0xd4] sm:$0xf]
  %v1850 = vld [vmem:[%s10 + $0xd8] sm:$0xf]
  %v1851 = vld [vmem:[%s10 + $0xdc] sm:$0xf]
  %v1852 = vld [vmem:[%s10 + $0xe0] sm:$0xf]
  %v1853 = vld [vmem:[%s10 + $0xe4] sm:$0xf]
  %v1854 = vld [vmem:[%s10 + $0xe8] sm:$0xf]
  %v1855 = vld [vmem:[%s10 + $0xec] sm:$0xf]
  %v1856 = vld [vmem:[%s10 + $0xf0] sm:$0xf]
  %v1857 = vld [vmem:[%s10 + $0xf4] sm:$0xf]
  %v1858 = vld [vmem:[%s10 + $0xf8] sm:$0xf]
  %v1859 = vld [vmem:[%s10 + $0xfc] sm:$0xf]
  %v1924 = vunpack.c.l.b16 %v1796
  %v1925 = vunpack.c.l.b16 %v1797
  %v1926 = vunpack.c.l.b16 %v1798
  %v1927 = vunpack.c.l.b16 %v1799
  %v1928 = vunpack.c.l.b16 %v1800
  %v1929 = vunpack.c.l.b16 %v1801
  %v1930 = vunpack.c.l.b16 %v1802
  %v1931 = vunpack.c.l.b16 %v1803
  %v1932 = vunpack.c.l.b16 %v1804
  %v1933 = vunpack.c.l.b16 %v1805
  %v1934 = vunpack.c.l.b16 %v1806
  %v1935 = vunpack.c.l.b16 %v1807
  %v1936 = vunpack.c.l.b16 %v1808
  %v1937 = vunpack.c.l.b16 %v1809
  %v1938 = vunpack.c.l.b16 %v1810
  %v1939 = vunpack.c.l.b16 %v1811
  %v1940 = vunpack.c.l.b16 %v1812
  %v1941 = vunpack.c.l.b16 %v1813
  %v1942 = vunpack.c.l.b16 %v1814
  %v1943 = vunpack.c.l.b16 %v1815
  %v1944 = vunpack.c.l.b16 %v1816
  %v1945 = vunpack.c.l.b16 %v1817
  %v1946 = vunpack.c.l.b16 %v1818
  %v1947 = vunpack.c.l.b16 %v1819
  %v1948 = vunpack.c.l.b16 %v1820
  %v1949 = vunpack.c.l.b16 %v1821
  %v1950 = vunpack.c.l.b16 %v1822
  %v1951 = vunpack.c.l.b16 %v1823
  %v1952 = vunpack.c.l.b16 %v1824
  %v1953 = vunpack.c.l.b16 %v1825
  %v1954 = vunpack.c.l.b16 %v1826
  %v1955 = vunpack.c.l.b16 %v1827
  %v1956 = vunpack.c.l.b16 %v1828
  %v1957 = vunpack.c.l.b16 %v1829
  %v1958 = vunpack.c.l.b16 %v1830
  %v1959 = vunpack.c.l.b16 %v1831
  %v1960 = vunpack.c.l.b16 %v1832
  %v1961 = vunpack.c.l.b16 %v1833
  %v1962 = vunpack.c.l.b16 %v1834
  %v1963 = vunpack.c.l.b16 %v1835
  %v1964 = vunpack.c.l.b16 %v1836
  %v1965 = vunpack.c.l.b16 %v1837
  %v1966 = vunpack.c.l.b16 %v1838
  %v1967 = vunpack.c.l.b16 %v1839
  %v1968 = vunpack.c.l.b16 %v1840
  %v1969 = vunpack.c.l.b16 %v1841
  %v1970 = vunpack.c.l.b16 %v1842
  %v1971 = vunpack.c.l.b16 %v1843
  %v1972 = vunpack.c.l.b16 %v1844
  %v1973 = vunpack.c.l.b16 %v1845
  %v1974 = vunpack.c.l.b16 %v1846
  %v1975 = vunpack.c.l.b16 %v1847
  %v1976 = vunpack.c.l.b16 %v1848
  %v1977 = vunpack.c.l.b16 %v1849
  %v1978 = vunpack.c.l.b16 %v1850
  %v1979 = vunpack.c.l.b16 %v1851
  %v1980 = vunpack.c.l.b16 %v1852
  %v1981 = vunpack.c.l.b16 %v1853
  %v1982 = vunpack.c.l.b16 %v1854
  %v1983 = vunpack.c.l.b16 %v1855
  %v1984 = vunpack.c.l.b16 %v1856
  %v1985 = vunpack.c.l.b16 %v1857
  %v1986 = vunpack.c.l.b16 %v1858
  %v1987 = vunpack.c.l.b16 %v1859
  %v1988 = vpack.c.b16 %v1925, %v1924
  %v1989 = vpack.c.b16 %v1927, %v1926
  %v1990 = vpack.c.b16 %v1929, %v1928
  %v1991 = vpack.c.b16 %v1931, %v1930
  %v1992 = vpack.c.b16 %v1933, %v1932
  %v1993 = vpack.c.b16 %v1935, %v1934
  %v1994 = vpack.c.b16 %v1937, %v1936
  %v1995 = vpack.c.b16 %v1939, %v1938
  %v1996 = vpack.c.b16 %v1941, %v1940
  %v1997 = vpack.c.b16 %v1943, %v1942
  %v1998 = vpack.c.b16 %v1945, %v1944
  %v1999 = vpack.c.b16 %v1947, %v1946
  %v2000 = vpack.c.b16 %v1949, %v1948
  %v2001 = vpack.c.b16 %v1951, %v1950
  %v2002 = vpack.c.b16 %v1953, %v1952
  %v2003 = vpack.c.b16 %v1955, %v1954
  %v2004 = vpack.c.b16 %v1957, %v1956
  %v2005 = vpack.c.b16 %v1959, %v1958
  %v2006 = vpack.c.b16 %v1961, %v1960
  %v2007 = vpack.c.b16 %v1963, %v1962
  %v2008 = vpack.c.b16 %v1965, %v1964
  %v2009 = vpack.c.b16 %v1967, %v1966
  %v2010 = vpack.c.b16 %v1969, %v1968
  %v2011 = vpack.c.b16 %v1971, %v1970
  %v2012 = vpack.c.b16 %v1973, %v1972
  %v2013 = vpack.c.b16 %v1975, %v1974
  %v2014 = vpack.c.b16 %v1977, %v1976
  %v2015 = vpack.c.b16 %v1979, %v1978
  %v2016 = vpack.c.b16 %v1981, %v1980
  %v2017 = vpack.c.b16 %v1983, %v1982
  %v2018 = vpack.c.b16 %v1985, %v1984
  %v2019 = vpack.c.b16 %v1987, %v1986
  %2052 = vmatprep.subr.bf16.mxu0 0
  %2053 = vmatpush1.bf16.msra.mxu0 %v1995
  %2054 = vmatprep.subr.bf16.mxu0 0
  %2055 = vmatpush1.bf16.msra.mxu0 %v1994
  %2056 = vmatprep.subr.bf16.mxu0 0
  %2057 = vmatpush1.bf16.msra.mxu0 %v1993
  %2058 = vmatprep.subr.bf16.mxu0 0
  %2059 = vmatpush1.bf16.msra.mxu0 %v1992
  %2060 = vmatprep.subr.bf16.mxu0 0
  %2061 = vmatpush1.bf16.msra.mxu0 %v1991
  %2062 = vmatprep.subr.bf16.mxu0 0
  %2063 = vmatpush1.bf16.msra.mxu0 %v1990
  %2064 = vmatprep.subr.bf16.mxu0 0
  %2065 = vmatpush1.bf16.msra.mxu0 %v1989
  %2066 = vmatprep.subr.bf16.mxu0 0
  %2067 = vmatpush1.bf16.msra.mxu0 %v1988
  %2068 = vmatprep.subr.bf16.mxu0 0
  %2069 = vmatpush2.bf16.msra.mxu0 %v2003
  %2070 = vmatprep.subr.bf16.mxu0 0
  %2071 = vmatpush2.bf16.msra.mxu0 %v2002
  %2072 = vmatprep.subr.bf16.mxu0 0
  %2073 = vmatpush2.bf16.msra.mxu0 %v2001
  %2074 = vmatprep.subr.bf16.mxu0 0
  %2075 = vmatpush2.bf16.msra.mxu0 %v2000
  %2076 = vmatprep.subr.bf16.mxu0 0
  %2077 = vmatpush2.bf16.msra.mxu0 %v1999
  %2078 = vmatprep.subr.bf16.mxu0 0
  %2079 = vmatpush2.bf16.msra.mxu0 %v1998
  %2080 = vmatprep.subr.bf16.mxu0 0
  %2081 = vmatpush2.bf16.msra.mxu0 %v1997
  %2082 = vmatprep.subr.bf16.mxu0 0
  %2083 = vmatpush2.bf16.msra.mxu0 %v1996
  %2084 = vmatprep.mubr.bf16.mxu0 %v1789
  %2085 = vmatmul.mubr.bf16.gmra.mxu0 %v1788
  %v2086 = vpop.f32.mrf.mxu0
  %v2087 = vadd.f32 0.0, %v2086
  %v2088 = vpop.f32.mrf.mxu0
  %v2089 = vpop.f32.mrf.mxu0
  %v2090 = vadd.f32 0.0, %v2089
  %v2091 = vpop.f32.mrf.mxu0
  %2092 = vmatprep.mubr.bf16.mxu0 %v1793
  %2093 = vmatmul.mubr.bf16.gmra.mxu0 %v1792
  %v2094 = vpop.f32.mrf.mxu0
  %v2095 = vadd.f32 0.0, %v2094
  %v2096 = vpop.f32.mrf.mxu0
  %v2097 = vpop.f32.mrf.mxu0
  %v2098 = vadd.f32 0.0, %v2097
  %v2099 = vpop.f32.mrf.mxu0
  %2100 = vdwg.mxu0
  %2101 = vmatprep.subr.bf16.mxu0 0
  %2102 = vmatpush1.bf16.msra.mxu0 %v2011
  %2103 = vmatprep.subr.bf16.mxu0 0
  %2104 = vmatpush1.bf16.msra.mxu0 %v2010
  %2105 = vmatprep.subr.bf16.mxu0 0
  %2106 = vmatpush1.bf16.msra.mxu0 %v2009
  %2107 = vmatprep.subr.bf16.mxu0 0
  %2108 = vmatpush1.bf16.msra.mxu0 %v2008
  %2109 = vmatprep.subr.bf16.mxu0 0
  %2110 = vmatpush1.bf16.msra.mxu0 %v2007
  %2111 = vmatprep.subr.bf16.mxu0 0
  %2112 = vmatpush1.bf16.msra.mxu0 %v2006
  %2113 = vmatprep.subr.bf16.mxu0 0
  %2114 = vmatpush1.bf16.msra.mxu0 %v2005
  %2115 = vmatprep.subr.bf16.mxu0 0
  %2116 = vmatpush1.bf16.msra.mxu0 %v2004
  %2117 = vmatprep.subr.bf16.mxu0 0
  %2118 = vmatpush2.bf16.msra.mxu0 %v2019
  %2119 = vmatprep.subr.bf16.mxu0 0
  %2120 = vmatpush2.bf16.msra.mxu0 %v2018
  %2121 = vmatprep.subr.bf16.mxu0 0
  %2122 = vmatpush2.bf16.msra.mxu0 %v2017
  %2123 = vmatprep.subr.bf16.mxu0 0
  %2124 = vmatpush2.bf16.msra.mxu0 %v2016
  %2125 = vmatprep.subr.bf16.mxu0 0
  %2126 = vmatpush2.bf16.msra.mxu0 %v2015
  %2127 = vmatprep.subr.bf16.mxu0 0
  %2128 = vmatpush2.bf16.msra.mxu0 %v2014
  %2129 = vmatprep.subr.bf16.mxu0 0
  %2130 = vmatpush2.bf16.msra.mxu0 %v2013
  %2131 = vmatprep.subr.bf16.mxu0 0
  %2132 = vmatpush2.bf16.msra.mxu0 %v2012
  %2133 = vmatprep.mubr.bf16.mxu0 %v1791
  %2134 = vmatmul.mubr.bf16.gmra.mxu0 %v1790
  %v2135 = vpop.f32.mrf.mxu0
  %v2136 = vadd.f32 %v2087, %v2135
  %v2137 = vpop.f32.mrf.mxu0
  %v2138 = vpop.f32.mrf.mxu0
  %v2139 = vadd.f32 %v2090, %v2138
  %v2140 = vpop.f32.mrf.mxu0
  %2141 = vmatprep.mubr.bf16.mxu0 %v1795
  %2142 = vmatmul.mubr.bf16.gmra.mxu0 %v1794
  %v2143 = vpop.f32.mrf.mxu0
  %v2144 = vadd.f32 %v2095, %v2143
  %v2145 = vpop.f32.mrf.mxu0
  %v2146 = vpop.f32.mrf.mxu0
  %v2147 = vadd.f32 %v2098, %v2146
  %v2148 = vpop.f32.mrf.mxu0
  %2149 = vdwg.mxu0
  %v2150 = vld [vmem:[%s8] sm:$0xf]
  %v2151 = vld [vmem:[%s8 + $0x4] sm:$0xf]
  %v2152 = vld [vmem:[%s8 + $0x8] sm:$0xf]
  %v2153 = vpack.c.bf16 %v2139, %v2136
  %v2154 = vpack.c.bf16 %v2147, %v2144
  %v2155 = vld [vmem:[%s9] sm:$0xff]
  %v2156 = vld [vmem:[%s9 + $0x8] sm:$0xff]
  %v2157 = vld [vmem:[%s9 + $0x10] sm:$0xff]
  %2159 = vset.pattern.permute.xlu0 0
  %2160 = vperm.xlu0 %2159, %v2155
  %v2161 = vpop.permute.xlu0 %2160
  %2164 = vset.pattern.permute.xlu0 0
  %2165 = vperm.xlu0 %2164, %v2156
  %v2166 = vpop.permute.xlu0 %2165
  %2169 = vset.pattern.permute.xlu0 0
  %2170 = vperm.xlu0 %2169, %v2157
  %v2171 = vpop.permute.xlu0 %2170
  %v2176 = vunpack.c.l.b16 %v2150
  %v2177 = vunpack.c.l.b16 %v2151
  %v2178 = vunpack.c.l.b16 %v2152
  %v2179 = vpack.c.b16 %v2177, %v2176
  %v2180 = vpack.c.b16 %v2178, %v2178
  %vm2181 = vcmask 261120
  %v2183 = vsel %vm2181, %v2179, 0
  %v2186 = vsel %vm2181, %v2180, 0
  %2188 = vmatprep.subr.bf16.mxu0 0
  %2189 = vmatpush1.bf16.msra.mxu0 0
  %2190 = vmatprep.subr.bf16.mxu0 0
  %2191 = vmatpush1.bf16.msra.mxu0 0
  %2192 = vmatprep.subr.bf16.mxu0 0
  %2193 = vmatpush1.bf16.msra.mxu0 0
  %2194 = vmatprep.subr.bf16.mxu0 0
  %2195 = vmatpush1.bf16.msra.mxu0 0
  %2196 = vmatprep.subr.bf16.mxu0 0
  %2197 = vmatpush1.bf16.msra.mxu0 0
  %2198 = vmatprep.subr.bf16.mxu0 0
  %2199 = vmatpush1.bf16.msra.mxu0 0
  %2200 = vmatprep.subr.bf16.mxu0 0
  %2201 = vmatpush1.bf16.msra.mxu0 %v2154
  %2202 = vmatprep.subr.bf16.mxu0 0
  %2203 = vmatpush1.bf16.msra.mxu0 %v2153
  %2204 = vmatprep.subr.bf16.mxu0 0
  %2205 = vmatpush2.bf16.msra.mxu0 0
  %2206 = vmatprep.subr.bf16.mxu0 0
  %2207 = vmatpush2.bf16.msra.mxu0 0
  %2208 = vmatprep.subr.bf16.mxu0 0
  %2209 = vmatpush2.bf16.msra.mxu0 0
  %2210 = vmatprep.subr.bf16.mxu0 0
  %2211 = vmatpush2.bf16.msra.mxu0 0
  %2212 = vmatprep.subr.bf16.mxu0 0
  %2213 = vmatpush2.bf16.msra.mxu0 0
  %2214 = vmatprep.subr.bf16.mxu0 0
  %2215 = vmatpush2.bf16.msra.mxu0 0
  %2216 = vmatprep.subr.bf16.mxu0 0
  %2217 = vmatpush2.bf16.msra.mxu0 0
  %2218 = vmatprep.subr.bf16.mxu0 0
  %2219 = vmatpush2.bf16.msra.mxu0 0
  %2220 = vmatprep.mubr.bf16.mxu0 0
  %2221 = vmatmul.mubr.bf16.gmra.mxu0 %v2183
  %v2222 = vpop.f32.mrf.mxu0
  %v2223 = vadd.f32 %v2161, %v2222
  %v2224 = vpop.f32.mrf.mxu0
  %v2225 = vpop.f32.mrf.mxu0
  %v2226 = vadd.f32 %v2166, %v2225
  %v2227 = vpop.f32.mrf.mxu0
  %2228 = vmatprep.mubr.bf16.mxu0 0
  %2229 = vmatmul.mubr.bf16.gmra.mxu0 %v2186
  %v2230 = vpop.f32.mrf.mxu0
  %v2231 = vadd.f32 %v2171, %v2230
  %v2232 = vpop.f32.mrf.mxu0
  %v2233 = vpop.f32.mrf.mxu0
  %v2234 = vpop.f32.mrf.mxu0
  %2235 = vdwg.mxu0
  %v2236 = vld [vmem:[%s11] sm:$0xf]
  %v2237 = vld [vmem:[%s11 + $0x4] sm:$0xf]
  %v2238 = vld [vmem:[%s11 + $0x8] sm:$0xf]
  %v2239 = vld [vmem:[%s11 + $0xc] sm:$0xf]
  %v2240 = vld [vmem:[%s11 + $0x10] sm:$0xf]
  %v2241 = vld [vmem:[%s11 + $0x14] sm:$0xf]
  %v2242 = vpack.c.bf16 %v2226, %v2223
  %v2243 = vpack.c.bf16 %v2231, %v2231
  %v2244 = vld [vmem:[%s12] sm:$0xff]
  %v2245 = vld [vmem:[%s12 + $0x8] sm:$0xff]
  %v2246 = vld [vmem:[%s12 + $0x10] sm:$0xff]
  %v2247 = vld [vmem:[%s12 + $0x18] sm:$0xff]
  %v2248 = vld [vmem:[%s12 + $0x20] sm:$0xff]
  %v2249 = vld [vmem:[%s12 + $0x28] sm:$0xff]
  %2251 = vset.pattern.permute.xlu0 0
  %2252 = vperm.xlu0 %2251, %v2244
  %v2253 = vpop.permute.xlu0 %2252
  %2256 = vset.pattern.permute.xlu0 0
  %2257 = vperm.xlu0 %2256, %v2245
  %v2258 = vpop.permute.xlu0 %2257
  %2261 = vset.pattern.permute.xlu0 0
  %2262 = vperm.xlu0 %2261, %v2246
  %v2263 = vpop.permute.xlu0 %2262
  %2266 = vset.pattern.permute.xlu0 0
  %2267 = vperm.xlu0 %2266, %v2247
  %v2268 = vpop.permute.xlu0 %2267
  %2271 = vset.pattern.permute.xlu0 0
  %2272 = vperm.xlu0 %2271, %v2248
  %v2273 = vpop.permute.xlu0 %2272
  %2276 = vset.pattern.permute.xlu0 0
  %2277 = vperm.xlu0 %2276, %v2249
  %v2278 = vpop.permute.xlu0 %2277
  %v2286 = vunpack.c.l.b16 %v2236
  %v2287 = vunpack.c.l.b16 %v2237
  %v2288 = vunpack.c.l.b16 %v2238
  %v2289 = vunpack.c.l.b16 %v2239
  %v2290 = vunpack.c.l.b16 %v2240
  %v2291 = vunpack.c.l.b16 %v2241
  %v2292 = vpack.c.b16 %v2287, %v2286
  %v2293 = vpack.c.b16 %v2289, %v2288
  %v2294 = vpack.c.b16 %v2291, %v2290
  %vm2295 = vcmask 195584
  %v2297 = vsel %vm2295, %v2292, 0
  %v2300 = vsel %vm2295, %v2293, 0
  %v2303 = vsel %vm2295, %v2294, 0
  %vm2305 = vcmask 1043456
  %v2307 = vsel %vm2305, %v2243, 0
  %2309 = vmatprep.subr.bf16.mxu0 0
  %2310 = vmatpush1.bf16.msra.mxu0 0
  %2311 = vmatprep.subr.bf16.mxu0 0
  %2312 = vmatpush1.bf16.msra.mxu0 0
  %2313 = vmatprep.subr.bf16.mxu0 0
  %2314 = vmatpush1.bf16.msra.mxu0 0
  %2315 = vmatprep.subr.bf16.mxu0 0
  %2316 = vmatpush1.bf16.msra.mxu0 0
  %2317 = vmatprep.subr.bf16.mxu0 0
  %2318 = vmatpush1.bf16.msra.mxu0 0
  %2319 = vmatprep.subr.bf16.mxu0 0
  %2320 = vmatpush1.bf16.msra.mxu0 0
  %2321 = vmatprep.subr.bf16.mxu0 0
  %2322 = vmatpush1.bf16.msra.mxu0 %v2307
  %2323 = vmatprep.subr.bf16.mxu0 0
  %2324 = vmatpush1.bf16.msra.mxu0 %v2242
  %2325 = vmatprep.subr.bf16.mxu0 0
  %2326 = vmatpush2.bf16.msra.mxu0 0
  %2327 = vmatprep.subr.bf16.mxu0 0
  %2328 = vmatpush2.bf16.msra.mxu0 0
  %2329 = vmatprep.subr.bf16.mxu0 0
  %2330 = vmatpush2.bf16.msra.mxu0 0
  %2331 = vmatprep.subr.bf16.mxu0 0
  %2332 = vmatpush2.bf16.msra.mxu0 0
  %2333 = vmatprep.subr.bf16.mxu0 0
  %2334 = vmatpush2.bf16.msra.mxu0 0
  %2335 = vmatprep.subr.bf16.mxu0 0
  %2336 = vmatpush2.bf16.msra.mxu0 0
  %2337 = vmatprep.subr.bf16.mxu0 0
  %2338 = vmatpush2.bf16.msra.mxu0 0
  %2339 = vmatprep.subr.bf16.mxu0 0
  %2340 = vmatpush2.bf16.msra.mxu0 0
  %2341 = vmatprep.mubr.bf16.mxu0 0
  %2342 = vmatmul.mubr.bf16.gmra.mxu0 %v2297
  %v2343 = vpop.f32.mrf.mxu0
  %v2344 = vadd.f32 %v2253, %v2343
  %v2345 = vpop.f32.mrf.mxu0
  %v2346 = vpop.f32.mrf.mxu0
  %v2347 = vadd.f32 %v2258, %v2346
  %v2348 = vpop.f32.mrf.mxu0
  %2349 = vmatprep.mubr.bf16.mxu0 0
  %2350 = vmatmul.mubr.bf16.gmra.mxu0 %v2300
  %v2351 = vpop.f32.mrf.mxu0
  %v2352 = vadd.f32 %v2263, %v2351
  %v2353 = vpop.f32.mrf.mxu0
  %v2354 = vpop.f32.mrf.mxu0
  %v2355 = vadd.f32 %v2268, %v2354
  %v2356 = vpop.f32.mrf.mxu0
  %2357 = vmatprep.mubr.bf16.mxu0 0
  %2358 = vmatmul.mubr.bf16.gmra.mxu0 %v2303
  %v2359 = vpop.f32.mrf.mxu0
  %v2360 = vadd.f32 %v2273, %v2359
  %v2361 = vpop.f32.mrf.mxu0
  %v2362 = vpop.f32.mrf.mxu0
  %v2363 = vadd.f32 %v2278, %v2362
  %v2364 = vpop.f32.mrf.mxu0
  %2365 = vdwg.mxu0
  %v2366 = vmax.f32 %v2344, 0.0
  %v2367 = vmax.f32 %v2347, 0.0
  %v2368 = vmax.f32 %v2352, 0.0
  %v2369 = vmax.f32 %v2355, 0.0
  %v2370 = vmax.f32 %v2360, 0.0
  %v2371 = vmax.f32 %v2363, 0.0
  %v2372 = vmin.f32 %v2366, 6.0
  %v2373 = vmin.f32 %v2367, 6.0
  %v2374 = vmin.f32 %v2368, 6.0
  %v2375 = vmin.f32 %v2369, 6.0
  %v2376 = vmin.f32 %v2370, 6.0
  %v2377 = vmin.f32 %v2371, 6.0
  %2378 = vrot.lane.b32.xlu0 %v2372, 9
  %v2379 = vpop.permute.xlu0 %2378
  %2380 = vrot.lane.b32.xlu0 %v2373, 9
  %v2381 = vpop.permute.xlu0 %2380
  %2382 = vrot.lane.b32.xlu0 %v2374, 9
  %v2383 = vpop.permute.xlu0 %2382
  %2384 = vrot.lane.b32.xlu0 %v2375, 9
  %v2385 = vpop.permute.xlu0 %2384
  %2386 = vrot.lane.b32.xlu0 %v2376, 9
  %v2387 = vpop.permute.xlu0 %2386
  %2388 = vrot.lane.b32.xlu0 %v2377, 9
  %v2389 = vpop.permute.xlu0 %2388
  %v2390 = vld [vmem:[%s13] sm:$0xff]
  %v2391 = vld [vmem:[%s13 + $0x8] sm:$0xff]
  %v2392 = vld [vmem:[%s13 + $0x10] sm:$0xff]
  %v2393 = vld [vmem:[%s13 + $0x18] sm:$0xff]
  %v2394 = vld [vmem:[%s13 + $0x20] sm:$0xff]
  %v2395 = vld [vmem:[%s13 + $0x28] sm:$0xff]
  %2397 = vset.pattern.permute.xlu0 0
  %2398 = vperm.xlu0 %2397, %v2390
  %v2399 = vpop.permute.xlu0 %2398
  %2402 = vset.pattern.permute.xlu0 0
  %2403 = vperm.xlu0 %2402, %v2391
  %v2404 = vpop.permute.xlu0 %2403
  %2407 = vset.pattern.permute.xlu0 0
  %2408 = vperm.xlu0 %2407, %v2392
  %v2409 = vpop.permute.xlu0 %2408
  %2412 = vset.pattern.permute.xlu0 0
  %2413 = vperm.xlu0 %2412, %v2393
  %v2414 = vpop.permute.xlu0 %2413
  %2417 = vset.pattern.permute.xlu0 0
  %2418 = vperm.xlu0 %2417, %v2394
  %v2419 = vpop.permute.xlu0 %2418
  %2422 = vset.pattern.permute.xlu0 0
  %2423 = vperm.xlu0 %2422, %v2395
  %v2424 = vpop.permute.xlu0 %2423
  %v2426 = vmul.f32 %v2379, %v2399
  %v2427 = vmul.f32 %v2381, %v2404
  %v2428 = vmul.f32 %v2383, %v2409
  %v2429 = vmul.f32 %v2385, %v2414
  %v2430 = vmul.f32 %v2387, %v2419
  %v2431 = vmul.f32 %v2389, %v2424
  %v2432 = vld [vmem:[%s15] sm:$0x1]
  %v2434 = vlaneseq
  %v2435 = vshrl.u32 %v2434, 7
  %v2436 = vsub.s32 0, %v2435
  %v2437 = vrot.slane %v2432, %v2436
  %v2439 = vmul.f32 %v2426, %v2437
  %v2440 = vmul.f32 %v2427, %v2437
  %v2441 = vmul.f32 %v2428, %v2437
  %v2442 = vmul.f32 %v2429, %v2437
  %v2443 = vmul.f32 %v2430, %v2437
  %v2444 = vmul.f32 %v2431, %v2437
  %v2445 = vadd.f32 %v2439, 0.0
  %v2446 = vadd.f32 %v2440, 0.0
  %v2447 = vadd.f32 %v2441, 0.0
  %v2448 = vadd.f32 %v2442, 0.0
  %v2449 = vadd.f32 %v2443, 0.0
  %v2450 = vadd.f32 %v2444, 0.0
  %2451 = vrot.lane.b32.xlu0 %v2372, 8
  %v2452 = vpop.permute.xlu0 %2451
  %2453 = vrot.lane.b32.xlu0 %v2373, 8
  %v2454 = vpop.permute.xlu0 %2453
  %2455 = vrot.lane.b32.xlu0 %v2374, 8
  %v2456 = vpop.permute.xlu0 %2455
  %2457 = vrot.lane.b32.xlu0 %v2375, 8
  %v2458 = vpop.permute.xlu0 %2457
  %2459 = vrot.lane.b32.xlu0 %v2376, 8
  %v2460 = vpop.permute.xlu0 %2459
  %2461 = vrot.lane.b32.xlu0 %v2377, 8
  %v2462 = vpop.permute.xlu0 %2461
  %s2463 = scalar_lea.vmem %s13, 48
  %v2464 = vld [vmem:[%s2463] sm:$0xff]
  %v2465 = vld [vmem:[%s2463 + $0x8] sm:$0xff]
  %v2466 = vld [vmem:[%s2463 + $0x10] sm:$0xff]
  %v2467 = vld [vmem:[%s2463 + $0x18] sm:$0xff]
  %v2468 = vld [vmem:[%s2463 + $0x20] sm:$0xff]
  %v2469 = vld [vmem:[%s2463 + $0x28] sm:$0xff]
  %2471 = vset.pattern.permute.xlu0 0
  %2472 = vperm.xlu0 %2471, %v2464
  %v2473 = vpop.permute.xlu0 %2472
  %2476 = vset.pattern.permute.xlu0 0
  %2477 = vperm.xlu0 %2476, %v2465
  %v2478 = vpop.permute.xlu0 %2477
  %2481 = vset.pattern.permute.xlu0 0
  %2482 = vperm.xlu0 %2481, %v2466
  %v2483 = vpop.permute.xlu0 %2482
  %2486 = vset.pattern.permute.xlu0 0
  %2487 = vperm.xlu0 %2486, %v2467
  %v2488 = vpop.permute.xlu0 %2487
  %2491 = vset.pattern.permute.xlu0 0
  %2492 = vperm.xlu0 %2491, %v2468
  %v2493 = vpop.permute.xlu0 %2492
  %2496 = vset.pattern.permute.xlu0 0
  %2497 = vperm.xlu0 %2496, %v2469
  %v2498 = vpop.permute.xlu0 %2497
  %v2500 = vmul.f32 %v2452, %v2473
  %v2501 = vmul.f32 %v2454, %v2478
  %v2502 = vmul.f32 %v2456, %v2483
  %v2503 = vmul.f32 %v2458, %v2488
  %v2504 = vmul.f32 %v2460, %v2493
  %v2505 = vmul.f32 %v2462, %v2498
  %s2506 = scalar_lea.vmem %s15, 1
  %v2507 = vld [vmem:[%s2506] sm:$0x1]
  %v2509 = vlaneseq
  %v2510 = vshrl.u32 %v2509, 7
  %v2511 = vsub.s32 0, %v2510
  %v2512 = vrot.slane %v2507, %v2511
  %v2514 = vmul.f32 %v2500, %v2512
  %v2515 = vmul.f32 %v2501, %v2512
  %v2516 = vmul.f32 %v2502, %v2512
  %v2517 = vmul.f32 %v2503, %v2512
  %v2518 = vmul.f32 %v2504, %v2512
  %v2519 = vmul.f32 %v2505, %v2512
  %v2520 = vadd.f32 %v2445, %v2514
  %v2521 = vadd.f32 %v2446, %v2515
  %v2522 = vadd.f32 %v2447, %v2516
  %v2523 = vadd.f32 %v2448, %v2517
  %v2524 = vadd.f32 %v2449, %v2518
  %v2525 = vadd.f32 %v2450, %v2519
  %2526 = vrot.lane.b32.xlu0 %v2372, 7
  %v2527 = vpop.permute.xlu0 %2526
  %2528 = vrot.lane.b32.xlu0 %v2373, 7
  %v2529 = vpop.permute.xlu0 %2528
  %2530 = vrot.lane.b32.xlu0 %v2374, 7
  %v2531 = vpop.permute.xlu0 %2530
  %2532 = vrot.lane.b32.xlu0 %v2375, 7
  %v2533 = vpop.permute.xlu0 %2532
  %2534 = vrot.lane.b32.xlu0 %v2376, 7
  %v2535 = vpop.permute.xlu0 %2534
  %2536 = vrot.lane.b32.xlu0 %v2377, 7
  %v2537 = vpop.permute.xlu0 %2536
  %s2538 = scalar_lea.vmem %s13, 96
  %v2539 = vld [vmem:[%s2538] sm:$0xff]
  %v2540 = vld [vmem:[%s2538 + $0x8] sm:$0xff]
  %v2541 = vld [vmem:[%s2538 + $0x10] sm:$0xff]
  %v2542 = vld [vmem:[%s2538 + $0x18] sm:$0xff]
  %v2543 = vld [vmem:[%s2538 + $0x20] sm:$0xff]
  %v2544 = vld [vmem:[%s2538 + $0x28] sm:$0xff]
  %2546 = vset.pattern.permute.xlu0 0
  %2547 = vperm.xlu0 %2546, %v2539
  %v2548 = vpop.permute.xlu0 %2547
  %2551 = vset.pattern.permute.xlu0 0
  %2552 = vperm.xlu0 %2551, %v2540
  %v2553 = vpop.permute.xlu0 %2552
  %2556 = vset.pattern.permute.xlu0 0
  %2557 = vperm.xlu0 %2556, %v2541
  %v2558 = vpop.permute.xlu0 %2557
  %2561 = vset.pattern.permute.xlu0 0
  %2562 = vperm.xlu0 %2561, %v2542
  %v2563 = vpop.permute.xlu0 %2562
  %2566 = vset.pattern.permute.xlu0 0
  %2567 = vperm.xlu0 %2566, %v2543
  %v2568 = vpop.permute.xlu0 %2567
  %2571 = vset.pattern.permute.xlu0 0
  %2572 = vperm.xlu0 %2571, %v2544
  %v2573 = vpop.permute.xlu0 %2572
  %v2575 = vmul.f32 %v2527, %v2548
  %v2576 = vmul.f32 %v2529, %v2553
  %v2577 = vmul.f32 %v2531, %v2558
  %v2578 = vmul.f32 %v2533, %v2563
  %v2579 = vmul.f32 %v2535, %v2568
  %v2580 = vmul.f32 %v2537, %v2573
  %s2581 = scalar_lea.vmem %s15, 2
  %v2582 = vld [vmem:[%s2581] sm:$0x1]
  %v2584 = vlaneseq
  %v2585 = vshrl.u32 %v2584, 7
  %v2586 = vsub.s32 0, %v2585
  %v2587 = vrot.slane %v2582, %v2586
  %v2589 = vmul.f32 %v2575, %v2587
  %v2590 = vmul.f32 %v2576, %v2587
  %v2591 = vmul.f32 %v2577, %v2587
  %v2592 = vmul.f32 %v2578, %v2587
  %v2593 = vmul.f32 %v2579, %v2587
  %v2594 = vmul.f32 %v2580, %v2587
  %v2595 = vadd.f32 %v2520, %v2589
  %v2596 = vadd.f32 %v2521, %v2590
  %v2597 = vadd.f32 %v2522, %v2591
  %v2598 = vadd.f32 %v2523, %v2592
  %v2599 = vadd.f32 %v2524, %v2593
  %v2600 = vadd.f32 %v2525, %v2594
  %2601 = vrot.lane.b32.xlu0 %v2372, 1
  %v2602 = vpop.permute.xlu0 %2601
  %2603 = vrot.lane.b32.xlu0 %v2373, 1
  %v2604 = vpop.permute.xlu0 %2603
  %2605 = vrot.lane.b32.xlu0 %v2374, 1
  %v2606 = vpop.permute.xlu0 %2605
  %2607 = vrot.lane.b32.xlu0 %v2375, 1
  %v2608 = vpop.permute.xlu0 %2607
  %2609 = vrot.lane.b32.xlu0 %v2376, 1
  %v2610 = vpop.permute.xlu0 %2609
  %2611 = vrot.lane.b32.xlu0 %v2377, 1
  %v2612 = vpop.permute.xlu0 %2611
  %s2613 = scalar_lea.vmem %s13, 144
  %v2614 = vld [vmem:[%s2613] sm:$0xff]
  %v2615 = vld [vmem:[%s2613 + $0x8] sm:$0xff]
  %v2616 = vld [vmem:[%s2613 + $0x10] sm:$0xff]
  %v2617 = vld [vmem:[%s2613 + $0x18] sm:$0xff]
  %v2618 = vld [vmem:[%s2613 + $0x20] sm:$0xff]
  %v2619 = vld [vmem:[%s2613 + $0x28] sm:$0xff]
  %2621 = vset.pattern.permute.xlu0 0
  %2622 = vperm.xlu0 %2621, %v2614
  %v2623 = vpop.permute.xlu0 %2622
  %2626 = vset.pattern.permute.xlu0 0
  %2627 = vperm.xlu0 %2626, %v2615
  %v2628 = vpop.permute.xlu0 %2627
  %2631 = vset.pattern.permute.xlu0 0
  %2632 = vperm.xlu0 %2631, %v2616
  %v2633 = vpop.permute.xlu0 %2632
  %2636 = vset.pattern.permute.xlu0 0
  %2637 = vperm.xlu0 %2636, %v2617
  %v2638 = vpop.permute.xlu0 %2637
  %2641 = vset.pattern.permute.xlu0 0
  %2642 = vperm.xlu0 %2641, %v2618
  %v2643 = vpop.permute.xlu0 %2642
  %2646 = vset.pattern.permute.xlu0 0
  %2647 = vperm.xlu0 %2646, %v2619
  %v2648 = vpop.permute.xlu0 %2647
  %v2650 = vmul.f32 %v2602, %v2623
  %v2651 = vmul.f32 %v2604, %v2628
  %v2652 = vmul.f32 %v2606, %v2633
  %v2653 = vmul.f32 %v2608, %v2638
  %v2654 = vmul.f32 %v2610, %v2643
  %v2655 = vmul.f32 %v2612, %v2648
  %s2656 = scalar_lea.vmem %s15, 3
  %v2657 = vld [vmem:[%s2656] sm:$0x1]
  %v2659 = vlaneseq
  %v2660 = vshrl.u32 %v2659, 7
  %v2661 = vsub.s32 0, %v2660
  %v2662 = vrot.slane %v2657, %v2661
  %v2664 = vmul.f32 %v2650, %v2662
  %v2665 = vmul.f32 %v2651, %v2662
  %v2666 = vmul.f32 %v2652, %v2662
  %v2667 = vmul.f32 %v2653, %v2662
  %v2668 = vmul.f32 %v2654, %v2662
  %v2669 = vmul.f32 %v2655, %v2662
  %v2670 = vadd.f32 %v2595, %v2664
  %v2671 = vadd.f32 %v2596, %v2665
  %v2672 = vadd.f32 %v2597, %v2666
  %v2673 = vadd.f32 %v2598, %v2667
  %v2674 = vadd.f32 %v2599, %v2668
  %v2675 = vadd.f32 %v2600, %v2669
  %s2676 = scalar_lea.vmem %s13, 192
  %v2677 = vld [vmem:[%s2676] sm:$0xff]
  %v2678 = vld [vmem:[%s2676 + $0x8] sm:$0xff]
  %v2679 = vld [vmem:[%s2676 + $0x10] sm:$0xff]
  %v2680 = vld [vmem:[%s2676 + $0x18] sm:$0xff]
  %v2681 = vld [vmem:[%s2676 + $0x20] sm:$0xff]
  %v2682 = vld [vmem:[%s2676 + $0x28] sm:$0xff]
  %2684 = vset.pattern.permute.xlu0 0
  %2685 = vperm.xlu0 %2684, %v2677
  %v2686 = vpop.permute.xlu0 %2685
  %2689 = vset.pattern.permute.xlu0 0
  %2690 = vperm.xlu0 %2689, %v2678
  %v2691 = vpop.permute.xlu0 %2690
  %2694 = vset.pattern.permute.xlu0 0
  %2695 = vperm.xlu0 %2694, %v2679
  %v2696 = vpop.permute.xlu0 %2695
  %2699 = vset.pattern.permute.xlu0 0
  %2700 = vperm.xlu0 %2699, %v2680
  %v2701 = vpop.permute.xlu0 %2700
  %2704 = vset.pattern.permute.xlu0 0
  %2705 = vperm.xlu0 %2704, %v2681
  %v2706 = vpop.permute.xlu0 %2705
  %2709 = vset.pattern.permute.xlu0 0
  %2710 = vperm.xlu0 %2709, %v2682
  %v2711 = vpop.permute.xlu0 %2710
  %v2713 = vmul.f32 %v2372, %v2686
  %v2714 = vmul.f32 %v2373, %v2691
  %v2715 = vmul.f32 %v2374, %v2696
  %v2716 = vmul.f32 %v2375, %v2701
  %v2717 = vmul.f32 %v2376, %v2706
  %v2718 = vmul.f32 %v2377, %v2711
  %s2719 = scalar_lea.vmem %s15, 4
  %v2720 = vld [vmem:[%s2719] sm:$0x1]
  %v2722 = vlaneseq
  %v2723 = vshrl.u32 %v2722, 7
  %v2724 = vsub.s32 0, %v2723
  %v2725 = vrot.slane %v2720, %v2724
  %v2727 = vmul.f32 %v2713, %v2725
  %v2728 = vmul.f32 %v2714, %v2725
  %v2729 = vmul.f32 %v2715, %v2725
  %v2730 = vmul.f32 %v2716, %v2725
  %v2731 = vmul.f32 %v2717, %v2725
  %v2732 = vmul.f32 %v2718, %v2725
  %v2733 = vadd.f32 %v2670, %v2727
  %v2734 = vadd.f32 %v2671, %v2728
  %v2735 = vadd.f32 %v2672, %v2729
  %v2736 = vadd.f32 %v2673, %v2730
  %v2737 = vadd.f32 %v2674, %v2731
  %v2738 = vadd.f32 %v2675, %v2732
  %2739 = vrot.lane.b32.xlu0 %v2372, 127
  %v2740 = vpop.permute.xlu0 %2739
  %2741 = vrot.lane.b32.xlu0 %v2373, 127
  %v2742 = vpop.permute.xlu0 %2741
  %2743 = vrot.lane.b32.xlu0 %v2374, 127
  %v2744 = vpop.permute.xlu0 %2743
  %2745 = vrot.lane.b32.xlu0 %v2375, 127
  %v2746 = vpop.permute.xlu0 %2745
  %2747 = vrot.lane.b32.xlu0 %v2376, 127
  %v2748 = vpop.permute.xlu0 %2747
  %2749 = vrot.lane.b32.xlu0 %v2377, 127
  %v2750 = vpop.permute.xlu0 %2749
  %s2751 = scalar_lea.vmem %s13, 240
  %v2752 = vld [vmem:[%s2751] sm:$0xff]
  %v2753 = vld [vmem:[%s2751 + $0x8] sm:$0xff]
  %v2754 = vld [vmem:[%s2751 + $0x10] sm:$0xff]
  %v2755 = vld [vmem:[%s2751 + $0x18] sm:$0xff]
  %v2756 = vld [vmem:[%s2751 + $0x20] sm:$0xff]
  %v2757 = vld [vmem:[%s2751 + $0x28] sm:$0xff]
  %2759 = vset.pattern.permute.xlu0 0
  %2760 = vperm.xlu0 %2759, %v2752
  %v2761 = vpop.permute.xlu0 %2760
  %2764 = vset.pattern.permute.xlu0 0
  %2765 = vperm.xlu0 %2764, %v2753
  %v2766 = vpop.permute.xlu0 %2765
  %2769 = vset.pattern.permute.xlu0 0
  %2770 = vperm.xlu0 %2769, %v2754
  %v2771 = vpop.permute.xlu0 %2770
  %2774 = vset.pattern.permute.xlu0 0
  %2775 = vperm.xlu0 %2774, %v2755
  %v2776 = vpop.permute.xlu0 %2775
  %2779 = vset.pattern.permute.xlu0 0
  %2780 = vperm.xlu0 %2779, %v2756
  %v2781 = vpop.permute.xlu0 %2780
  %2784 = vset.pattern.permute.xlu0 0
  %2785 = vperm.xlu0 %2784, %v2757
  %v2786 = vpop.permute.xlu0 %2785
  %v2788 = vmul.f32 %v2740, %v2761
  %v2789 = vmul.f32 %v2742, %v2766
  %v2790 = vmul.f32 %v2744, %v2771
  %v2791 = vmul.f32 %v2746, %v2776
  %v2792 = vmul.f32 %v2748, %v2781
  %v2793 = vmul.f32 %v2750, %v2786
  %s2794 = scalar_lea.vmem %s15, 5
  %v2795 = vld [vmem:[%s2794] sm:$0x1]
  %v2797 = vlaneseq
  %v2798 = vshrl.u32 %v2797, 7
  %v2799 = vsub.s32 0, %v2798
  %v2800 = vrot.slane %v2795, %v2799
  %v2802 = vmul.f32 %v2788, %v2800
  %v2803 = vmul.f32 %v2789, %v2800
  %v2804 = vmul.f32 %v2790, %v2800
  %v2805 = vmul.f32 %v2791, %v2800
  %v2806 = vmul.f32 %v2792, %v2800
  %v2807 = vmul.f32 %v2793, %v2800
  %v2808 = vadd.f32 %v2733, %v2802
  %v2809 = vadd.f32 %v2734, %v2803
  %v2810 = vadd.f32 %v2735, %v2804
  %v2811 = vadd.f32 %v2736, %v2805
  %v2812 = vadd.f32 %v2737, %v2806
  %v2813 = vadd.f32 %v2738, %v2807
  %2814 = vrot.lane.b32.xlu0 %v2372, 121
  %v2815 = vpop.permute.xlu0 %2814
  %2816 = vrot.lane.b32.xlu0 %v2373, 121
  %v2817 = vpop.permute.xlu0 %2816
  %2818 = vrot.lane.b32.xlu0 %v2374, 121
  %v2819 = vpop.permute.xlu0 %2818
  %2820 = vrot.lane.b32.xlu0 %v2375, 121
  %v2821 = vpop.permute.xlu0 %2820
  %2822 = vrot.lane.b32.xlu0 %v2376, 121
  %v2823 = vpop.permute.xlu0 %2822
  %2824 = vrot.lane.b32.xlu0 %v2377, 121
  %v2825 = vpop.permute.xlu0 %2824
  %s2826 = scalar_lea.vmem %s13, 288
  %v2827 = vld [vmem:[%s2826] sm:$0xff]
  %v2828 = vld [vmem:[%s2826 + $0x8] sm:$0xff]
  %v2829 = vld [vmem:[%s2826 + $0x10] sm:$0xff]
  %v2830 = vld [vmem:[%s2826 + $0x18] sm:$0xff]
  %v2831 = vld [vmem:[%s2826 + $0x20] sm:$0xff]
  %v2832 = vld [vmem:[%s2826 + $0x28] sm:$0xff]
  %2834 = vset.pattern.permute.xlu0 0
  %2835 = vperm.xlu0 %2834, %v2827
  %v2836 = vpop.permute.xlu0 %2835
  %2839 = vset.pattern.permute.xlu0 0
  %2840 = vperm.xlu0 %2839, %v2828
  %v2841 = vpop.permute.xlu0 %2840
  %2844 = vset.pattern.permute.xlu0 0
  %2845 = vperm.xlu0 %2844, %v2829
  %v2846 = vpop.permute.xlu0 %2845
  %2849 = vset.pattern.permute.xlu0 0
  %2850 = vperm.xlu0 %2849, %v2830
  %v2851 = vpop.permute.xlu0 %2850
  %2854 = vset.pattern.permute.xlu0 0
  %2855 = vperm.xlu0 %2854, %v2831
  %v2856 = vpop.permute.xlu0 %2855
  %2859 = vset.pattern.permute.xlu0 0
  %2860 = vperm.xlu0 %2859, %v2832
  %v2861 = vpop.permute.xlu0 %2860
  %v2863 = vmul.f32 %v2815, %v2836
  %v2864 = vmul.f32 %v2817, %v2841
  %v2865 = vmul.f32 %v2819, %v2846
  %v2866 = vmul.f32 %v2821, %v2851
  %v2867 = vmul.f32 %v2823, %v2856
  %v2868 = vmul.f32 %v2825, %v2861
  %s2869 = scalar_lea.vmem %s15, 6
  %v2870 = vld [vmem:[%s2869] sm:$0x1]
  %v2872 = vlaneseq
  %v2873 = vshrl.u32 %v2872, 7
  %v2874 = vsub.s32 0, %v2873
  %v2875 = vrot.slane %v2870, %v2874
  %v2877 = vmul.f32 %v2863, %v2875
  %v2878 = vmul.f32 %v2864, %v2875
  %v2879 = vmul.f32 %v2865, %v2875
  %v2880 = vmul.f32 %v2866, %v2875
  %v2881 = vmul.f32 %v2867, %v2875
  %v2882 = vmul.f32 %v2868, %v2875
  %v2883 = vadd.f32 %v2808, %v2877
  %v2884 = vadd.f32 %v2809, %v2878
  %v2885 = vadd.f32 %v2810, %v2879
  %v2886 = vadd.f32 %v2811, %v2880
  %v2887 = vadd.f32 %v2812, %v2881
  %v2888 = vadd.f32 %v2813, %v2882
  %2889 = vrot.lane.b32.xlu0 %v2372, 120
  %v2890 = vpop.permute.xlu0 %2889
  %2891 = vrot.lane.b32.xlu0 %v2373, 120
  %v2892 = vpop.permute.xlu0 %2891
  %2893 = vrot.lane.b32.xlu0 %v2374, 120
  %v2894 = vpop.permute.xlu0 %2893
  %2895 = vrot.lane.b32.xlu0 %v2375, 120
  %v2896 = vpop.permute.xlu0 %2895
  %2897 = vrot.lane.b32.xlu0 %v2376, 120
  %v2898 = vpop.permute.xlu0 %2897
  %2899 = vrot.lane.b32.xlu0 %v2377, 120
  %v2900 = vpop.permute.xlu0 %2899
  %s2901 = scalar_lea.vmem %s13, 336
  %v2902 = vld [vmem:[%s2901] sm:$0xff]
  %v2903 = vld [vmem:[%s2901 + $0x8] sm:$0xff]
  %v2904 = vld [vmem:[%s2901 + $0x10] sm:$0xff]
  %v2905 = vld [vmem:[%s2901 + $0x18] sm:$0xff]
  %v2906 = vld [vmem:[%s2901 + $0x20] sm:$0xff]
  %v2907 = vld [vmem:[%s2901 + $0x28] sm:$0xff]
  %2909 = vset.pattern.permute.xlu0 0
  %2910 = vperm.xlu0 %2909, %v2902
  %v2911 = vpop.permute.xlu0 %2910
  %2914 = vset.pattern.permute.xlu0 0
  %2915 = vperm.xlu0 %2914, %v2903
  %v2916 = vpop.permute.xlu0 %2915
  %2919 = vset.pattern.permute.xlu0 0
  %2920 = vperm.xlu0 %2919, %v2904
  %v2921 = vpop.permute.xlu0 %2920
  %2924 = vset.pattern.permute.xlu0 0
  %2925 = vperm.xlu0 %2924, %v2905
  %v2926 = vpop.permute.xlu0 %2925
  %2929 = vset.pattern.permute.xlu0 0
  %2930 = vperm.xlu0 %2929, %v2906
  %v2931 = vpop.permute.xlu0 %2930
  %2934 = vset.pattern.permute.xlu0 0
  %2935 = vperm.xlu0 %2934, %v2907
  %v2936 = vpop.permute.xlu0 %2935
  %v2938 = vmul.f32 %v2890, %v2911
  %v2939 = vmul.f32 %v2892, %v2916
  %v2940 = vmul.f32 %v2894, %v2921
  %v2941 = vmul.f32 %v2896, %v2926
  %v2942 = vmul.f32 %v2898, %v2931
  %v2943 = vmul.f32 %v2900, %v2936
  %s2944 = scalar_lea.vmem %s15, 7
  %v2945 = vld [vmem:[%s2944] sm:$0x1]
  %v2947 = vlaneseq
  %v2948 = vshrl.u32 %v2947, 7
  %v2949 = vsub.s32 0, %v2948
  %v2950 = vrot.slane %v2945, %v2949
  %v2952 = vmul.f32 %v2938, %v2950
  %v2953 = vmul.f32 %v2939, %v2950
  %v2954 = vmul.f32 %v2940, %v2950
  %v2955 = vmul.f32 %v2941, %v2950
  %v2956 = vmul.f32 %v2942, %v2950
  %v2957 = vmul.f32 %v2943, %v2950
  %v2958 = vadd.f32 %v2883, %v2952
  %v2959 = vadd.f32 %v2884, %v2953
  %v2960 = vadd.f32 %v2885, %v2954
  %v2961 = vadd.f32 %v2886, %v2955
  %v2962 = vadd.f32 %v2887, %v2956
  %v2963 = vadd.f32 %v2888, %v2957
  %2964 = vrot.lane.b32.xlu0 %v2372, 119
  %v2965 = vpop.permute.xlu0 %2964
  %2966 = vrot.lane.b32.xlu0 %v2373, 119
  %v2967 = vpop.permute.xlu0 %2966
  %2968 = vrot.lane.b32.xlu0 %v2374, 119
  %v2969 = vpop.permute.xlu0 %2968
  %2970 = vrot.lane.b32.xlu0 %v2375, 119
  %v2971 = vpop.permute.xlu0 %2970
  %2972 = vrot.lane.b32.xlu0 %v2376, 119
  %v2973 = vpop.permute.xlu0 %2972
  %2974 = vrot.lane.b32.xlu0 %v2377, 119
  %v2975 = vpop.permute.xlu0 %2974
  %s2976 = scalar_lea.vmem %s13, 384
  %v2977 = vld [vmem:[%s2976] sm:$0xff]
  %v2978 = vld [vmem:[%s2976 + $0x8] sm:$0xff]
  %v2979 = vld [vmem:[%s2976 + $0x10] sm:$0xff]
  %v2980 = vld [vmem:[%s2976 + $0x18] sm:$0xff]
  %v2981 = vld [vmem:[%s2976 + $0x20] sm:$0xff]
  %v2982 = vld [vmem:[%s2976 + $0x28] sm:$0xff]
  %2984 = vset.pattern.permute.xlu0 0
  %2985 = vperm.xlu0 %2984, %v2977
  %v2986 = vpop.permute.xlu0 %2985
  %2989 = vset.pattern.permute.xlu0 0
  %2990 = vperm.xlu0 %2989, %v2978
  %v2991 = vpop.permute.xlu0 %2990
  %2994 = vset.pattern.permute.xlu0 0
  %2995 = vperm.xlu0 %2994, %v2979
  %v2996 = vpop.permute.xlu0 %2995
  %2999 = vset.pattern.permute.xlu0 0
  %3000 = vperm.xlu0 %2999, %v2980
  %v3001 = vpop.permute.xlu0 %3000
  %3004 = vset.pattern.permute.xlu0 0
  %3005 = vperm.xlu0 %3004, %v2981
  %v3006 = vpop.permute.xlu0 %3005
  %3009 = vset.pattern.permute.xlu0 0
  %3010 = vperm.xlu0 %3009, %v2982
  %v3011 = vpop.permute.xlu0 %3010
  %v3013 = vmul.f32 %v2965, %v2986
  %v3014 = vmul.f32 %v2967, %v2991
  %v3015 = vmul.f32 %v2969, %v2996
  %v3016 = vmul.f32 %v2971, %v3001
  %v3017 = vmul.f32 %v2973, %v3006
  %v3018 = vmul.f32 %v2975, %v3011
  %s3019 = scalar_lea.vmem %s15, 8
  %v3020 = vld [vmem:[%s3019] sm:$0x1]
  %v3022 = vlaneseq
  %v3023 = vshrl.u32 %v3022, 7
  %v3024 = vsub.s32 0, %v3023
  %v3025 = vrot.slane %v3020, %v3024
  %v3027 = vmul.f32 %v3013, %v3025
  %v3028 = vmul.f32 %v3014, %v3025
  %v3029 = vmul.f32 %v3015, %v3025
  %v3030 = vmul.f32 %v3016, %v3025
  %v3031 = vmul.f32 %v3017, %v3025
  %v3032 = vmul.f32 %v3018, %v3025
  %v3033 = vadd.f32 %v2958, %v3027
  %v3034 = vadd.f32 %v2959, %v3028
  %v3035 = vadd.f32 %v2960, %v3029
  %v3036 = vadd.f32 %v2961, %v3030
  %v3037 = vadd.f32 %v2962, %v3031
  %v3038 = vadd.f32 %v2963, %v3032
  %v3039 = vld [vmem:[%s14] sm:$0xff]
  %v3040 = vld [vmem:[%s14 + $0x8] sm:$0xff]
  %v3041 = vld [vmem:[%s14 + $0x10] sm:$0xff]
  %v3042 = vld [vmem:[%s14 + $0x18] sm:$0xff]
  %v3043 = vld [vmem:[%s14 + $0x20] sm:$0xff]
  %v3044 = vld [vmem:[%s14 + $0x28] sm:$0xff]
  %3046 = vset.pattern.permute.xlu0 0
  %3047 = vperm.xlu0 %3046, %v3039
  %v3048 = vpop.permute.xlu0 %3047
  %3051 = vset.pattern.permute.xlu0 0
  %3052 = vperm.xlu0 %3051, %v3040
  %v3053 = vpop.permute.xlu0 %3052
  %3056 = vset.pattern.permute.xlu0 0
  %3057 = vperm.xlu0 %3056, %v3041
  %v3058 = vpop.permute.xlu0 %3057
  %3061 = vset.pattern.permute.xlu0 0
  %3062 = vperm.xlu0 %3061, %v3042
  %v3063 = vpop.permute.xlu0 %3062
  %3066 = vset.pattern.permute.xlu0 0
  %3067 = vperm.xlu0 %3066, %v3043
  %v3068 = vpop.permute.xlu0 %3067
  %3071 = vset.pattern.permute.xlu0 0
  %3072 = vperm.xlu0 %3071, %v3044
  %v3073 = vpop.permute.xlu0 %3072
  %v3075 = vadd.f32 %v3033, %v3048
  %v3076 = vadd.f32 %v3034, %v3053
  %v3077 = vadd.f32 %v3035, %v3058
  %v3078 = vadd.f32 %v3036, %v3063
  %v3079 = vadd.f32 %v3037, %v3068
  %v3080 = vadd.f32 %v3038, %v3073
  %v3081 = vmax.f32 %v3075, 0.0
  %v3082 = vmax.f32 %v3076, 0.0
  %v3083 = vmax.f32 %v3077, 0.0
  %v3084 = vmax.f32 %v3078, 0.0
  %v3085 = vmax.f32 %v3079, 0.0
  %v3086 = vmax.f32 %v3080, 0.0
  %v3087 = vmin.f32 %v3081, 6.0
  %v3088 = vmin.f32 %v3082, 6.0
  %v3089 = vmin.f32 %v3083, 6.0
  %v3090 = vmin.f32 %v3084, 6.0
  %v3091 = vmin.f32 %v3085, 6.0
  %v3092 = vmin.f32 %v3086, 6.0
  %v3093 = vld [vmem:[%s16] sm:$0xf]
  %v3094 = vld [vmem:[%s16 + $0x4] sm:$0xf]
  %v3095 = vld [vmem:[%s16 + $0x8] sm:$0xf]
  %v3096 = vpack.c.bf16 %v3088, %v3087
  %v3097 = vpack.c.bf16 %v3090, %v3089
  %v3098 = vpack.c.bf16 %v3092, %v3091
  %v3099 = vld [vmem:[%s17] sm:$0xff]
  %v3100 = vld [vmem:[%s17 + $0x8] sm:$0xff]
  %v3101 = vld [vmem:[%s17 + $0x10] sm:$0xff]
  %3103 = vset.pattern.permute.xlu0 0
  %3104 = vperm.xlu0 %3103, %v3099
  %v3105 = vpop.permute.xlu0 %3104
  %3108 = vset.pattern.permute.xlu0 0
  %3109 = vperm.xlu0 %3108, %v3100
  %v3110 = vpop.permute.xlu0 %3109
  %3113 = vset.pattern.permute.xlu0 0
  %3114 = vperm.xlu0 %3113, %v3101
  %v3115 = vpop.permute.xlu0 %3114
  %v3120 = vunpack.c.l.b16 %v3093
  %v3121 = vunpack.c.l.b16 %v3094
  %v3122 = vunpack.c.l.b16 %v3095
  %v3123 = vpack.c.b16 %v3121, %v3120
  %v3124 = vpack.c.b16 %v3122, %v3122
  %vm3125 = vcmask 392192
  %v3127 = vsel %vm3125, %v3123, 0
  %v3130 = vsel %vm3125, %v3124, 0
  %3132 = vmatprep.subr.bf16.mxu0 0
  %3133 = vmatpush1.bf16.msra.mxu0 0
  %3134 = vmatprep.subr.bf16.mxu0 0
  %3135 = vmatpush1.bf16.msra.mxu0 0
  %3136 = vmatprep.subr.bf16.mxu0 0
  %3137 = vmatpush1.bf16.msra.mxu0 0
  %3138 = vmatprep.subr.bf16.mxu0 0
  %3139 = vmatpush1.bf16.msra.mxu0 0
  %3140 = vmatprep.subr.bf16.mxu0 0
  %3141 = vmatpush1.bf16.msra.mxu0 0
  %3142 = vmatprep.subr.bf16.mxu0 0
  %3143 = vmatpush1.bf16.msra.mxu0 %v3098
  %3144 = vmatprep.subr.bf16.mxu0 0
  %3145 = vmatpush1.bf16.msra.mxu0 %v3097
  %3146 = vmatprep.subr.bf16.mxu0 0
  %3147 = vmatpush1.bf16.msra.mxu0 %v3096
  %3148 = vmatprep.subr.bf16.mxu0 0
  %3149 = vmatpush2.bf16.msra.mxu0 0
  %3150 = vmatprep.subr.bf16.mxu0 0
  %3151 = vmatpush2.bf16.msra.mxu0 0
  %3152 = vmatprep.subr.bf16.mxu0 0
  %3153 = vmatpush2.bf16.msra.mxu0 0
  %3154 = vmatprep.subr.bf16.mxu0 0
  %3155 = vmatpush2.bf16.msra.mxu0 0
  %3156 = vmatprep.subr.bf16.mxu0 0
  %3157 = vmatpush2.bf16.msra.mxu0 0
  %3158 = vmatprep.subr.bf16.mxu0 0
  %3159 = vmatpush2.bf16.msra.mxu0 0
  %3160 = vmatprep.subr.bf16.mxu0 0
  %3161 = vmatpush2.bf16.msra.mxu0 0
  %3162 = vmatprep.subr.bf16.mxu0 0
  %3163 = vmatpush2.bf16.msra.mxu0 0
  %3164 = vmatprep.mubr.bf16.mxu0 0
  %3165 = vmatmul.mubr.bf16.gmra.mxu0 %v3127
  %v3166 = vpop.f32.mrf.mxu0
  %v3167 = vadd.f32 %v3105, %v3166
  %v3168 = vpop.f32.mrf.mxu0
  %v3169 = vpop.f32.mrf.mxu0
  %v3170 = vadd.f32 %v3110, %v3169
  %v3171 = vpop.f32.mrf.mxu0
  %3172 = vmatprep.mubr.bf16.mxu0 0
  %3173 = vmatmul.mubr.bf16.gmra.mxu0 %v3130
  %v3174 = vpop.f32.mrf.mxu0
  %v3175 = vadd.f32 %v3115, %v3174
  %v3176 = vpop.f32.mrf.mxu0
  %v3177 = vpop.f32.mrf.mxu0
  %v3178 = vpop.f32.mrf.mxu0
  %3179 = vdwg.mxu0
  %v3180 = vadd.f32 %v3167, %v2223
  %v3181 = vadd.f32 %v3170, %v2226
  %v3182 = vadd.f32 %v3175, %v2231
  %v3183 = vld [vmem:[%s18] sm:$0xf]
  %v3184 = vld [vmem:[%s18 + $0x4] sm:$0xf]
  %v3185 = vld [vmem:[%s18 + $0x8] sm:$0xf]
  %v3186 = vld [vmem:[%s18 + $0xc] sm:$0xf]
  %v3187 = vld [vmem:[%s18 + $0x10] sm:$0xf]
  %v3188 = vld [vmem:[%s18 + $0x14] sm:$0xf]
  %v3189 = vld [vmem:[%s18 + $0x18] sm:$0xf]
  %v3190 = vld [vmem:[%s18 + $0x1c] sm:$0xf]
  %v3191 = vpack.c.bf16 %v3181, %v3180
  %v3192 = vpack.c.bf16 %v3182, %v3182
  %v3193 = vld [vmem:[%s19] sm:$0xff]
  %v3194 = vld [vmem:[%s19 + $0x8] sm:$0xff]
  %v3195 = vld [vmem:[%s19 + $0x10] sm:$0xff]
  %v3196 = vld [vmem:[%s19 + $0x18] sm:$0xff]
  %v3197 = vld [vmem:[%s19 + $0x20] sm:$0xff]
  %v3198 = vld [vmem:[%s19 + $0x28] sm:$0xff]
  %v3199 = vld [vmem:[%s19 + $0x30] sm:$0xff]
  %v3200 = vld [vmem:[%s19 + $0x38] sm:$0xff]
  %3202 = vset.pattern.permute.xlu0 0
  %3203 = vperm.xlu0 %3202, %v3193
  %v3204 = vpop.permute.xlu0 %3203
  %3207 = vset.pattern.permute.xlu0 0
  %3208 = vperm.xlu0 %3207, %v3194
  %v3209 = vpop.permute.xlu0 %3208
  %3212 = vset.pattern.permute.xlu0 0
  %3213 = vperm.xlu0 %3212, %v3195
  %v3214 = vpop.permute.xlu0 %3213
  %3217 = vset.pattern.permute.xlu0 0
  %3218 = vperm.xlu0 %3217, %v3196
  %v3219 = vpop.permute.xlu0 %3218
  %3222 = vset.pattern.permute.xlu0 0
  %3223 = vperm.xlu0 %3222, %v3197
  %v3224 = vpop.permute.xlu0 %3223
  %3227 = vset.pattern.permute.xlu0 0
  %3228 = vperm.xlu0 %3227, %v3198
  %v3229 = vpop.permute.xlu0 %3228
  %3232 = vset.pattern.permute.xlu0 0
  %3233 = vperm.xlu0 %3232, %v3199
  %v3234 = vpop.permute.xlu0 %3233
  %3237 = vset.pattern.permute.xlu0 0
  %3238 = vperm.xlu0 %3237, %v3200
  %v3239 = vpop.permute.xlu0 %3238
  %v3249 = vunpack.c.l.b16 %v3183
  %v3250 = vunpack.c.l.b16 %v3184
  %v3251 = vunpack.c.l.b16 %v3185
  %v3252 = vunpack.c.l.b16 %v3186
  %v3253 = vunpack.c.l.b16 %v3187
  %v3254 = vunpack.c.l.b16 %v3188
  %v3255 = vunpack.c.l.b16 %v3189
  %v3256 = vunpack.c.l.b16 %v3190
  %v3257 = vpack.c.b16 %v3250, %v3249
  %v3258 = vpack.c.b16 %v3252, %v3251
  %v3259 = vpack.c.b16 %v3254, %v3253
  %v3260 = vpack.c.b16 %v3256, %v3255
  %v3262 = vsel %vm2295, %v3257, 0
  %v3265 = vsel %vm2295, %v3258, 0
  %v3268 = vsel %vm2295, %v3259, 0
  %v3271 = vsel %vm2295, %v3260, 0
  %v3274 = vsel %vm2305, %v3192, 0
  %3276 = vmatprep.subr.bf16.mxu0 0
  %3277 = vmatpush1.bf16.msra.mxu0 0
  %3278 = vmatprep.subr.bf16.mxu0 0
  %3279 = vmatpush1.bf16.msra.mxu0 0
  %3280 = vmatprep.subr.bf16.mxu0 0
  %3281 = vmatpush1.bf16.msra.mxu0 0
  %3282 = vmatprep.subr.bf16.mxu0 0
  %3283 = vmatpush1.bf16.msra.mxu0 0
  %3284 = vmatprep.subr.bf16.mxu0 0
  %3285 = vmatpush1.bf16.msra.mxu0 0
  %3286 = vmatprep.subr.bf16.mxu0 0
  %3287 = vmatpush1.bf16.msra.mxu0 0
  %3288 = vmatprep.subr.bf16.mxu0 0
  %3289 = vmatpush1.bf16.msra.mxu0 %v3274
  %3290 = vmatprep.subr.bf16.mxu0 0
  %3291 = vmatpush1.bf16.msra.mxu0 %v3191
  %3292 = vmatprep.subr.bf16.mxu0 0
  %3293 = vmatpush2.bf16.msra.mxu0 0
  %3294 = vmatprep.subr.bf16.mxu0 0
  %3295 = vmatpush2.bf16.msra.mxu0 0
  %3296 = vmatprep.subr.bf16.mxu0 0
  %3297 = vmatpush2.bf16.msra.mxu0 0
  %3298 = vmatprep.subr.bf16.mxu0 0
  %3299 = vmatpush2.bf16.msra.mxu0 0
  %3300 = vmatprep.subr.bf16.mxu0 0
  %3301 = vmatpush2.bf16.msra.mxu0 0
  %3302 = vmatprep.subr.bf16.mxu0 0
  %3303 = vmatpush2.bf16.msra.mxu0 0
  %3304 = vmatprep.subr.bf16.mxu0 0
  %3305 = vmatpush2.bf16.msra.mxu0 0
  %3306 = vmatprep.subr.bf16.mxu0 0
  %3307 = vmatpush2.bf16.msra.mxu0 0
  %3308 = vmatprep.mubr.bf16.mxu0 0
  %3309 = vmatmul.mubr.bf16.gmra.mxu0 %v3262
  %v3310 = vpop.f32.mrf.mxu0
  %v3311 = vadd.f32 %v3204, %v3310
  %v3312 = vpop.f32.mrf.mxu0
  %v3313 = vpop.f32.mrf.mxu0
  %v3314 = vadd.f32 %v3209, %v3313
  %v3315 = vpop.f32.mrf.mxu0
  %3316 = vmatprep.mubr.bf16.mxu0 0
  %3317 = vmatmul.mubr.bf16.gmra.mxu0 %v3265
  %v3318 = vpop.f32.mrf.mxu0
  %v3319 = vadd.f32 %v3214, %v3318
  %v3320 = vpop.f32.mrf.mxu0
  %v3321 = vpop.f32.mrf.mxu0
  %v3322 = vadd.f32 %v3219, %v3321
  %v3323 = vpop.f32.mrf.mxu0
  %3324 = vmatprep.mubr.bf16.mxu0 0
  %3325 = vmatmul.mubr.bf16.gmra.mxu0 %v3268
  %v3326 = vpop.f32.mrf.mxu0
  %v3327 = vadd.f32 %v3224, %v3326
  %v3328 = vpop.f32.mrf.mxu0
  %v3329 = vpop.f32.mrf.mxu0
  %v3330 = vadd.f32 %v3229, %v3329
  %v3331 = vpop.f32.mrf.mxu0
  %3332 = vmatprep.mubr.bf16.mxu0 0
  %3333 = vmatmul.mubr.bf16.gmra.mxu0 %v3271
  %v3334 = vpop.f32.mrf.mxu0
  %v3335 = vadd.f32 %v3234, %v3334
  %v3336 = vpop.f32.mrf.mxu0
  %v3337 = vpop.f32.mrf.mxu0
  %v3338 = vadd.f32 %v3239, %v3337
  %v3339 = vpop.f32.mrf.mxu0
  %3340 = vdwg.mxu0
  %v3341 = vmax.f32 %v3311, 0.0
  %v3342 = vmax.f32 %v3314, 0.0
  %v3343 = vmax.f32 %v3319, 0.0
  %v3344 = vmax.f32 %v3322, 0.0
  %v3345 = vmax.f32 %v3327, 0.0
  %v3346 = vmax.f32 %v3330, 0.0
  %v3347 = vmax.f32 %v3335, 0.0
  %v3348 = vmax.f32 %v3338, 0.0
  %v3349 = vmin.f32 %v3341, 6.0
  %v3350 = vmin.f32 %v3342, 6.0
  %v3351 = vmin.f32 %v3343, 6.0
  %v3352 = vmin.f32 %v3344, 6.0
  %v3353 = vmin.f32 %v3345, 6.0
  %v3354 = vmin.f32 %v3346, 6.0
  %v3355 = vmin.f32 %v3347, 6.0
  %v3356 = vmin.f32 %v3348, 6.0
  %v3357 = vpack.c.bf16 %v3350, %v3349
  %v3358 = vpack.c.bf16 %v3352, %v3351
  %v3359 = vpack.c.bf16 %v3354, %v3353
  %v3360 = vpack.c.bf16 %v3356, %v3355
  %v3361 = vld [vmem:[%s20] sm:$0xf]
  %v3362 = vld [vmem:[%s20 + $0x4] sm:$0xf]
  %v3363 = vld [vmem:[%s20 + $0x8] sm:$0xf]
  %v3364 = vld [vmem:[%s20 + $0xc] sm:$0xf]
  %v3365 = vld [vmem:[%s20 + $0x10] sm:$0xf]
  %v3366 = vld [vmem:[%s20 + $0x14] sm:$0xf]
  %v3367 = vld [vmem:[%s20 + $0x18] sm:$0xf]
  %v3368 = vld [vmem:[%s20 + $0x1c] sm:$0xf]
  %v3369 = vld [vmem:[%s20 + $0x20] sm:$0xf]
  %v3370 = vld [vmem:[%s20 + $0x24] sm:$0xf]
  %v3371 = vld [vmem:[%s20 + $0x28] sm:$0xf]
  %v3372 = vld [vmem:[%s20 + $0x2c] sm:$0xf]
  %v3373 = vld [vmem:[%s20 + $0x30] sm:$0xf]
  %v3374 = vld [vmem:[%s20 + $0x34] sm:$0xf]
  %v3375 = vld [vmem:[%s20 + $0x38] sm:$0xf]
  %v3376 = vld [vmem:[%s20 + $0x3c] sm:$0xf]
  %v3393 = vunpack.c.l.b16 %v3361
  %v3394 = vunpack.c.l.b16 %v3362
  %v3395 = vunpack.c.l.b16 %v3363
  %v3396 = vunpack.c.l.b16 %v3364
  %v3397 = vunpack.c.l.b16 %v3365
  %v3398 = vunpack.c.l.b16 %v3366
  %v3399 = vunpack.c.l.b16 %v3367
  %v3400 = vunpack.c.l.b16 %v3368
  %v3401 = vunpack.c.l.b16 %v3369
  %v3402 = vunpack.c.l.b16 %v3370
  %v3403 = vunpack.c.l.b16 %v3371
  %v3404 = vunpack.c.l.b16 %v3372
  %v3405 = vunpack.c.l.b16 %v3373
  %v3406 = vunpack.c.l.b16 %v3374
  %v3407 = vunpack.c.l.b16 %v3375
  %v3408 = vunpack.c.l.b16 %v3376
  %v3409 = vpack.c.b16 %v3394, %v3393
  %v3410 = vpack.c.b16 %v3396, %v3395
  %v3411 = vpack.c.b16 %v3398, %v3397
  %v3412 = vpack.c.b16 %v3400, %v3399
  %v3413 = vpack.c.b16 %v3402, %v3401
  %v3414 = vpack.c.b16 %v3404, %v3403
  %v3415 = vpack.c.b16 %v3406, %v3405
  %v3416 = vpack.c.b16 %v3408, %v3407
  %3425 = vmatprep.subr.bf16.mxu0 0
  %3426 = vmatpush1.bf16.msra.mxu0 %v3416
  %3427 = vmatprep.subr.bf16.mxu0 0
  %3428 = vmatpush1.bf16.msra.mxu0 %v3415
  %3429 = vmatprep.subr.bf16.mxu0 0
  %3430 = vmatpush1.bf16.msra.mxu0 %v3414
  %3431 = vmatprep.subr.bf16.mxu0 0
  %3432 = vmatpush1.bf16.msra.mxu0 %v3413
  %3433 = vmatprep.subr.bf16.mxu0 0
  %3434 = vmatpush1.bf16.msra.mxu0 %v3412
  %3435 = vmatprep.subr.bf16.mxu0 0
  %3436 = vmatpush1.bf16.msra.mxu0 %v3411
  %3437 = vmatprep.subr.bf16.mxu0 0
  %3438 = vmatpush1.bf16.msra.mxu0 %v3410
  %3439 = vmatprep.subr.bf16.mxu0 0
  %3440 = vmatpush1.bf16.msra.mxu0 %v3409
  %3441 = vmatprep.subr.bf16.mxu0 0
  %3442 = vmatpush2.bf16.msra.mxu0 0
  %3443 = vmatprep.subr.bf16.mxu0 0
  %3444 = vmatpush2.bf16.msra.mxu0 0
  %3445 = vmatprep.subr.bf16.mxu0 0
  %3446 = vmatpush2.bf16.msra.mxu0 0
  %3447 = vmatprep.subr.bf16.mxu0 0
  %3448 = vmatpush2.bf16.msra.mxu0 0
  %3449 = vmatprep.subr.bf16.mxu0 0
  %3450 = vmatpush2.bf16.msra.mxu0 0
  %3451 = vmatprep.subr.bf16.mxu0 0
  %3452 = vmatpush2.bf16.msra.mxu0 0
  %3453 = vmatprep.subr.bf16.mxu0 0
  %3454 = vmatpush2.bf16.msra.mxu0 0
  %3455 = vmatprep.subr.bf16.mxu0 0
  %3456 = vmatpush2.bf16.msra.mxu0 0
  %3457 = vmatprep.mubr.bf16.mxu0 0
  %3458 = vmatmul.mubr.bf16.gmra.mxu0 %v3357
  %v3459 = vpop.f32.mrf.mxu0
  %v3460 = vadd.f32 0.0, %v3459
  %v3461 = vpop.f32.mrf.mxu0
  %v3462 = vpop.f32.mrf.mxu0
  %v3463 = vadd.f32 0.0, %v3462
  %v3464 = vpop.f32.mrf.mxu0
  %3465 = vmatprep.mubr.bf16.mxu0 0
  %3466 = vmatmul.mubr.bf16.gmra.mxu0 %v3358
  %v3467 = vpop.f32.mrf.mxu0
  %v3468 = vadd.f32 0.0, %v3467
  %v3469 = vpop.f32.mrf.mxu0
  %v3470 = vpop.f32.mrf.mxu0
  %v3471 = vadd.f32 0.0, %v3470
  %v3472 = vpop.f32.mrf.mxu0
  %3473 = vmatprep.mubr.bf16.mxu0 0
  %3474 = vmatmul.mubr.bf16.gmra.mxu0 %v3359
  %v3475 = vpop.f32.mrf.mxu0
  %v3476 = vadd.f32 0.0, %v3475
  %v3477 = vpop.f32.mrf.mxu0
  %v3478 = vpop.f32.mrf.mxu0
  %v3479 = vadd.f32 0.0, %v3478
  %v3480 = vpop.f32.mrf.mxu0
  %3481 = vmatprep.mubr.bf16.mxu0 0
  %3482 = vmatmul.mubr.bf16.gmra.mxu0 %v3360
  %v3483 = vpop.f32.mrf.mxu0
  %v3484 = vadd.f32 0.0, %v3483
  %v3485 = vpop.f32.mrf.mxu0
  %v3486 = vpop.f32.mrf.mxu0
  %v3487 = vadd.f32 0.0, %v3486
  %v3488 = vpop.f32.mrf.mxu0
  %3489 = vdwg.mxu0
  %v3490 = vld [vmem:[%s21] sm:$0xf]
  %v3491 = vld [vmem:[%s21 + $0x4] sm:$0x1]
  %v3492 = vpack.c.bf16 %v3463, %v3460
  %v3493 = vpack.c.bf16 %v3471, %v3468
  %v3494 = vpack.c.bf16 %v3479, %v3476
  %v3495 = vpack.c.bf16 %v3487, %v3484
  %v3496 = vld [vmem:[%s22] sm:$0xff]
  %v3497 = vld [vmem:[%s22 + $0x8] sm:$0x3]
  %3499 = vset.pattern.permute.xlu0 0
  %3500 = vperm.xlu0 %3499, %v3496
  %v3501 = vpop.permute.xlu0 %3500
  %3504 = vset.pattern.permute.xlu0 0
  %3505 = vperm.xlu0 %3504, %v3497
  %v3506 = vpop.permute.xlu0 %3505
  %v3510 = vunpack.c.l.b16 %v3490
  %v3511 = vunpack.c.l.b16 %v3491
  %v3512 = vpack.c.b16 %v3511, %v3510
  %vm3513 = vcmask 523264
  %v3515 = vsel %vm3513, %v3512, 0
  %3517 = vmatprep.subr.bf16.mxu0 0
  %3518 = vmatpush1.bf16.msra.mxu0 0
  %3519 = vmatprep.subr.bf16.mxu0 0
  %3520 = vmatpush1.bf16.msra.mxu0 0
  %3521 = vmatprep.subr.bf16.mxu0 0
  %3522 = vmatpush1.bf16.msra.mxu0 0
  %3523 = vmatprep.subr.bf16.mxu0 0
  %3524 = vmatpush1.bf16.msra.mxu0 0
  %3525 = vmatprep.subr.bf16.mxu0 0
  %3526 = vmatpush1.bf16.msra.mxu0 %v3495
  %3527 = vmatprep.subr.bf16.mxu0 0
  %3528 = vmatpush1.bf16.msra.mxu0 %v3494
  %3529 = vmatprep.subr.bf16.mxu0 0
  %3530 = vmatpush1.bf16.msra.mxu0 %v3493
  %3531 = vmatprep.subr.bf16.mxu0 0
  %3532 = vmatpush1.bf16.msra.mxu0 %v3492
  %3533 = vmatprep.subr.bf16.mxu0 0
  %3534 = vmatpush2.bf16.msra.mxu0 0
  %3535 = vmatprep.subr.bf16.mxu0 0
  %3536 = vmatpush2.bf16.msra.mxu0 0
  %3537 = vmatprep.subr.bf16.mxu0 0
  %3538 = vmatpush2.bf16.msra.mxu0 0
  %3539 = vmatprep.subr.bf16.mxu0 0
  %3540 = vmatpush2.bf16.msra.mxu0 0
  %3541 = vmatprep.subr.bf16.mxu0 0
  %3542 = vmatpush2.bf16.msra.mxu0 0
  %3543 = vmatprep.subr.bf16.mxu0 0
  %3544 = vmatpush2.bf16.msra.mxu0 0
  %3545 = vmatprep.subr.bf16.mxu0 0
  %3546 = vmatpush2.bf16.msra.mxu0 0
  %3547 = vmatprep.subr.bf16.mxu0 0
  %3548 = vmatpush2.bf16.msra.mxu0 0
  %3549 = vmatprep.mubr.bf16.mxu0 0
  %3550 = vmatmul.mubr.bf16.gmra.mxu0 %v3515
  %v3551 = vpop.f32.mrf.mxu0
  %v3552 = vadd.f32 %v3501, %v3551
  %v3553 = vpop.f32.mrf.mxu0
  %v3554 = vpop.f32.mrf.mxu0
  %v3555 = vadd.f32 %v3506, %v3554
  %v3556 = vpop.f32.mrf.mxu0
  %3557 = vdwg.mxu0
  %vm3558 = vcmask 15360
  %3559 = vst.msk [vmem:[%s23] sm:$0xff] %vm3558, %v3552
  %vm3560 = vcmask 9216
  %3561 = vst.msk [vmem:[%s23 + $0x8] sm:$0x3] %vm3560, %v3555
  // Predicated region
  $region94: #{tpu_custom_call.1} parent=0 // pred_check
    _
  $region95: #{tpu_custom_call.1} parent=0 // pred_check_branch
    %3563 = sbr.rel (0) target = $region97
  $region96: #{tpu_custom_call.1} parent=0 // pred_region
    _
  $region97: #{tpu_custom_call.1} parent=0 // pred_fallthru
    _
  // Predicated region
  $region98: #{tpu_custom_call.1} parent=0 // pred_check
    _
  $region99: #{tpu_custom_call.1} parent=0 // pred_check_branch
    %3565 = sbr.rel (0) target = $region101
  $region100: #{tpu_custom_call.1} parent=0 // pred_region
    _
  $region101: #{tpu_custom_call.1} parent=0 // pred_fallthru
    _

</llo_original>
